<compile_context>
chip_gen: v6e
topology: v6e:2x2x1
jax: 0.10.0
libtpu: 0.0.40
codegen_flags: <defaults>
</compile_context>

<pallas_src>
import functools
import math

import jax
import jax.numpy as jnp
from jax.experimental import pallas as pl
from jax.experimental.pallas import tpu as pltpu


# ----------------------------- shared math helpers -----------------------------

def _ln(x, w, b, eps=1e-5):
    """LayerNorm over the last axis (PyTorch semantics, biased variance)."""
    mu = jnp.mean(x, axis=-1, keepdims=True)
    xc = x - mu
    var = jnp.mean(xc * xc, axis=-1, keepdims=True)
    return xc * jax.lax.rsqrt(var + eps) * w + b


def _mm(x, w):
    """x: (M, K) any float dtype, w: (K, O) ALREADY bf16.  f32 accumulation."""
    return jax.lax.dot_general(
        x.astype(jnp.bfloat16), w,
        dimension_numbers=(((1,), (0,)), ((), ())),
        preferred_element_type=jnp.float32)


# ----------------------------- plain-JAX glue -----------------------------

def get_timestep_embedding(t, emb_dim):
    half = emb_dim // 2
    freqs = jnp.exp(
        jnp.arange(half, dtype=jnp.float32) * -(math.log(10000.0) / (half - 1)))
    args = t.astype(jnp.float32)[:, None] * freqs[None, :]
    emb = jnp.concatenate([jnp.sin(args), jnp.cos(args)], axis=1)
    if emb_dim % 2 == 1:
        emb = jnp.pad(emb, ((0, 0), (0, 1)))
    return emb


def extract_patches(x, p):
    """NCHW image -> (B, num_patches, C*p*p), matching Conv2d(k=p, stride=p)."""
    B, C, H, W = x.shape
    hp, wp = H // p, W // p
    x = x.reshape(B, C, hp, p, wp, p)
    x = x.transpose(0, 2, 4, 1, 3, 5)             # (B, hp, wp, C, p, p)
    return x.reshape(B, hp * wp, C * p * p)


def unpatchify(y, image_size, p, C):
    """(B, N, p*p*C) -> (B, C, image_size, image_size) (torch view/permute)."""
    B, N, _ = y.shape
    hp = image_size // p
    y = y.reshape(B, hp, hp, p, p, C)
    y = y.transpose(0, 5, 1, 3, 2, 4)             # (B, C, hp, p, wp, p)
    return y.reshape(B, C, image_size, image_size)


# ----------------------------- fused Pallas kernel -----------------------------

def fused_dit_kernel(
        # folded-batch inputs (constant over the layer grid axis)
        patches_ref,      # (BN, K)  bf16
        bias0_ref,        # (BN, E)  f32   patch_bias + pos_embed + time_embed
        abias_ref,        # (BN, BN) f32   block-diagonal attention bias
        pw_ref,           # (K, E)   bf16
        # stacked per-layer params (leading depth axis, indexed by grid axis 0)
        n1w_ref, n1b_ref, wqkv_ref, bqkv_ref, wo_ref, bo_ref,
        n2w_ref, n2b_ref, w1_ref, b1_ref, w2_ref, b2_ref,
        # shared final-norm + head params
        nfw_ref, nfb_ref, hw_ref, hb_ref,
        # output, scratch
        o_ref, act_ref,
        *, nheads):
    d = pl.program_id(0)
    nlayers = pl.num_programs(0)

    BN, E = act_ref.shape
    H = nheads
    Dh = E // H
    scale = 1.0 / math.sqrt(Dh)

    # ---- stage 0: patch-embed + (pos + time) bias (first layer step only) ----
    @pl.when(d == 0)
    def _embed():
        act_ref[...] = _mm(patches_ref[...], pw_ref[...]) + bias0_ref[...]

    # ---- transformer encoder layer d (pre-LN, eval semantics) ----
    x = act_ref[...]                                          # (BN, E) f32

    h1 = _ln(x, n1w_ref[0], n1b_ref[0])
    qkv = _mm(h1, wqkv_ref[0]) + bqkv_ref[0]                  # (BN, 3E) f32

    def heads(z):                                             # (BN, E) -> (H, BN, Dh)
        return pltpu.einshape('nhd->hnd', z.reshape(BN, H, Dh)).astype(jnp.bfloat16)

    qh = heads(qkv[:, :E])
    kh = heads(qkv[:, E:2 * E])
    vh = heads(qkv[:, 2 * E:])

    s = jnp.einsum('hqd,hkd->hqk', qh, kh,
                   preferred_element_type=jnp.float32)        # (H, BN, BN)
    s = s * scale + abias_ref[...]                            # keep batches separate
    s = s - jnp.max(s, axis=-1, keepdims=True)
    pexp = jnp.exp(s)
    inv = pl.reciprocal(jnp.sum(pexp, axis=-1, keepdims=True), approx=True)
    probs = (pexp * inv).astype(jnp.bfloat16)                 # fused normalize + cast
    ctx = jnp.einsum('hqk,hkd->hqd', probs, vh,
                     preferred_element_type=jnp.float32)      # (H, BN, Dh) f32
    attn_out = pltpu.einshape('hnd->nhd', ctx).reshape(BN, E)

    x = x + _mm(attn_out, wo_ref[0]) + bo_ref[0]

    h2 = _ln(x, n2w_ref[0], n2b_ref[0])
    ff = jnp.maximum(_mm(h2, w1_ref[0]) + b1_ref[0], 0.0)
    x = x + _mm(ff, w2_ref[0]) + b2_ref[0]

    act_ref[...] = x

    # ---- final LayerNorm + output head (last layer step only) ----
    @pl.when(d == nlayers - 1)
    def _head():
        xf = _ln(x, nfw_ref[...], nfb_ref[...])
        o_ref[...] = _mm(xf, hw_ref[...]) + hb_ref[...]       # (BN, out_dim)


# ----------------------------- model wrapper -----------------------------

def init_params(key, cfg):
    """Weights in (in_features, out_features) layout; per-layer tensors stacked
    along a leading depth axis."""
    E = cfg['emb_dim']
    C = cfg['in_channels']
    p = cfg['patch_size']
    K = C * p * p
    N = (cfg['image_size'] // p) ** 2
    T = cfg['time_emb_dim']
    F = int(E * cfg['mlp_ratio'])
    D = cfg['depth']
    out_dim = p * p * C

    ks = jax.random.split(key, 14)

    def w(k, shape, s=0.05):
        return s * jax.random.normal(k, shape, jnp.float32)

    return {
        'patch_w': w(ks[0], (K, E)), 'patch_b': w(ks[1], (1, E)),
        'pos':     w(ks[2], (N, E)),
        'tm_w1':   w(ks[3], (T, E)), 'tm_b1': w(ks[4], (1, E)),
        'tm_w2':   w(ks[5], (E, E)), 'tm_b2': w(ks[6], (1, E)),
        'nfw': jnp.ones((1, E), jnp.float32), 'nfb': jnp.zeros((1, E), jnp.float32),
        'head_w': w(ks[7], (E, out_dim)), 'head_b': jnp.zeros((1, out_dim), jnp.float32),
        # stacked per-layer params
        'n1w': jnp.ones((D, 1, E), jnp.float32), 'n1b': jnp.zeros((D, 1, E), jnp.float32),
        'wqkv': w(ks[8], (D, E, 3 * E)), 'bqkv': w(ks[9], (D, 1, 3 * E)),
        'wo': w(ks[10], (D, E, E)), 'bo': jnp.zeros((D, 1, E), jnp.float32),
        'n2w': jnp.ones((D, 1, E), jnp.float32), 'n2b': jnp.zeros((D, 1, E), jnp.float32),
        'w1': w(ks[11], (D, E, F)), 'b1': w(ks[12], (D, 1, F)),
        'w2': w(ks[13], (D, F, E)), 'b2': jnp.zeros((D, 1, E), jnp.float32),
    }


def diffusion_transformer_forward(params, x, t, cfg):
    p = cfg['patch_size']
    C = cfg['in_channels']
    E = cfg['emb_dim']
    H = cfg['nheads']
    depth = cfg['depth']
    T = cfg['time_emb_dim']
    B = x.shape[0]
    out_dim = p * p * C
    F_ = params['w1'].shape[-1]

    patches = extract_patches(x, p)                      # (B, N, K)
    N, K = patches.shape[1], patches.shape[2]
    BN = B * N

    # Timestep MLP in plain JAX (M=1 matmuls are wasted MXU passes in-kernel).
    t_sin = get_timestep_embedding(t, T)                            # (B, T)
    th = jnp.maximum(t_sin @ params['tm_w1'] + params['tm_b1'], 0.0)
    temb = th @ params['tm_w2'] + params['tm_b2']                   # (B, E)

    # Fold patch bias + positional embedding + time embedding into one term.
    bias0 = (params['patch_b'][None] + params['pos'][None] + temb[:, None, :])
    bias0 = bias0.reshape(BN, E).astype(jnp.float32)

    # Block-diagonal attention bias keeps the folded-batch rows independent.
    row_b = jnp.repeat(jnp.arange(B, dtype=jnp.int32), N)           # (BN,)
    attn_bias = jnp.where(row_b[:, None] == row_b[None, :],
                          0.0, -1e30).astype(jnp.float32)           # (BN, BN)

    patches_flat = patches.reshape(BN, K).astype(jnp.bfloat16)

    bf = lambda a: a.astype(jnp.bfloat16)                # bf16 MXU weight operands
    const2 = lambda d: (0, 0)
    layer3 = lambda d: (d, 0, 0)

    in_specs = [
        pl.BlockSpec((BN, K), const2),             # patches (bf16)
        pl.BlockSpec((BN, E), const2),             # bias0
        pl.BlockSpec((BN, BN), const2),            # attn bias
        pl.BlockSpec((K, E), const2),              # patch_w (bf16)
        pl.BlockSpec((1, 1, E), layer3),           # n1w
        pl.BlockSpec((1, 1, E), layer3),           # n1b
        pl.BlockSpec((1, E, 3 * E), layer3),       # wqkv (bf16)
        pl.BlockSpec((1, 1, 3 * E), layer3),       # bqkv
        pl.BlockSpec((1, E, E), layer3),           # wo (bf16)
        pl.BlockSpec((1, 1, E), layer3),           # bo
        pl.BlockSpec((1, 1, E), layer3),           # n2w
        pl.BlockSpec((1, 1, E), layer3),           # n2b
        pl.BlockSpec((1, E, F_), layer3),          # w1 (bf16)
        pl.BlockSpec((1, 1, F_), layer3),          # b1
        pl.BlockSpec((1, F_, E), layer3),          # w2 (bf16)
        pl.BlockSpec((1, 1, E), layer3),           # b2
        pl.BlockSpec((1, E), const2),              # nfw
        pl.BlockSpec((1, E), const2),              # nfb
        pl.BlockSpec((E, out_dim), const2),        # head_w (bf16)
        pl.BlockSpec((1, out_dim), const2),        # head_b
    ]

    grid_spec = pltpu.PrefetchScalarGridSpec(
        num_scalar_prefetch=0,
        grid=(depth,),                             # layer axis only (batch folded)
        in_specs=in_specs,
        out_specs=pl.BlockSpec((BN, out_dim), const2),
        scratch_shapes=[pltpu.VMEM((BN, E), jnp.float32)],   # resident activation
    )

    y = pl.pallas_call(
        functools.partial(fused_dit_kernel, nheads=H),
        out_shape=jax.ShapeDtypeStruct((BN, out_dim), jnp.float32),
        grid_spec=grid_spec,
        compiler_params=pltpu.CompilerParams(
            dimension_semantics=("arbitrary",),
            vmem_limit_bytes=64 * 1024 * 1024),
    )(
        patches_flat, bias0, attn_bias, bf(params['patch_w']),
        params['n1w'], params['n1b'],
        bf(params['wqkv']), params['bqkv'],
        bf(params['wo']), params['bo'],
        params['n2w'], params['n2b'],
        bf(params['w1']), params['b1'],
        bf(params['w2']), params['b2'],
        params['nfw'], params['nfb'],
        bf(params['head_w']), params['head_b'],
    )

    return unpatchify(y.reshape(B, N, out_dim), cfg['image_size'], p, C)


# ----------------------------- pure-JAX f32 reference -----------------------------

def reference_forward(params, x, t, cfg):
    p = cfg['patch_size']
    C = cfg['in_channels']
    E = cfg['emb_dim']
    H = cfg['nheads']
    Dh = E // H

    patches = extract_patches(x, p)
    B, N, K = patches.shape

    t_sin = get_timestep_embedding(t, cfg['time_emb_dim'])
    h = jnp.maximum(t_sin @ params['tm_w1'] + params['tm_b1'], 0.0)
    temb = h @ params['tm_w2'] + params['tm_b2']

    xs = patches.reshape(B * N, K) @ params['patch_w'] + params['patch_b']
    xs = xs.reshape(B, N, E) + params['pos'][None] + temb[:, None, :]

    for d in range(cfg['depth']):
        hn = _ln(xs, params['n1w'][d], params['n1b'][d])
        qkv = hn @ params['wqkv'][d] + params['bqkv'][d]
        q, k, v = qkv[..., :E], qkv[..., E:2 * E], qkv[..., 2 * E:]
        q = q.reshape(B, N, H, Dh)
        k = k.reshape(B, N, H, Dh)
        v = v.reshape(B, N, H, Dh)
        s = jnp.einsum('bqhd,bkhd->bhqk', q, k) / math.sqrt(Dh)
        a = jax.nn.softmax(s, axis=-1)
        o = jnp.einsum('bhqk,bkhd->bqhd', a, v).reshape(B, N, E)
        xs = xs + (o @ params['wo'][d] + params['bo'][d])
        hn = _ln(xs, params['n2w'][d], params['n2b'][d])
        ff = jnp.maximum(hn @ params['w1'][d] + params['b1'][d], 0.0)
        xs = xs + (ff @ params['w2'][d] + params['b2'][d])

    xs = _ln(xs, params['nfw'], params['nfb'])
    y = xs @ params['head_w'] + params['head_b']
    return unpatchify(y, cfg['image_size'], p, C)


# ----------------------------- main -----------------------------

if __name__ == "__main__":
    cfg = dict(image_size=16, patch_size=4, in_channels=4, emb_dim=32,
               depth=2, nheads=4, mlp_ratio=4.0, time_emb_dim=128)

    params = init_params(jax.random.PRNGKey(0), cfg)

    kx, _ = jax.random.split(jax.random.PRNGKey(1))
    x = jax.random.normal(kx, (2, cfg['in_channels'],
                               cfg['image_size'], cfg['image_size']), jnp.float32)
    t = jnp.array([3, 17], dtype=jnp.int32)

    fwd = jax.jit(lambda pr, xx, tt: diffusion_transformer_forward(pr, xx, tt, cfg))
    out = jax.block_until_ready(fwd(params, x, t))

    ref = reference_forward(params, x, t, cfg)

    assert out.shape == (2, cfg['in_channels'], cfg['image_size'], cfg['image_size'])
    assert bool(jnp.all(jnp.isfinite(out)))
    err = float(jnp.max(jnp.abs(out - ref)))
    # bf16 MXU operands + approx softmax reciprocal vs f32 reference.
    assert err < 3e-2, f"max abs err {err}"

    print("KERNEL_OK")
</pallas_src>

<mosaic_0001>
module attributes {stable_mosaic.version = 11 : i64} {
  func.func @fused_dit_kernel(%arg0: i32, %arg1: memref<32x64xbf16, #tpu.memory_space<vmem>>, %arg2: memref<32x32xf32, #tpu.memory_space<vmem>>, %arg3: memref<32x32xf32, #tpu.memory_space<vmem>>, %arg4: memref<64x32xbf16, #tpu.memory_space<vmem>>, %arg5: memref<1x1x32xf32, #tpu.memory_space<vmem>>, %arg6: memref<1x1x32xf32, #tpu.memory_space<vmem>>, %arg7: memref<1x32x96xbf16, #tpu.memory_space<vmem>>, %arg8: memref<1x1x96xf32, #tpu.memory_space<vmem>>, %arg9: memref<1x32x32xbf16, #tpu.memory_space<vmem>>, %arg10: memref<1x1x32xf32, #tpu.memory_space<vmem>>, %arg11: memref<1x1x32xf32, #tpu.memory_space<vmem>>, %arg12: memref<1x1x32xf32, #tpu.memory_space<vmem>>, %arg13: memref<1x32x128xbf16, #tpu.memory_space<vmem>>, %arg14: memref<1x1x128xf32, #tpu.memory_space<vmem>>, %arg15: memref<1x128x32xbf16, #tpu.memory_space<vmem>>, %arg16: memref<1x1x32xf32, #tpu.memory_space<vmem>>, %arg17: memref<1x32xf32, #tpu.memory_space<vmem>>, %arg18: memref<1x32xf32, #tpu.memory_space<vmem>>, %arg19: memref<32x64xbf16, #tpu.memory_space<vmem>>, %arg20: memref<1x64xf32, #tpu.memory_space<vmem>>, %arg21: memref<32x64xf32, #tpu.memory_space<vmem>>, %arg22: memref<32x32xf32, #tpu.memory_space<vmem>>) attributes {dimension_semantics = [#tpu.dimension_semantics<arbitrary>], iteration_bounds = array<i64: 2>, scalar_prefetch = 0 : i64, scratch_operands = 1 : i64, tpu.core_type = #tpu.core_type<tc>, window_params = [{pipeline_mode = #tpu.pipeline_mode<synchronous>, transform_indices = @transform_0, window_bounds = array<i64: 32, 64>}, {pipeline_mode = #tpu.pipeline_mode<synchronous>, transform_indices = @transform_1, window_bounds = array<i64: 32, 32>}, {pipeline_mode = #tpu.pipeline_mode<synchronous>, transform_indices = @transform_2, window_bounds = array<i64: 32, 32>}, {pipeline_mode = #tpu.pipeline_mode<synchronous>, transform_indices = @transform_3, window_bounds = array<i64: 64, 32>}, {transform_indices = @transform_4, window_bounds = array<i64: 1, 1, 32>}, {transform_indices = @transform_5, window_bounds = array<i64: 1, 1, 32>}, {transform_indices = @transform_6, window_bounds = array<i64: 1, 32, 96>}, {transform_indices = @transform_7, window_bounds = array<i64: 1, 1, 96>}, {transform_indices = @transform_8, window_bounds = array<i64: 1, 32, 32>}, {transform_indices = @transform_9, window_bounds = array<i64: 1, 1, 32>}, {transform_indices = @transform_10, window_bounds = array<i64: 1, 1, 32>}, {transform_indices = @transform_11, window_bounds = array<i64: 1, 1, 32>}, {transform_indices = @transform_12, window_bounds = array<i64: 1, 32, 128>}, {transform_indices = @transform_13, window_bounds = array<i64: 1, 1, 128>}, {transform_indices = @transform_14, window_bounds = array<i64: 1, 128, 32>}, {transform_indices = @transform_15, window_bounds = array<i64: 1, 1, 32>}, {pipeline_mode = #tpu.pipeline_mode<synchronous>, transform_indices = @transform_16, window_bounds = array<i64: 1, 32>}, {pipeline_mode = #tpu.pipeline_mode<synchronous>, transform_indices = @transform_17, window_bounds = array<i64: 1, 32>}, {pipeline_mode = #tpu.pipeline_mode<synchronous>, transform_indices = @transform_18, window_bounds = array<i64: 32, 64>}, {pipeline_mode = #tpu.pipeline_mode<synchronous>, transform_indices = @transform_19, window_bounds = array<i64: 1, 64>}, {pipeline_mode = #tpu.pipeline_mode<synchronous>, transform_indices = @transform_20, window_bounds = array<i64: 32, 64>}]} {
    %c0_i32 = arith.constant 0 : i32
    %0 = arith.cmpi eq, %arg0, %c0_i32 : i32
    %1 = arith.extui %0 : i1 to i32
    %c0_i32_0 = arith.constant 0 : i32
    %2 = arith.cmpi ne, %1, %c0_i32_0 : i32
    scf.if %2 {
      %c0_62 = arith.constant 0 : index
      %c0_63 = arith.constant 0 : index
      %125 = vector.load %arg1[%c0_62, %c0_63] : memref<32x64xbf16, #tpu.memory_space<vmem>>, vector<32x64xbf16>
      %c0_64 = arith.constant 0 : index
      %c0_65 = arith.constant 0 : index
      %126 = vector.load %arg4[%c0_64, %c0_65] : memref<64x32xbf16, #tpu.memory_space<vmem>>, vector<64x32xbf16>
      %cst_66 = arith.constant dense<0.000000e+00> : vector<32x32xf32>
      %127 = tpu.matmul %125, %126, %cst_66 {dimension_numbers = #tpu.dot_dimension_numbers<[1], [0], [0], [1], [0, 0, 1, 1], [], []>} : vector<32x64xbf16>, vector<64x32xbf16>, vector<32x32xf32> -> vector<32x32xf32>
      %c0_67 = arith.constant 0 : index
      %c0_68 = arith.constant 0 : index
      %128 = vector.load %arg2[%c0_67, %c0_68] : memref<32x32xf32, #tpu.memory_space<vmem>>, vector<32x32xf32>
      %129 = arith.addf %127, %128 : vector<32x32xf32>
      %c0_69 = arith.constant 0 : index
      %c0_70 = arith.constant 0 : index
      %130 = vector.load %arg22[%c0_69, %c0_70] : memref<32x32xf32, #tpu.memory_space<vmem>>, vector<32x32xf32>
      tpu.vector_store %arg22[%c0_69, %c0_70], %129 {strides = array<i32>} : memref<32x32xf32, #tpu.memory_space<vmem>>, vector<32x32xf32>,
    } else {
    }
    %c0 = arith.constant 0 : index
    %c0_1 = arith.constant 0 : index
    %3 = vector.load %arg22[%c0, %c0_1] : memref<32x32xf32, #tpu.memory_space<vmem>>, vector<32x32xf32>
    %c0_2 = arith.constant 0 : index
    %c0_3 = arith.constant 0 : index
    %c0_4 = arith.constant 0 : index
    %4 = vector.load %arg5[%c0_2, %c0_3, %c0_4] : memref<1x1x32xf32, #tpu.memory_space<vmem>>, vector<1x1x32xf32>
    %5 = vector.shape_cast %4 : vector<1x1x32xf32> to vector<1x32xf32>
    %c0_5 = arith.constant 0 : index
    %c0_6 = arith.constant 0 : index
    %c0_7 = arith.constant 0 : index
    %6 = vector.load %arg6[%c0_5, %c0_6, %c0_7] : memref<1x1x32xf32, #tpu.memory_space<vmem>>, vector<1x1x32xf32>
    %7 = vector.shape_cast %6 : vector<1x1x32xf32> to vector<1x32xf32>
    %cst = arith.constant dense<0.000000e+00> : vector<32xf32>
    %8 = vector.multi_reduction <add>, %3, %cst [1] : vector<32x32xf32> to vector<32xf32>
    %9 = vector.shape_cast %8 : vector<32xf32> to vector<32x1xf32>
    %cst_8 = arith.constant 3.200000e+01 : f32
    %10 = vector.broadcast %cst_8 : f32 to vector<32x1xf32>
    %11 = arith.divf %9, %10 : vector<32x1xf32>
    %12 = vector.broadcast %11 : vector<32x1xf32> to vector<32x32xf32>
    %13 = arith.subf %3, %12 : vector<32x32xf32>
    %14 = arith.mulf %13, %13 : vector<32x32xf32>
    %cst_9 = arith.constant dense<0.000000e+00> : vector<32xf32>
    %15 = vector.multi_reduction <add>, %14, %cst_9 [1] : vector<32x32xf32> to vector<32xf32>
    %16 = vector.shape_cast %15 : vector<32xf32> to vector<32x1xf32>
    %cst_10 = arith.constant 3.200000e+01 : f32
    %17 = vector.broadcast %cst_10 : f32 to vector<32x1xf32>
    %18 = arith.divf %16, %17 : vector<32x1xf32>
    %cst_11 = arith.constant 9.99999974E-6 : f32
    %19 = vector.broadcast %cst_11 : f32 to vector<32x1xf32>
    %20 = arith.addf %18, %19 : vector<32x1xf32>
    %21 = math.rsqrt %20 : vector<32x1xf32>
    %22 = vector.broadcast %21 : vector<32x1xf32> to vector<32x32xf32>
    %23 = arith.mulf %13, %22 : vector<32x32xf32>
    %24 = vector.broadcast %5 : vector<1x32xf32> to vector<32x32xf32>
    %25 = arith.mulf %23, %24 : vector<32x32xf32>
    %26 = vector.broadcast %7 : vector<1x32xf32> to vector<32x32xf32>
    %27 = arith.addf %25, %26 : vector<32x32xf32>
    %c0_12 = arith.constant 0 : index
    %c0_13 = arith.constant 0 : index
    %c0_14 = arith.constant 0 : index
    %28 = vector.load %arg7[%c0_12, %c0_13, %c0_14] : memref<1x32x96xbf16, #tpu.memory_space<vmem>>, vector<1x32x96xbf16>
    %29 = vector.shape_cast %28 : vector<1x32x96xbf16> to vector<32x96xbf16>
    %30 = arith.truncf %27 : vector<32x32xf32> to vector<32x32xbf16>
    %cst_15 = arith.constant dense<0.000000e+00> : vector<32x96xf32>
    %31 = tpu.matmul %30, %29, %cst_15 {dimension_numbers = #tpu.dot_dimension_numbers<[1], [0], [0], [1], [0, 0, 1, 1], [], []>} : vector<32x32xbf16>, vector<32x96xbf16>, vector<32x96xf32> -> vector<32x96xf32>
    %c0_16 = arith.constant 0 : index
    %c0_17 = arith.constant 0 : index
    %c0_18 = arith.constant 0 : index
    %32 = vector.load %arg8[%c0_16, %c0_17, %c0_18] : memref<1x1x96xf32, #tpu.memory_space<vmem>>, vector<1x1x96xf32>
    %33 = vector.shape_cast %32 : vector<1x1x96xf32> to vector<1x96xf32>
    %34 = vector.broadcast %33 : vector<1x96xf32> to vector<32x96xf32>
    %35 = arith.addf %31, %34 : vector<32x96xf32>
    %36 = vector.extract_strided_slice %35 {offsets = [0, 0], sizes = [32, 32], strides = [1, 1]} : vector<32x96xf32> to vector<32x32xf32>
    %37 = vector.shape_cast %36 : vector<32x32xf32> to vector<32x4x8xf32>
    %38 = tpu.transpose %37, [1, 0, 2] : vector<32x4x8xf32> -> vector<4x32x8xf32>
    %39 = arith.truncf %38 : vector<4x32x8xf32> to vector<4x32x8xbf16>
    %40 = vector.extract_strided_slice %35 {offsets = [0, 32], sizes = [32, 32], strides = [1, 1]} : vector<32x96xf32> to vector<32x32xf32>
    %41 = vector.shape_cast %40 : vector<32x32xf32> to vector<32x4x8xf32>
    %42 = tpu.transpose %41, [1, 0, 2] : vector<32x4x8xf32> -> vector<4x32x8xf32>
    %43 = arith.truncf %42 : vector<4x32x8xf32> to vector<4x32x8xbf16>
    %44 = vector.extract_strided_slice %35 {offsets = [0, 64], sizes = [32, 32], strides = [1, 1]} : vector<32x96xf32> to vector<32x32xf32>
    %45 = vector.shape_cast %44 : vector<32x32xf32> to vector<32x4x8xf32>
    %46 = tpu.transpose %45, [1, 0, 2] : vector<32x4x8xf32> -> vector<4x32x8xf32>
    %47 = arith.truncf %46 : vector<4x32x8xf32> to vector<4x32x8xbf16>
    "tpu.trace_start"() <{level = 10 : i32, message = "hqd,hkd->hqk"}> : () -> ()
    %cst_19 = arith.constant dense<0.000000e+00> : vector<4x32x32xf32>
    %48 = tpu.matmul %39, %43, %cst_19 {dimension_numbers = #tpu.dot_dimension_numbers<[2], [2], [1], [1], [0, 0, 0, 1, 1, 1], [0], [0]>} : vector<4x32x8xbf16>, vector<4x32x8xbf16>, vector<4x32x32xf32> -> vector<4x32x32xf32>
    "tpu.trace_stop"() : () -> ()
    %cst_20 = arith.constant 0.353553385 : f32
    %49 = vector.broadcast %cst_20 : f32 to vector<4x32x32xf32>
    %50 = arith.mulf %48, %49 : vector<4x32x32xf32>
    %c0_21 = arith.constant 0 : index
    %c0_22 = arith.constant 0 : index
    %51 = vector.load %arg3[%c0_21, %c0_22] : memref<32x32xf32, #tpu.memory_space<vmem>>, vector<32x32xf32>
    %52 = vector.shape_cast %51 : vector<32x32xf32> to vector<1x32x32xf32>
    %53 = vector.broadcast %52 : vector<1x32x32xf32> to vector<4x32x32xf32>
    %54 = arith.addf %50, %53 : vector<4x32x32xf32>
    %cst_23 = arith.constant dense<0xFF800000> : vector<4x32xf32>
    %55 = vector.multi_reduction <maximumf>, %54, %cst_23 [2] : vector<4x32x32xf32> to vector<4x32xf32>
    %56 = vector.shape_cast %55 : vector<4x32xf32> to vector<4x32x1xf32>
    %57 = vector.broadcast %56 : vector<4x32x1xf32> to vector<4x32x32xf32>
    %58 = arith.subf %54, %57 : vector<4x32x32xf32>
    %59 = math.exp %58 : vector<4x32x32xf32>
    %cst_24 = arith.constant dense<0.000000e+00> : vector<4x32xf32>
    %60 = vector.multi_reduction <add>, %59, %cst_24 [2] : vector<4x32x32xf32> to vector<4x32xf32>
    %61 = vector.shape_cast %60 : vector<4x32xf32> to vector<4x32x1xf32>
    %62 = tpu.reciprocal %61 {approx = true} : vector<4x32x1xf32> -> vector<4x32x1xf32>
    %63 = vector.broadcast %62 : vector<4x32x1xf32> to vector<4x32x32xf32>
    %64 = arith.mulf %59, %63 : vector<4x32x32xf32>
    %65 = arith.truncf %64 : vector<4x32x32xf32> to vector<4x32x32xbf16>
    "tpu.trace_start"() <{level = 10 : i32, message = "hqk,hkd->hqd"}> : () -> ()
    %cst_25 = arith.constant dense<0.000000e+00> : vector<4x32x8xf32>
    %66 = tpu.matmul %65, %47, %cst_25 {dimension_numbers = #tpu.dot_dimension_numbers<[2], [1], [1], [2], [0, 0, 0, 1, 1, 2], [0], [0]>} : vector<4x32x32xbf16>, vector<4x32x8xbf16>, vector<4x32x8xf32> -> vector<4x32x8xf32>
    "tpu.trace_stop"() : () -> ()
    %67 = tpu.transpose %66, [1, 0, 2] : vector<4x32x8xf32> -> vector<32x4x8xf32>
    %68 = vector.shape_cast %67 : vector<32x4x8xf32> to vector<32x32xf32>
    %c0_26 = arith.constant 0 : index
    %c0_27 = arith.constant 0 : index
    %c0_28 = arith.constant 0 : index
    %69 = vector.load %arg9[%c0_26, %c0_27, %c0_28] : memref<1x32x32xbf16, #tpu.memory_space<vmem>>, vector<1x32x32xbf16>
    %70 = vector.shape_cast %69 : vector<1x32x32xbf16> to vector<32x32xbf16>
    %71 = arith.truncf %68 : vector<32x32xf32> to vector<32x32xbf16>
    %cst_29 = arith.constant dense<0.000000e+00> : vector<32x32xf32>
    %72 = tpu.matmul %71, %70, %cst_29 {dimension_numbers = #tpu.dot_dimension_numbers<[1], [0], [0], [1], [0, 0, 1, 1], [], []>} : vector<32x32xbf16>, vector<32x32xbf16>, vector<32x32xf32> -> vector<32x32xf32>
    %73 = arith.addf %3, %72 : vector<32x32xf32>
    %c0_30 = arith.constant 0 : index
    %c0_31 = arith.constant 0 : index
    %c0_32 = arith.constant 0 : index
    %74 = vector.load %arg10[%c0_30, %c0_31, %c0_32] : memref<1x1x32xf32, #tpu.memory_space<vmem>>, vector<1x1x32xf32>
    %75 = vector.shape_cast %74 : vector<1x1x32xf32> to vector<1x32xf32>
    %76 = vector.broadcast %75 : vector<1x32xf32> to vector<32x32xf32>
    %77 = arith.addf %73, %76 : vector<32x32xf32>
    %c0_33 = arith.constant 0 : index
    %c0_34 = arith.constant 0 : index
    %c0_35 = arith.constant 0 : index
    %78 = vector.load %arg11[%c0_33, %c0_34, %c0_35] : memref<1x1x32xf32, #tpu.memory_space<vmem>>, vector<1x1x32xf32>
    %79 = vector.shape_cast %78 : vector<1x1x32xf32> to vector<1x32xf32>
    %c0_36 = arith.constant 0 : index
    %c0_37 = arith.constant 0 : index
    %c0_38 = arith.constant 0 : index
    %80 = vector.load %arg12[%c0_36, %c0_37, %c0_38] : memref<1x1x32xf32, #tpu.memory_space<vmem>>, vector<1x1x32xf32>
    %81 = vector.shape_cast %80 : vector<1x1x32xf32> to vector<1x32xf32>
    %cst_39 = arith.constant dense<0.000000e+00> : vector<32xf32>
    %82 = vector.multi_reduction <add>, %77, %cst_39 [1] : vector<32x32xf32> to vector<32xf32>
    %83 = vector.shape_cast %82 : vector<32xf32> to vector<32x1xf32>
    %cst_40 = arith.constant 3.200000e+01 : f32
    %84 = vector.broadcast %cst_40 : f32 to vector<32x1xf32>
    %85 = arith.divf %83, %84 : vector<32x1xf32>
    %86 = vector.broadcast %85 : vector<32x1xf32> to vector<32x32xf32>
    %87 = arith.subf %77, %86 : vector<32x32xf32>
    %88 = arith.mulf %87, %87 : vector<32x32xf32>
    %cst_41 = arith.constant dense<0.000000e+00> : vector<32xf32>
    %89 = vector.multi_reduction <add>, %88, %cst_41 [1] : vector<32x32xf32> to vector<32xf32>
    %90 = vector.shape_cast %89 : vector<32xf32> to vector<32x1xf32>
    %cst_42 = arith.constant 3.200000e+01 : f32
    %91 = vector.broadcast %cst_42 : f32 to vector<32x1xf32>
    %92 = arith.divf %90, %91 : vector<32x1xf32>
    %cst_43 = arith.constant 9.99999974E-6 : f32
    %93 = vector.broadcast %cst_43 : f32 to vector<32x1xf32>
    %94 = arith.addf %92, %93 : vector<32x1xf32>
    %95 = math.rsqrt %94 : vector<32x1xf32>
    %96 = vector.broadcast %95 : vector<32x1xf32> to vector<32x32xf32>
    %97 = arith.mulf %87, %96 : vector<32x32xf32>
    %98 = vector.broadcast %79 : vector<1x32xf32> to vector<32x32xf32>
    %99 = arith.mulf %97, %98 : vector<32x32xf32>
    %100 = vector.broadcast %81 : vector<1x32xf32> to vector<32x32xf32>
    %101 = arith.addf %99, %100 : vector<32x32xf32>
    %c0_44 = arith.constant 0 : index
    %c0_45 = arith.constant 0 : index
    %c0_46 = arith.constant 0 : index
    %102 = vector.load %arg13[%c0_44, %c0_45, %c0_46] : memref<1x32x128xbf16, #tpu.memory_space<vmem>>, vector<1x32x128xbf16>
    %103 = vector.shape_cast %102 : vector<1x32x128xbf16> to vector<32x128xbf16>
    %104 = arith.truncf %101 : vector<32x32xf32> to vector<32x32xbf16>
    %cst_47 = arith.constant dense<0.000000e+00> : vector<32x128xf32>
    %105 = tpu.matmul %104, %103, %cst_47 {dimension_numbers = #tpu.dot_dimension_numbers<[1], [0], [0], [1], [0, 0, 1, 1], [], []>} : vector<32x32xbf16>, vector<32x128xbf16>, vector<32x128xf32> -> vector<32x128xf32>
    %c0_48 = arith.constant 0 : index
    %c0_49 = arith.constant 0 : index
    %c0_50 = arith.constant 0 : index
    %106 = vector.load %arg14[%c0_48, %c0_49, %c0_50] : memref<1x1x128xf32, #tpu.memory_space<vmem>>, vector<1x1x128xf32>
    %107 = vector.shape_cast %106 : vector<1x1x128xf32> to vector<1x128xf32>
    %108 = vector.broadcast %107 : vector<1x128xf32> to vector<32x128xf32>
    %109 = arith.addf %105, %108 : vector<32x128xf32>
    %cst_51 = arith.constant 0.000000e+00 : f32
    %110 = vector.broadcast %cst_51 : f32 to vector<32x128xf32>
    %111 = arith.maximumf %109, %110 : vector<32x128xf32>
    %c0_52 = arith.constant 0 : index
    %c0_53 = arith.constant 0 : index
    %c0_54 = arith.constant 0 : index
    %112 = vector.load %arg15[%c0_52, %c0_53, %c0_54] : memref<1x128x32xbf16, #tpu.memory_space<vmem>>, vector<1x128x32xbf16>
    %113 = vector.shape_cast %112 : vector<1x128x32xbf16> to vector<128x32xbf16>
    %114 = arith.truncf %111 : vector<32x128xf32> to vector<32x128xbf16>
    %cst_55 = arith.constant dense<0.000000e+00> : vector<32x32xf32>
    %115 = tpu.matmul %114, %113, %cst_55 {dimension_numbers = #tpu.dot_dimension_numbers<[1], [0], [0], [1], [0, 0, 1, 1], [], []>} : vector<32x128xbf16>, vector<128x32xbf16>, vector<32x32xf32> -> vector<32x32xf32>
    %116 = arith.addf %77, %115 : vector<32x32xf32>
    %c0_56 = arith.constant 0 : index
    %c0_57 = arith.constant 0 : index
    %c0_58 = arith.constant 0 : index
    %117 = vector.load %arg16[%c0_56, %c0_57, %c0_58] : memref<1x1x32xf32, #tpu.memory_space<vmem>>, vector<1x1x32xf32>
    %118 = vector.shape_cast %117 : vector<1x1x32xf32> to vector<1x32xf32>
    %119 = vector.broadcast %118 : vector<1x32xf32> to vector<32x32xf32>
    %120 = arith.addf %116, %119 : vector<32x32xf32>
    %c0_59 = arith.constant 0 : index
    %c0_60 = arith.constant 0 : index
    %121 = vector.load %arg22[%c0_59, %c0_60] : memref<32x32xf32, #tpu.memory_space<vmem>>, vector<32x32xf32>
    tpu.vector_store %arg22[%c0_59, %c0_60], %120 {strides = array<i32>} : memref<32x32xf32, #tpu.memory_space<vmem>>, vector<32x32xf32>,
    %c1_i32 = arith.constant 1 : i32
    %122 = arith.cmpi eq, %arg0, %c1_i32 : i32
    %123 = arith.extui %122 : i1 to i32
    %c0_i32_61 = arith.constant 0 : i32
    %124 = arith.cmpi ne, %123, %c0_i32_61 : i32
    scf.if %124 {
      %c0_62 = arith.constant 0 : index
      %c0_63 = arith.constant 0 : index
      %125 = vector.load %arg17[%c0_62, %c0_63] : memref<1x32xf32, #tpu.memory_space<vmem>>, vector<1x32xf32>
      %c0_64 = arith.constant 0 : index
      %c0_65 = arith.constant 0 : index
      %126 = vector.load %arg18[%c0_64, %c0_65] : memref<1x32xf32, #tpu.memory_space<vmem>>, vector<1x32xf32>
      %cst_66 = arith.constant dense<0.000000e+00> : vector<32xf32>
      %127 = vector.multi_reduction <add>, %120, %cst_66 [1] : vector<32x32xf32> to vector<32xf32>
      %128 = vector.shape_cast %127 : vector<32xf32> to vector<32x1xf32>
      %cst_67 = arith.constant 3.200000e+01 : f32
      %129 = vector.broadcast %cst_67 : f32 to vector<32x1xf32>
      %130 = arith.divf %128, %129 : vector<32x1xf32>
      %131 = vector.broadcast %130 : vector<32x1xf32> to vector<32x32xf32>
      %132 = arith.subf %120, %131 : vector<32x32xf32>
      %133 = arith.mulf %132, %132 : vector<32x32xf32>
      %cst_68 = arith.constant dense<0.000000e+00> : vector<32xf32>
      %134 = vector.multi_reduction <add>, %133, %cst_68 [1] : vector<32x32xf32> to vector<32xf32>
      %135 = vector.shape_cast %134 : vector<32xf32> to vector<32x1xf32>
      %cst_69 = arith.constant 3.200000e+01 : f32
      %136 = vector.broadcast %cst_69 : f32 to vector<32x1xf32>
      %137 = arith.divf %135, %136 : vector<32x1xf32>
      %cst_70 = arith.constant 9.99999974E-6 : f32
      %138 = vector.broadcast %cst_70 : f32 to vector<32x1xf32>
      %139 = arith.addf %137, %138 : vector<32x1xf32>
      %140 = math.rsqrt %139 : vector<32x1xf32>
      %141 = vector.broadcast %140 : vector<32x1xf32> to vector<32x32xf32>
      %142 = arith.mulf %132, %141 : vector<32x32xf32>
      %143 = vector.broadcast %125 : vector<1x32xf32> to vector<32x32xf32>
      %144 = arith.mulf %142, %143 : vector<32x32xf32>
      %145 = vector.broadcast %126 : vector<1x32xf32> to vector<32x32xf32>
      %146 = arith.addf %144, %145 : vector<32x32xf32>
      %c0_71 = arith.constant 0 : index
      %c0_72 = arith.constant 0 : index
      %147 = vector.load %arg19[%c0_71, %c0_72] : memref<32x64xbf16, #tpu.memory_space<vmem>>, vector<32x64xbf16>
      %148 = arith.truncf %146 : vector<32x32xf32> to vector<32x32xbf16>
      %cst_73 = arith.constant dense<0.000000e+00> : vector<32x64xf32>
      %149 = tpu.matmul %148, %147, %cst_73 {dimension_numbers = #tpu.dot_dimension_numbers<[1], [0], [0], [1], [0, 0, 1, 1], [], []>} : vector<32x32xbf16>, vector<32x64xbf16>, vector<32x64xf32> -> vector<32x64xf32>
      %c0_74 = arith.constant 0 : index
      %c0_75 = arith.constant 0 : index
      %150 = vector.load %arg20[%c0_74, %c0_75] : memref<1x64xf32, #tpu.memory_space<vmem>>, vector<1x64xf32>
      %151 = vector.broadcast %150 : vector<1x64xf32> to vector<32x64xf32>
      %152 = arith.addf %149, %151 : vector<32x64xf32>
      %c0_76 = arith.constant 0 : index
      %c0_77 = arith.constant 0 : index
      %153 = vector.load %arg21[%c0_76, %c0_77] : memref<32x64xf32, #tpu.memory_space<vmem>>, vector<32x64xf32>
      tpu.vector_store %arg21[%c0_76, %c0_77], %152 {strides = array<i32>} : memref<32x64xf32, #tpu.memory_space<vmem>>, vector<32x64xf32>,
    } else {
    }
    return
  }
  func.func @transform_0(%arg0: i32) -> (i32, i32) {
    %c0_i32 = arith.constant 0 : i32
    %c0_i32_0 = arith.constant 0 : i32
    %c0_i32_1 = arith.constant 0 : i32
    return %c0_i32, %c0_i32_0 : i32, i32
  }
  func.func @transform_1(%arg0: i32) -> (i32, i32) {
    %c0_i32 = arith.constant 0 : i32
    %c0_i32_0 = arith.constant 0 : i32
    %c0_i32_1 = arith.constant 0 : i32
    return %c0_i32, %c0_i32_0 : i32, i32
  }
  func.func @transform_2(%arg0: i32) -> (i32, i32) {
    %c0_i32 = arith.constant 0 : i32
    %c0_i32_0 = arith.constant 0 : i32
    %c0_i32_1 = arith.constant 0 : i32
    return %c0_i32, %c0_i32_0 : i32, i32
  }
  func.func @transform_3(%arg0: i32) -> (i32, i32) {
    %c0_i32 = arith.constant 0 : i32
    %c0_i32_0 = arith.constant 0 : i32
    %c0_i32_1 = arith.constant 0 : i32
    return %c0_i32, %c0_i32_0 : i32, i32
  }
  func.func @transform_4(%arg0: i32) -> (i32, i32, i32) {
    %c0_i32 = arith.constant 0 : i32
    %c0_i32_0 = arith.constant 0 : i32
    %c0_i32_1 = arith.constant 0 : i32
    return %arg0, %c0_i32, %c0_i32_0 : i32, i32, i32
  }
  func.func @transform_5(%arg0: i32) -> (i32, i32, i32) {
    %c0_i32 = arith.constant 0 : i32
    %c0_i32_0 = arith.constant 0 : i32
    %c0_i32_1 = arith.constant 0 : i32
    return %arg0, %c0_i32, %c0_i32_0 : i32, i32, i32
  }
  func.func @transform_6(%arg0: i32) -> (i32, i32, i32) {
    %c0_i32 = arith.constant 0 : i32
    %c0_i32_0 = arith.constant 0 : i32
    %c0_i32_1 = arith.constant 0 : i32
    return %arg0, %c0_i32, %c0_i32_0 : i32, i32, i32
  }
  func.func @transform_7(%arg0: i32) -> (i32, i32, i32) {
    %c0_i32 = arith.constant 0 : i32
    %c0_i32_0 = arith.constant 0 : i32
    %c0_i32_1 = arith.constant 0 : i32
    return %arg0, %c0_i32, %c0_i32_0 : i32, i32, i32
  }
  func.func @transform_8(%arg0: i32) -> (i32, i32, i32) {
    %c0_i32 = arith.constant 0 : i32
    %c0_i32_0 = arith.constant 0 : i32
    %c0_i32_1 = arith.constant 0 : i32
    return %arg0, %c0_i32, %c0_i32_0 : i32, i32, i32
  }
  func.func @transform_9(%arg0: i32) -> (i32, i32, i32) {
    %c0_i32 = arith.constant 0 : i32
    %c0_i32_0 = arith.constant 0 : i32
    %c0_i32_1 = arith.constant 0 : i32
    return %arg0, %c0_i32, %c0_i32_0 : i32, i32, i32
  }
  func.func @transform_10(%arg0: i32) -> (i32, i32, i32) {
    %c0_i32 = arith.constant 0 : i32
    %c0_i32_0 = arith.constant 0 : i32
    %c0_i32_1 = arith.constant 0 : i32
    return %arg0, %c0_i32, %c0_i32_0 : i32, i32, i32
  }
  func.func @transform_11(%arg0: i32) -> (i32, i32, i32) {
    %c0_i32 = arith.constant 0 : i32
    %c0_i32_0 = arith.constant 0 : i32
    %c0_i32_1 = arith.constant 0 : i32
    return %arg0, %c0_i32, %c0_i32_0 : i32, i32, i32
  }
  func.func @transform_12(%arg0: i32) -> (i32, i32, i32) {
    %c0_i32 = arith.constant 0 : i32
    %c0_i32_0 = arith.constant 0 : i32
    %c0_i32_1 = arith.constant 0 : i32
    return %arg0, %c0_i32, %c0_i32_0 : i32, i32, i32
  }
  func.func @transform_13(%arg0: i32) -> (i32, i32, i32) {
    %c0_i32 = arith.constant 0 : i32
    %c0_i32_0 = arith.constant 0 : i32
    %c0_i32_1 = arith.constant 0 : i32
    return %arg0, %c0_i32, %c0_i32_0 : i32, i32, i32
  }
  func.func @transform_14(%arg0: i32) -> (i32, i32, i32) {
    %c0_i32 = arith.constant 0 : i32
    %c0_i32_0 = arith.constant 0 : i32
    %c0_i32_1 = arith.constant 0 : i32
    return %arg0, %c0_i32, %c0_i32_0 : i32, i32, i32
  }
  func.func @transform_15(%arg0: i32) -> (i32, i32, i32) {
    %c0_i32 = arith.constant 0 : i32
    %c0_i32_0 = arith.constant 0 : i32
    %c0_i32_1 = arith.constant 0 : i32
    return %arg0, %c0_i32, %c0_i32_0 : i32, i32, i32
  }
  func.func @transform_16(%arg0: i32) -> (i32, i32) {
    %c0_i32 = arith.constant 0 : i32
    %c0_i32_0 = arith.constant 0 : i32
    %c0_i32_1 = arith.constant 0 : i32
    return %c0_i32, %c0_i32_0 : i32, i32
  }
  func.func @transform_17(%arg0: i32) -> (i32, i32) {
    %c0_i32 = arith.constant 0 : i32
    %c0_i32_0 = arith.constant 0 : i32
    %c0_i32_1 = arith.constant 0 : i32
    return %c0_i32, %c0_i32_0 : i32, i32
  }
  func.func @transform_18(%arg0: i32) -> (i32, i32) {
    %c0_i32 = arith.constant 0 : i32
    %c0_i32_0 = arith.constant 0 : i32
    %c0_i32_1 = arith.constant 0 : i32
    return %c0_i32, %c0_i32_0 : i32, i32
  }
  func.func @transform_19(%arg0: i32) -> (i32, i32) {
    %c0_i32 = arith.constant 0 : i32
    %c0_i32_0 = arith.constant 0 : i32
    %c0_i32_1 = arith.constant 0 : i32
    return %c0_i32, %c0_i32_0 : i32, i32
  }
  func.func @transform_20(%arg0: i32) -> (i32, i32) {
    %c0_i32 = arith.constant 0 : i32
    %c0_i32_0 = arith.constant 0 : i32
    %c0_i32_1 = arith.constant 0 : i32
    return %c0_i32, %c0_i32_0 : i32, i32
  }
}

</mosaic_0001>

<llo_original>
// kernel: eq.8
$region0: #{eq.8}
  %s0 = inlined_call_operand.vmem [shape: s32[2,16], index: 0, kind: input, shape index: {}]
  %s1 = inlined_call_operand.vmem [shape: s32[32], index: 1, kind: output, shape index: {}]
  $region1: #{eq.8} parent=0
    #allocation0 [shape = 'u8[4096]{0}', space=vmem, size = 0x1000, scoped, tag = 'scoped mem for output reshape']
    #allocation1 [shape = 'u8[4096]{0}', space=vmem, size = 0x1000, scoped, tag = 'scoped mem for input reshape']
    %s3 = sshll.u32 1, 2
    %s4 = ssub.s32 %s3, 1
    %v5 = vld [vmem:[%s0] sm:%s4]
    %6 = vst [vmem:[#allocation1] sm:%s4] %v5
    %v7 = vld [vmem:[#allocation1] sm:$0x1]
    %vm8 = vcmask 130048
    %9 = vst.msk [vmem:[#allocation0] sm:$0x1] %vm8, %v7
    %s10 = scalar_lea.vmem [#allocation1], 1
    %v11 = vld [vmem:[%s10] sm:$0x1]
    %12 = vrot.lane.b32.xlu0 %v11, 16
    %v13 = vpop.permute.xlu0 %12
    %vm14 = vcmask 261248
    %15 = vst.msk [vmem:[#allocation0] sm:$0x1] %vm14, %v13
    %s17 = sshll.u32 1, 1
    %s18 = ssub.s32 %s17, 1
    %v20 = vld [vmem:[#allocation0] sm:%s18]
    %s21 = sshll.u32 1, 1
    %s22 = ssub.s32 %s21, 1
    %23 = vst [vmem:[%s1] sm:%s22] %v20

// kernel: _lambda_.1
$region0: #{_lambda_.1}
  #allocation0 [shape = 'u32[]', space=smem, size = 0x4, offset = 0x4, fixed_abs, tag = 'smem constant byte address 0x4 - core index']
  #allocation1 [shape = 'u32[144,128]{1,0:T(1,128)}', space=vmem, size = 0x12000, scoped, tag = 'internal scratch']
  #allocation2 [shape = 'f32[32,32]{1,0:T(8,128)}', space=vmem, size = 0x4000, scoped, tag = 'scratch operand']
  %s0 = inlined_call_operand.vmem [shape: bf16[32,64], index: 0, kind: input, shape index: {}]
  %s1 = inlined_call_operand.vmem [shape: f32[32,32], index: 1, kind: input, shape index: {}]
  %s2 = inlined_call_operand.vmem [shape: f32[32,32], index: 2, kind: input, shape index: {}]
  %s3 = inlined_call_operand.vmem [shape: bf16[64,32], index: 3, kind: input, shape index: {}]
  %s4 = inlined_call_operand.vmem [shape: f32[2,1,32], index: 4, kind: input, shape index: {}]
  %s5 = inlined_call_operand.vmem [shape: f32[2,1,32], index: 5, kind: input, shape index: {}]
  %s6 = inlined_call_operand.vmem [shape: bf16[2,32,96], index: 6, kind: input, shape index: {}]
  %s7 = inlined_call_operand.vmem [shape: f32[2,1,96], index: 7, kind: input, shape index: {}]
  %s8 = inlined_call_operand.vmem [shape: bf16[2,32,32], index: 8, kind: input, shape index: {}]
  %s9 = inlined_call_operand.vmem [shape: f32[2,1,32], index: 9, kind: input, shape index: {}]
  %s10 = inlined_call_operand.vmem [shape: f32[2,1,32], index: 10, kind: input, shape index: {}]
  %s11 = inlined_call_operand.vmem [shape: f32[2,1,32], index: 11, kind: input, shape index: {}]
  %s12 = inlined_call_operand.vmem [shape: bf16[2,32,128], index: 12, kind: input, shape index: {}]
  %s13 = inlined_call_operand.vmem [shape: f32[2,1,128], index: 13, kind: input, shape index: {}]
  %s14 = inlined_call_operand.vmem [shape: bf16[2,128,32], index: 14, kind: input, shape index: {}]
  %s15 = inlined_call_operand.vmem [shape: f32[2,1,32], index: 15, kind: input, shape index: {}]
  %s16 = inlined_call_operand.vmem [shape: f32[1,32], index: 16, kind: input, shape index: {}]
  %s17 = inlined_call_operand.vmem [shape: f32[1,32], index: 17, kind: input, shape index: {}]
  %s18 = inlined_call_operand.vmem [shape: bf16[32,64], index: 18, kind: input, shape index: {}]
  %s19 = inlined_call_operand.vmem [shape: f32[1,64], index: 19, kind: input, shape index: {}]
  %s20 = inlined_call_operand.vmem [shape: f32[32,64], index: 20, kind: output, shape index: {}]
  %s21 = sld [smem:[#allocation0]]
  $region121: #{_lambda_.1} parent=0
    _
  %s23 = ssub.s32 1, %s21
  %s24 = scalar_select 0, %s23, %s21
  loop: start=0, step=1, limit=4
  $region2: #{_lambda_.1} parent=0 // loop_pre_header
    _
  $region3: #{_lambda_.1} parent=0 // loop_header
    %s26 = sphi 0, %s30
    %p27 = scmp.ge.s32.totalorder %s26, 4
    %s34 = sphi 0, %s34
    %s36 = sphi 0, %s34
    %s37 = sphi 0, %s36
    %s51 = sphi 0, %s37
    %s55 = sphi 0, %s55
    %s57 = sphi 0, %s55
    %s58 = sphi 0, %s57
    %s72 = sphi 0, %s58
    %s76 = sphi 0, %s76
    %s78 = sphi 0, %s76
    %s79 = sphi 0, %s78
    %s93 = sphi 0, %s79
    %s97 = sphi 0, %s97
    %s99 = sphi 0, %s97
    %s100 = sphi 0, %s99
    %s114 = sphi 0, %s100
    %s120 = sphi 0, %s122
    %s123 = sphi 0, %s120
    %s124 = sphi 0, %s123
    %s140 = sphi 0, %s124
    %s146 = sphi 0, %s148
    %s149 = sphi 0, %s146
    %s150 = sphi 0, %s149
    %s166 = sphi 0, %s150
    %s172 = sphi 0, %s174
    %s175 = sphi 0, %s172
    %s176 = sphi 0, %s175
    %s192 = sphi 0, %s176
    %s198 = sphi 0, %s200
    %s201 = sphi 0, %s198
    %s202 = sphi 0, %s201
    %s218 = sphi 0, %s202
    %s224 = sphi 0, %s226
    %s227 = sphi 0, %s224
    %s228 = sphi 0, %s227
    %s244 = sphi 0, %s228
    %s250 = sphi 0, %s252
    %s253 = sphi 0, %s250
    %s254 = sphi 0, %s253
    %s270 = sphi 0, %s254
    %s276 = sphi 0, %s278
    %s279 = sphi 0, %s276
    %s280 = sphi 0, %s279
    %s296 = sphi 0, %s280
    %s302 = sphi 0, %s304
    %s305 = sphi 0, %s302
    %s306 = sphi 0, %s305
    %s322 = sphi 0, %s306
    %s328 = sphi 0, %s330
    %s331 = sphi 0, %s328
    %s332 = sphi 0, %s331
    %s348 = sphi 0, %s332
    %s354 = sphi 0, %s356
    %s357 = sphi 0, %s354
    %s358 = sphi 0, %s357
    %s374 = sphi 0, %s358
    %s380 = sphi 0, %s382
    %s383 = sphi 0, %s380
    %s384 = sphi 0, %s383
    %s400 = sphi 0, %s384
    %s406 = sphi 0, %s408
    %s409 = sphi 0, %s406
    %s410 = sphi 0, %s409
    %s426 = sphi 0, %s410
    %s430 = sphi 0, %s430
    %s432 = sphi 0, %s430
    %s433 = sphi 0, %s432
    %s447 = sphi 0, %s433
    %s451 = sphi 0, %s451
    %s453 = sphi 0, %s451
    %s454 = sphi 0, %s453
    %s468 = sphi 0, %s454
    %s472 = sphi 0, %s472
    %s474 = sphi 0, %s472
    %s475 = sphi 0, %s474
    %s489 = sphi 0, %s475
    %s493 = sphi 0, %s493
    %s495 = sphi 0, %s493
    %s496 = sphi 0, %s495
    %s510 = sphi 0, %s496
    %s514 = sphi 0, %s514
    %s516 = sphi 0, %s514
    %s517 = sphi 0, %s516
    %s531 = sphi 0, %s517
  $region4: #{_lambda_.1} parent=0 // loop_header_branch
    %29 = sbr.rel (%p27) target = $region8
  $region5: #{_lambda_.1} parent=0 // loop_body
    %s31 = ssub.s32 %s26, 1
    %s32 = ssub.s32 %s26, 2
    %s33 = sadd.s32 %s26, 1
    %s35 = sadd.s32 %s34, 1
    %p38 = scmp.eq.s32.totalorder %s26, 1
    %p39 = scmp.ne.s32.totalorder %s34, %s36
    %p40 = scmp.eq.s32.totalorder %s26, 0
    %p41 = por %p39, %p40
    %p42 = scmp.ne.s32.totalorder %s34, %s36
    %p43 = scmp.eq.s32.totalorder %s31, 1
    %p44 = por %p42, %p43
    %p45 = scmp.ne.s32.totalorder %s36, %s37
    %p46 = scmp.eq.s32.totalorder %s31, 0
    %p47 = por %p45, %p46
    %p48 = scmp.ne.s32.totalorder %s36, %s37
    %p49 = scmp.eq.s32.totalorder %s32, 1
    %p50 = por %p48, %p49
    %p52 = scmp.ne.s32.totalorder %s37, %s51
    %p53 = scmp.eq.s32.totalorder %s32, 0
    %p54 = por %p52, %p53
    %s56 = sadd.s32 %s55, 1
    %p59 = scmp.eq.s32.totalorder %s26, 1
    %p60 = scmp.ne.s32.totalorder %s55, %s57
    %p61 = scmp.eq.s32.totalorder %s26, 0
    %p62 = por %p60, %p61
    %p63 = scmp.ne.s32.totalorder %s55, %s57
    %p64 = scmp.eq.s32.totalorder %s31, 1
    %p65 = por %p63, %p64
    %p66 = scmp.ne.s32.totalorder %s57, %s58
    %p67 = scmp.eq.s32.totalorder %s31, 0
    %p68 = por %p66, %p67
    %p69 = scmp.ne.s32.totalorder %s57, %s58
    %p70 = scmp.eq.s32.totalorder %s32, 1
    %p71 = por %p69, %p70
    %p73 = scmp.ne.s32.totalorder %s58, %s72
    %p74 = scmp.eq.s32.totalorder %s32, 0
    %p75 = por %p73, %p74
    %s77 = sadd.s32 %s76, 1
    %p80 = scmp.eq.s32.totalorder %s26, 1
    %p81 = scmp.ne.s32.totalorder %s76, %s78
    %p82 = scmp.eq.s32.totalorder %s26, 0
    %p83 = por %p81, %p82
    %p84 = scmp.ne.s32.totalorder %s76, %s78
    %p85 = scmp.eq.s32.totalorder %s31, 1
    %p86 = por %p84, %p85
    %p87 = scmp.ne.s32.totalorder %s78, %s79
    %p88 = scmp.eq.s32.totalorder %s31, 0
    %p89 = por %p87, %p88
    %p90 = scmp.ne.s32.totalorder %s78, %s79
    %p91 = scmp.eq.s32.totalorder %s32, 1
    %p92 = por %p90, %p91
    %p94 = scmp.ne.s32.totalorder %s79, %s93
    %p95 = scmp.eq.s32.totalorder %s32, 0
    %p96 = por %p94, %p95
    %s98 = sadd.s32 %s97, 1
    %p101 = scmp.eq.s32.totalorder %s26, 1
    %p102 = scmp.ne.s32.totalorder %s97, %s99
    %p103 = scmp.eq.s32.totalorder %s26, 0
    %p104 = por %p102, %p103
    %p105 = scmp.ne.s32.totalorder %s97, %s99
    %p106 = scmp.eq.s32.totalorder %s31, 1
    %p107 = por %p105, %p106
    %p108 = scmp.ne.s32.totalorder %s99, %s100
    %p109 = scmp.eq.s32.totalorder %s31, 0
    %p110 = por %p108, %p109
    %p111 = scmp.ne.s32.totalorder %s99, %s100
    %p112 = scmp.eq.s32.totalorder %s32, 1
    %p113 = por %p111, %p112
    %p115 = scmp.ne.s32.totalorder %s100, %s114
    %p116 = scmp.eq.s32.totalorder %s32, 0
    %p117 = por %p115, %p116
    %s118 = ssub.s32 %s26, %s33
    %p119 = scmp.eq.s32.totalorder %s118, 0
    %s121 = sadd.s32 %s120, 1
    %s122 = scalar_select %p119, %s120, %s121
    %p125 = pneg %p119
    %p126 = scmp.eq.s32.totalorder %s26, 1
    %p127 = por %p125, %p126
    %p128 = scmp.ne.s32.totalorder %s120, %s123
    %p129 = scmp.eq.s32.totalorder %s26, 0
    %p130 = por %p128, %p129
    %p131 = scmp.ne.s32.totalorder %s120, %s123
    %p132 = scmp.eq.s32.totalorder %s31, 1
    %p133 = por %p131, %p132
    %p134 = scmp.ne.s32.totalorder %s123, %s124
    %p135 = scmp.eq.s32.totalorder %s31, 0
    %p136 = por %p134, %p135
    %p137 = scmp.ne.s32.totalorder %s123, %s124
    %p138 = scmp.eq.s32.totalorder %s32, 1
    %p139 = por %p137, %p138
    %p141 = scmp.ne.s32.totalorder %s124, %s140
    %p142 = scmp.eq.s32.totalorder %s32, 0
    %p143 = por %p141, %p142
    %s144 = ssub.s32 %s26, %s33
    %p145 = scmp.eq.s32.totalorder %s144, 0
    %s147 = sadd.s32 %s146, 1
    %s148 = scalar_select %p145, %s146, %s147
    %p151 = pneg %p145
    %p152 = scmp.eq.s32.totalorder %s26, 1
    %p153 = por %p151, %p152
    %p154 = scmp.ne.s32.totalorder %s146, %s149
    %p155 = scmp.eq.s32.totalorder %s26, 0
    %p156 = por %p154, %p155
    %p157 = scmp.ne.s32.totalorder %s146, %s149
    %p158 = scmp.eq.s32.totalorder %s31, 1
    %p159 = por %p157, %p158
    %p160 = scmp.ne.s32.totalorder %s149, %s150
    %p161 = scmp.eq.s32.totalorder %s31, 0
    %p162 = por %p160, %p161
    %p163 = scmp.ne.s32.totalorder %s149, %s150
    %p164 = scmp.eq.s32.totalorder %s32, 1
    %p165 = por %p163, %p164
    %p167 = scmp.ne.s32.totalorder %s150, %s166
    %p168 = scmp.eq.s32.totalorder %s32, 0
    %p169 = por %p167, %p168
    %s170 = ssub.s32 %s26, %s33
    %p171 = scmp.eq.s32.totalorder %s170, 0
    %s173 = sadd.s32 %s172, 1
    %s174 = scalar_select %p171, %s172, %s173
    %p177 = pneg %p171
    %p178 = scmp.eq.s32.totalorder %s26, 1
    %p179 = por %p177, %p178
    %p180 = scmp.ne.s32.totalorder %s172, %s175
    %p181 = scmp.eq.s32.totalorder %s26, 0
    %p182 = por %p180, %p181
    %p183 = scmp.ne.s32.totalorder %s172, %s175
    %p184 = scmp.eq.s32.totalorder %s31, 1
    %p185 = por %p183, %p184
    %p186 = scmp.ne.s32.totalorder %s175, %s176
    %p187 = scmp.eq.s32.totalorder %s31, 0
    %p188 = por %p186, %p187
    %p189 = scmp.ne.s32.totalorder %s175, %s176
    %p190 = scmp.eq.s32.totalorder %s32, 1
    %p191 = por %p189, %p190
    %p193 = scmp.ne.s32.totalorder %s176, %s192
    %p194 = scmp.eq.s32.totalorder %s32, 0
    %p195 = por %p193, %p194
    %s196 = ssub.s32 %s26, %s33
    %p197 = scmp.eq.s32.totalorder %s196, 0
    %s199 = sadd.s32 %s198, 1
    %s200 = scalar_select %p197, %s198, %s199
    %p203 = pneg %p197
    %p204 = scmp.eq.s32.totalorder %s26, 1
    %p205 = por %p203, %p204
    %p206 = scmp.ne.s32.totalorder %s198, %s201
    %p207 = scmp.eq.s32.totalorder %s26, 0
    %p208 = por %p206, %p207
    %p209 = scmp.ne.s32.totalorder %s198, %s201
    %p210 = scmp.eq.s32.totalorder %s31, 1
    %p211 = por %p209, %p210
    %p212 = scmp.ne.s32.totalorder %s201, %s202
    %p213 = scmp.eq.s32.totalorder %s31, 0
    %p214 = por %p212, %p213
    %p215 = scmp.ne.s32.totalorder %s201, %s202
    %p216 = scmp.eq.s32.totalorder %s32, 1
    %p217 = por %p215, %p216
    %p219 = scmp.ne.s32.totalorder %s202, %s218
    %p220 = scmp.eq.s32.totalorder %s32, 0
    %p221 = por %p219, %p220
    %s222 = ssub.s32 %s26, %s33
    %p223 = scmp.eq.s32.totalorder %s222, 0
    %s225 = sadd.s32 %s224, 1
    %s226 = scalar_select %p223, %s224, %s225
    %p229 = pneg %p223
    %p230 = scmp.eq.s32.totalorder %s26, 1
    %p231 = por %p229, %p230
    %p232 = scmp.ne.s32.totalorder %s224, %s227
    %p233 = scmp.eq.s32.totalorder %s26, 0
    %p234 = por %p232, %p233
    %p235 = scmp.ne.s32.totalorder %s224, %s227
    %p236 = scmp.eq.s32.totalorder %s31, 1
    %p237 = por %p235, %p236
    %p238 = scmp.ne.s32.totalorder %s227, %s228
    %p239 = scmp.eq.s32.totalorder %s31, 0
    %p240 = por %p238, %p239
    %p241 = scmp.ne.s32.totalorder %s227, %s228
    %p242 = scmp.eq.s32.totalorder %s32, 1
    %p243 = por %p241, %p242
    %p245 = scmp.ne.s32.totalorder %s228, %s244
    %p246 = scmp.eq.s32.totalorder %s32, 0
    %p247 = por %p245, %p246
    %s248 = ssub.s32 %s26, %s33
    %p249 = scmp.eq.s32.totalorder %s248, 0
    %s251 = sadd.s32 %s250, 1
    %s252 = scalar_select %p249, %s250, %s251
    %p255 = pneg %p249
    %p256 = scmp.eq.s32.totalorder %s26, 1
    %p257 = por %p255, %p256
    %p258 = scmp.ne.s32.totalorder %s250, %s253
    %p259 = scmp.eq.s32.totalorder %s26, 0
    %p260 = por %p258, %p259
    %p261 = scmp.ne.s32.totalorder %s250, %s253
    %p262 = scmp.eq.s32.totalorder %s31, 1
    %p263 = por %p261, %p262
    %p264 = scmp.ne.s32.totalorder %s253, %s254
    %p265 = scmp.eq.s32.totalorder %s31, 0
    %p266 = por %p264, %p265
    %p267 = scmp.ne.s32.totalorder %s253, %s254
    %p268 = scmp.eq.s32.totalorder %s32, 1
    %p269 = por %p267, %p268
    %p271 = scmp.ne.s32.totalorder %s254, %s270
    %p272 = scmp.eq.s32.totalorder %s32, 0
    %p273 = por %p271, %p272
    %s274 = ssub.s32 %s26, %s33
    %p275 = scmp.eq.s32.totalorder %s274, 0
    %s277 = sadd.s32 %s276, 1
    %s278 = scalar_select %p275, %s276, %s277
    %p281 = pneg %p275
    %p282 = scmp.eq.s32.totalorder %s26, 1
    %p283 = por %p281, %p282
    %p284 = scmp.ne.s32.totalorder %s276, %s279
    %p285 = scmp.eq.s32.totalorder %s26, 0
    %p286 = por %p284, %p285
    %p287 = scmp.ne.s32.totalorder %s276, %s279
    %p288 = scmp.eq.s32.totalorder %s31, 1
    %p289 = por %p287, %p288
    %p290 = scmp.ne.s32.totalorder %s279, %s280
    %p291 = scmp.eq.s32.totalorder %s31, 0
    %p292 = por %p290, %p291
    %p293 = scmp.ne.s32.totalorder %s279, %s280
    %p294 = scmp.eq.s32.totalorder %s32, 1
    %p295 = por %p293, %p294
    %p297 = scmp.ne.s32.totalorder %s280, %s296
    %p298 = scmp.eq.s32.totalorder %s32, 0
    %p299 = por %p297, %p298
    %s300 = ssub.s32 %s26, %s33
    %p301 = scmp.eq.s32.totalorder %s300, 0
    %s303 = sadd.s32 %s302, 1
    %s304 = scalar_select %p301, %s302, %s303
    %p307 = pneg %p301
    %p308 = scmp.eq.s32.totalorder %s26, 1
    %p309 = por %p307, %p308
    %p310 = scmp.ne.s32.totalorder %s302, %s305
    %p311 = scmp.eq.s32.totalorder %s26, 0
    %p312 = por %p310, %p311
    %p313 = scmp.ne.s32.totalorder %s302, %s305
    %p314 = scmp.eq.s32.totalorder %s31, 1
    %p315 = por %p313, %p314
    %p316 = scmp.ne.s32.totalorder %s305, %s306
    %p317 = scmp.eq.s32.totalorder %s31, 0
    %p318 = por %p316, %p317
    %p319 = scmp.ne.s32.totalorder %s305, %s306
    %p320 = scmp.eq.s32.totalorder %s32, 1
    %p321 = por %p319, %p320
    %p323 = scmp.ne.s32.totalorder %s306, %s322
    %p324 = scmp.eq.s32.totalorder %s32, 0
    %p325 = por %p323, %p324
    %s326 = ssub.s32 %s26, %s33
    %p327 = scmp.eq.s32.totalorder %s326, 0
    %s329 = sadd.s32 %s328, 1
    %s330 = scalar_select %p327, %s328, %s329
    %p333 = pneg %p327
    %p334 = scmp.eq.s32.totalorder %s26, 1
    %p335 = por %p333, %p334
    %p336 = scmp.ne.s32.totalorder %s328, %s331
    %p337 = scmp.eq.s32.totalorder %s26, 0
    %p338 = por %p336, %p337
    %p339 = scmp.ne.s32.totalorder %s328, %s331
    %p340 = scmp.eq.s32.totalorder %s31, 1
    %p341 = por %p339, %p340
    %p342 = scmp.ne.s32.totalorder %s331, %s332
    %p343 = scmp.eq.s32.totalorder %s31, 0
    %p344 = por %p342, %p343
    %p345 = scmp.ne.s32.totalorder %s331, %s332
    %p346 = scmp.eq.s32.totalorder %s32, 1
    %p347 = por %p345, %p346
    %p349 = scmp.ne.s32.totalorder %s332, %s348
    %p350 = scmp.eq.s32.totalorder %s32, 0
    %p351 = por %p349, %p350
    %s352 = ssub.s32 %s26, %s33
    %p353 = scmp.eq.s32.totalorder %s352, 0
    %s355 = sadd.s32 %s354, 1
    %s356 = scalar_select %p353, %s354, %s355
    %p359 = pneg %p353
    %p360 = scmp.eq.s32.totalorder %s26, 1
    %p361 = por %p359, %p360
    %p362 = scmp.ne.s32.totalorder %s354, %s357
    %p363 = scmp.eq.s32.totalorder %s26, 0
    %p364 = por %p362, %p363
    %p365 = scmp.ne.s32.totalorder %s354, %s357
    %p366 = scmp.eq.s32.totalorder %s31, 1
    %p367 = por %p365, %p366
    %p368 = scmp.ne.s32.totalorder %s357, %s358
    %p369 = scmp.eq.s32.totalorder %s31, 0
    %p370 = por %p368, %p369
    %p371 = scmp.ne.s32.totalorder %s357, %s358
    %p372 = scmp.eq.s32.totalorder %s32, 1
    %p373 = por %p371, %p372
    %p375 = scmp.ne.s32.totalorder %s358, %s374
    %p376 = scmp.eq.s32.totalorder %s32, 0
    %p377 = por %p375, %p376
    %s378 = ssub.s32 %s26, %s33
    %p379 = scmp.eq.s32.totalorder %s378, 0
    %s381 = sadd.s32 %s380, 1
    %s382 = scalar_select %p379, %s380, %s381
    %p385 = pneg %p379
    %p386 = scmp.eq.s32.totalorder %s26, 1
    %p387 = por %p385, %p386
    %p388 = scmp.ne.s32.totalorder %s380, %s383
    %p389 = scmp.eq.s32.totalorder %s26, 0
    %p390 = por %p388, %p389
    %p391 = scmp.ne.s32.totalorder %s380, %s383
    %p392 = scmp.eq.s32.totalorder %s31, 1
    %p393 = por %p391, %p392
    %p394 = scmp.ne.s32.totalorder %s383, %s384
    %p395 = scmp.eq.s32.totalorder %s31, 0
    %p396 = por %p394, %p395
    %p397 = scmp.ne.s32.totalorder %s383, %s384
    %p398 = scmp.eq.s32.totalorder %s32, 1
    %p399 = por %p397, %p398
    %p401 = scmp.ne.s32.totalorder %s384, %s400
    %p402 = scmp.eq.s32.totalorder %s32, 0
    %p403 = por %p401, %p402
    %s404 = ssub.s32 %s26, %s33
    %p405 = scmp.eq.s32.totalorder %s404, 0
    %s407 = sadd.s32 %s406, 1
    %s408 = scalar_select %p405, %s406, %s407
    %p411 = pneg %p405
    %p412 = scmp.eq.s32.totalorder %s26, 1
    %p413 = por %p411, %p412
    %p414 = scmp.ne.s32.totalorder %s406, %s409
    %p415 = scmp.eq.s32.totalorder %s26, 0
    %p416 = por %p414, %p415
    %p417 = scmp.ne.s32.totalorder %s406, %s409
    %p418 = scmp.eq.s32.totalorder %s31, 1
    %p419 = por %p417, %p418
    %p420 = scmp.ne.s32.totalorder %s409, %s410
    %p421 = scmp.eq.s32.totalorder %s31, 0
    %p422 = por %p420, %p421
    %p423 = scmp.ne.s32.totalorder %s409, %s410
    %p424 = scmp.eq.s32.totalorder %s32, 1
    %p425 = por %p423, %p424
    %p427 = scmp.ne.s32.totalorder %s410, %s426
    %p428 = scmp.eq.s32.totalorder %s32, 0
    %p429 = por %p427, %p428
    %s431 = sadd.s32 %s430, 1
    %p434 = scmp.eq.s32.totalorder %s26, 1
    %p435 = scmp.ne.s32.totalorder %s430, %s432
    %p436 = scmp.eq.s32.totalorder %s26, 0
    %p437 = por %p435, %p436
    %p438 = scmp.ne.s32.totalorder %s430, %s432
    %p439 = scmp.eq.s32.totalorder %s31, 1
    %p440 = por %p438, %p439
    %p441 = scmp.ne.s32.totalorder %s432, %s433
    %p442 = scmp.eq.s32.totalorder %s31, 0
    %p443 = por %p441, %p442
    %p444 = scmp.ne.s32.totalorder %s432, %s433
    %p445 = scmp.eq.s32.totalorder %s32, 1
    %p446 = por %p444, %p445
    %p448 = scmp.ne.s32.totalorder %s433, %s447
    %p449 = scmp.eq.s32.totalorder %s32, 0
    %p450 = por %p448, %p449
    %s452 = sadd.s32 %s451, 1
    %p455 = scmp.eq.s32.totalorder %s26, 1
    %p456 = scmp.ne.s32.totalorder %s451, %s453
    %p457 = scmp.eq.s32.totalorder %s26, 0
    %p458 = por %p456, %p457
    %p459 = scmp.ne.s32.totalorder %s451, %s453
    %p460 = scmp.eq.s32.totalorder %s31, 1
    %p461 = por %p459, %p460
    %p462 = scmp.ne.s32.totalorder %s453, %s454
    %p463 = scmp.eq.s32.totalorder %s31, 0
    %p464 = por %p462, %p463
    %p465 = scmp.ne.s32.totalorder %s453, %s454
    %p466 = scmp.eq.s32.totalorder %s32, 1
    %p467 = por %p465, %p466
    %p469 = scmp.ne.s32.totalorder %s454, %s468
    %p470 = scmp.eq.s32.totalorder %s32, 0
    %p471 = por %p469, %p470
    %s473 = sadd.s32 %s472, 1
    %p476 = scmp.eq.s32.totalorder %s26, 1
    %p477 = scmp.ne.s32.totalorder %s472, %s474
    %p478 = scmp.eq.s32.totalorder %s26, 0
    %p479 = por %p477, %p478
    %p480 = scmp.ne.s32.totalorder %s472, %s474
    %p481 = scmp.eq.s32.totalorder %s31, 1
    %p482 = por %p480, %p481
    %p483 = scmp.ne.s32.totalorder %s474, %s475
    %p484 = scmp.eq.s32.totalorder %s31, 0
    %p485 = por %p483, %p484
    %p486 = scmp.ne.s32.totalorder %s474, %s475
    %p487 = scmp.eq.s32.totalorder %s32, 1
    %p488 = por %p486, %p487
    %p490 = scmp.ne.s32.totalorder %s475, %s489
    %p491 = scmp.eq.s32.totalorder %s32, 0
    %p492 = por %p490, %p491
    %s494 = sadd.s32 %s493, 1
    %p497 = scmp.eq.s32.totalorder %s26, 1
    %p498 = scmp.ne.s32.totalorder %s493, %s495
    %p499 = scmp.eq.s32.totalorder %s26, 0
    %p500 = por %p498, %p499
    %p501 = scmp.ne.s32.totalorder %s493, %s495
    %p502 = scmp.eq.s32.totalorder %s31, 1
    %p503 = por %p501, %p502
    %p504 = scmp.ne.s32.totalorder %s495, %s496
    %p505 = scmp.eq.s32.totalorder %s31, 0
    %p506 = por %p504, %p505
    %p507 = scmp.ne.s32.totalorder %s495, %s496
    %p508 = scmp.eq.s32.totalorder %s32, 1
    %p509 = por %p507, %p508
    %p511 = scmp.ne.s32.totalorder %s496, %s510
    %p512 = scmp.eq.s32.totalorder %s32, 0
    %p513 = por %p511, %p512
    %s515 = sadd.s32 %s514, 1
    %p518 = scmp.eq.s32.totalorder %s26, 1
    %p519 = scmp.ne.s32.totalorder %s514, %s516
    %p520 = scmp.eq.s32.totalorder %s26, 0
    %p521 = por %p519, %p520
    %p522 = scmp.ne.s32.totalorder %s514, %s516
    %p523 = scmp.eq.s32.totalorder %s31, 1
    %p524 = por %p522, %p523
    %p525 = scmp.ne.s32.totalorder %s516, %s517
    %p526 = scmp.eq.s32.totalorder %s31, 0
    %p527 = por %p525, %p526
    %p528 = scmp.ne.s32.totalorder %s516, %s517
    %p529 = scmp.eq.s32.totalorder %s32, 1
    %p530 = por %p528, %p529
    %p532 = scmp.ne.s32.totalorder %s517, %s531
    %p533 = scmp.eq.s32.totalorder %s32, 0
    %p534 = por %p532, %p533
    %p535 = scmp.le.s32.totalorder 1, %s26
    %p536 = scmp.lt.s32.totalorder %s26, 3
    %p537 = pnand %p535, %p536
    %p538 = pneg %p537
    // Predicated region
    $region9: #{_lambda_.1} parent=5 // pred_check
      _
    $region10: #{_lambda_.1} parent=5 // pred_check_branch
      %540 = sbr.rel (%p537) target = $region12
    $region11: #{_lambda_.1} parent=5 // pred_region
      %s541 = ssub.s32 %s26, 1
      // Predicated region
      $region13: #{_lambda_.1} parent=11 // pred_check
        %p542 = pneg %p47
      $region14: #{_lambda_.1} parent=11 // pred_check_branch
        %544 = sbr.rel (%p542) target = $region16
      $region15: #{_lambda_.1} parent=11 // pred_region
        _
      $region16: #{_lambda_.1} parent=11 // pred_fallthru
        _
      // Predicated region
      $region17: #{_lambda_.1} parent=11 // pred_check
        %p545 = pneg %p68
      $region18: #{_lambda_.1} parent=11 // pred_check_branch
        %547 = sbr.rel (%p545) target = $region20
      $region19: #{_lambda_.1} parent=11 // pred_region
        _
      $region20: #{_lambda_.1} parent=11 // pred_fallthru
        _
      // Predicated region
      $region21: #{_lambda_.1} parent=11 // pred_check
        %p548 = pneg %p89
      $region22: #{_lambda_.1} parent=11 // pred_check_branch
        %550 = sbr.rel (%p548) target = $region24
      $region23: #{_lambda_.1} parent=11 // pred_region
        _
      $region24: #{_lambda_.1} parent=11 // pred_fallthru
        _
      // Predicated region
      $region25: #{_lambda_.1} parent=11 // pred_check
        %p551 = pneg %p110
      $region26: #{_lambda_.1} parent=11 // pred_check_branch
        %553 = sbr.rel (%p551) target = $region28
      $region27: #{_lambda_.1} parent=11 // pred_region
        _
      $region28: #{_lambda_.1} parent=11 // pred_fallthru
        _
      // Predicated region
      $region29: #{_lambda_.1} parent=11 // pred_check
        %p554 = pneg %p443
      $region30: #{_lambda_.1} parent=11 // pred_check_branch
        %556 = sbr.rel (%p554) target = $region32
      $region31: #{_lambda_.1} parent=11 // pred_region
        _
      $region32: #{_lambda_.1} parent=11 // pred_fallthru
        _
      // Predicated region
      $region33: #{_lambda_.1} parent=11 // pred_check
        %p557 = pneg %p464
      $region34: #{_lambda_.1} parent=11 // pred_check_branch
        %559 = sbr.rel (%p557) target = $region36
      $region35: #{_lambda_.1} parent=11 // pred_region
        _
      $region36: #{_lambda_.1} parent=11 // pred_fallthru
        _
      // Predicated region
      $region37: #{_lambda_.1} parent=11 // pred_check
        %p560 = pneg %p485
      $region38: #{_lambda_.1} parent=11 // pred_check_branch
        %562 = sbr.rel (%p560) target = $region40
      $region39: #{_lambda_.1} parent=11 // pred_region
        _
      $region40: #{_lambda_.1} parent=11 // pred_fallthru
        _
      // Predicated region
      $region41: #{_lambda_.1} parent=11 // pred_check
        %p563 = pneg %p506
      $region42: #{_lambda_.1} parent=11 // pred_check_branch
        %565 = sbr.rel (%p563) target = $region44
      $region43: #{_lambda_.1} parent=11 // pred_region
        _
      $region44: #{_lambda_.1} parent=11 // pred_fallthru
        _
    $region12: #{_lambda_.1} parent=5 // pred_fallthru
      _
    %p566 = scmp.lt.s32.totalorder %s26, 2
    // Predicated region
    $region45: #{_lambda_.1} parent=5 // pred_check
      %p567 = pneg %p566
    $region46: #{_lambda_.1} parent=5 // pred_check_branch
      %569 = sbr.rel (%p567) target = $region48
    $region47: #{_lambda_.1} parent=5 // pred_region
      // Predicated region
      $region49: #{_lambda_.1} parent=47 // pred_check
        %p570 = pneg %p130
      $region50: #{_lambda_.1} parent=47 // pred_check_branch
        %572 = sbr.rel (%p570) target = $region52
      $region51: #{_lambda_.1} parent=47 // pred_region
        %p573 = scmp.lt.s32.totalorder %s26, 1
        %s574 = scalar_select %p573, %s26, 1
        %s575 = scalar_lea.vmem %s4, %s574
      $region52: #{_lambda_.1} parent=47 // pred_fallthru
        _
      // Predicated region
      $region53: #{_lambda_.1} parent=47 // pred_check
        %p576 = pneg %p156
      $region54: #{_lambda_.1} parent=47 // pred_check_branch
        %578 = sbr.rel (%p576) target = $region56
      $region55: #{_lambda_.1} parent=47 // pred_region
        %p579 = scmp.lt.s32.totalorder %s26, 1
        %s580 = scalar_select %p579, %s26, 1
        %s581 = scalar_lea.vmem %s5, %s580
      $region56: #{_lambda_.1} parent=47 // pred_fallthru
        _
      // Predicated region
      $region57: #{_lambda_.1} parent=47 // pred_check
        %p582 = pneg %p182
      $region58: #{_lambda_.1} parent=47 // pred_check_branch
        %584 = sbr.rel (%p582) target = $region60
      $region59: #{_lambda_.1} parent=47 // pred_region
        %p585 = scmp.lt.s32.totalorder %s26, 1
        %s586 = scalar_select %p585, %s26, 1
        %s587 = smul.addr %s586, 4
        %s588 = smul.addr %s587, 4
        %s589 = scalar_lea.vmem %s6, %s588
      $region60: #{_lambda_.1} parent=47 // pred_fallthru
        _
      // Predicated region
      $region61: #{_lambda_.1} parent=47 // pred_check
        %p590 = pneg %p208
      $region62: #{_lambda_.1} parent=47 // pred_check_branch
        %592 = sbr.rel (%p590) target = $region64
      $region63: #{_lambda_.1} parent=47 // pred_region
        %p593 = scmp.lt.s32.totalorder %s26, 1
        %s594 = scalar_select %p593, %s26, 1
        %s595 = scalar_lea.vmem %s7, %s594
      $region64: #{_lambda_.1} parent=47 // pred_fallthru
        _
      // Predicated region
      $region65: #{_lambda_.1} parent=47 // pred_check
        %p596 = pneg %p234
      $region66: #{_lambda_.1} parent=47 // pred_check_branch
        %598 = sbr.rel (%p596) target = $region68
      $region67: #{_lambda_.1} parent=47 // pred_region
        %p599 = scmp.lt.s32.totalorder %s26, 1
        %s600 = scalar_select %p599, %s26, 1
        %s601 = smul.addr %s600, 4
        %s602 = smul.addr %s601, 4
        %s603 = scalar_lea.vmem %s8, %s602
      $region68: #{_lambda_.1} parent=47 // pred_fallthru
        _
      // Predicated region
      $region69: #{_lambda_.1} parent=47 // pred_check
        %p604 = pneg %p260
      $region70: #{_lambda_.1} parent=47 // pred_check_branch
        %606 = sbr.rel (%p604) target = $region72
      $region71: #{_lambda_.1} parent=47 // pred_region
        %p607 = scmp.lt.s32.totalorder %s26, 1
        %s608 = scalar_select %p607, %s26, 1
        %s609 = scalar_lea.vmem %s9, %s608
      $region72: #{_lambda_.1} parent=47 // pred_fallthru
        _
      // Predicated region
      $region73: #{_lambda_.1} parent=47 // pred_check
        %p610 = pneg %p286
      $region74: #{_lambda_.1} parent=47 // pred_check_branch
        %612 = sbr.rel (%p610) target = $region76
      $region75: #{_lambda_.1} parent=47 // pred_region
        %p613 = scmp.lt.s32.totalorder %s26, 1
        %s614 = scalar_select %p613, %s26, 1
        %s615 = scalar_lea.vmem %s10, %s614
      $region76: #{_lambda_.1} parent=47 // pred_fallthru
        _
      // Predicated region
      $region77: #{_lambda_.1} parent=47 // pred_check
        %p616 = pneg %p312
      $region78: #{_lambda_.1} parent=47 // pred_check_branch
        %618 = sbr.rel (%p616) target = $region80
      $region79: #{_lambda_.1} parent=47 // pred_region
        %p619 = scmp.lt.s32.totalorder %s26, 1
        %s620 = scalar_select %p619, %s26, 1
        %s621 = scalar_lea.vmem %s11, %s620
      $region80: #{_lambda_.1} parent=47 // pred_fallthru
        _
      // Predicated region
      $region81: #{_lambda_.1} parent=47 // pred_check
        %p622 = pneg %p338
      $region82: #{_lambda_.1} parent=47 // pred_check_branch
        %624 = sbr.rel (%p622) target = $region84
      $region83: #{_lambda_.1} parent=47 // pred_region
        %p625 = scmp.lt.s32.totalorder %s26, 1
        %s626 = scalar_select %p625, %s26, 1
        %s627 = smul.addr %s626, 4
        %s628 = smul.addr %s627, 4
        %s629 = scalar_lea.vmem %s12, %s628
      $region84: #{_lambda_.1} parent=47 // pred_fallthru
        _
      // Predicated region
      $region85: #{_lambda_.1} parent=47 // pred_check
        %p630 = pneg %p364
      $region86: #{_lambda_.1} parent=47 // pred_check_branch
        %632 = sbr.rel (%p630) target = $region88
      $region87: #{_lambda_.1} parent=47 // pred_region
        %p633 = scmp.lt.s32.totalorder %s26, 1
        %s634 = scalar_select %p633, %s26, 1
        %s635 = scalar_lea.vmem %s13, %s634
      $region88: #{_lambda_.1} parent=47 // pred_fallthru
        _
      // Predicated region
      $region89: #{_lambda_.1} parent=47 // pred_check
        %p636 = pneg %p390
      $region90: #{_lambda_.1} parent=47 // pred_check_branch
        %638 = sbr.rel (%p636) target = $region92
      $region91: #{_lambda_.1} parent=47 // pred_region
        %p639 = scmp.lt.s32.totalorder %s26, 1
        %s640 = scalar_select %p639, %s26, 1
        %s641 = smul.addr %s640, 16
        %s642 = smul.addr %s641, 4
        %s643 = scalar_lea.vmem %s14, %s642
      $region92: #{_lambda_.1} parent=47 // pred_fallthru
        _
      // Predicated region
      $region93: #{_lambda_.1} parent=47 // pred_check
        %p644 = pneg %p416
      $region94: #{_lambda_.1} parent=47 // pred_check_branch
        %646 = sbr.rel (%p644) target = $region96
      $region95: #{_lambda_.1} parent=47 // pred_region
        %p647 = scmp.lt.s32.totalorder %s26, 1
        %s648 = scalar_select %p647, %s26, 1
        %s649 = scalar_lea.vmem %s15, %s648
      $region96: #{_lambda_.1} parent=47 // pred_fallthru
        _
    $region48: #{_lambda_.1} parent=5 // pred_fallthru
      _
    %p650 = scmp.le.s32.totalorder 1, %s26
    %p651 = scmp.lt.s32.totalorder %s26, 3
    %p652 = pnand %p650, %p651
    %p653 = pneg %p652
    // Predicated region
    $region97: #{_lambda_.1} parent=5 // pred_check
      _
    $region98: #{_lambda_.1} parent=5 // pred_check_branch
      %655 = sbr.rel (%p652) target = $region100
    $region99: #{_lambda_.1} parent=5 // pred_region
      %s656 = ssub.s32 %s26, 1
      %p657 = pneg %p47
      %p658 = pneg %p44
      %p659 = pneg %p68
      %p660 = pneg %p65
      %p661 = pneg %p89
      %p662 = pneg %p86
      %p663 = pneg %p110
      %p664 = pneg %p107
      %p665 = scmp.lt.s32.totalorder %s31, 1
      %s666 = scalar_select %p665, %s31, 1
      %s667 = scalar_lea.vmem %s4, %s666
      %p668 = pneg %p136
      %p669 = pneg %p133
      %p670 = scmp.lt.s32.totalorder %s31, 1
      %s671 = scalar_select %p670, %s31, 1
      %s672 = scalar_lea.vmem %s5, %s671
      %p673 = pneg %p162
      %p674 = pneg %p159
      %p675 = scmp.lt.s32.totalorder %s31, 1
      %s676 = scalar_select %p675, %s31, 1
      %s677 = smul.addr %s676, 4
      %s678 = smul.addr %s677, 4
      %s679 = scalar_lea.vmem %s6, %s678
      %p680 = pneg %p188
      %p681 = pneg %p185
      %p682 = scmp.lt.s32.totalorder %s31, 1
      %s683 = scalar_select %p682, %s31, 1
      %s684 = scalar_lea.vmem %s7, %s683
      %p685 = pneg %p214
      %p686 = pneg %p211
      %p687 = scmp.lt.s32.totalorder %s31, 1
      %s688 = scalar_select %p687, %s31, 1
      %s689 = smul.addr %s688, 4
      %s690 = smul.addr %s689, 4
      %s691 = scalar_lea.vmem %s8, %s690
      %p692 = pneg %p240
      %p693 = pneg %p237
      %p694 = scmp.lt.s32.totalorder %s31, 1
      %s695 = scalar_select %p694, %s31, 1
      %s696 = scalar_lea.vmem %s9, %s695
      %p697 = pneg %p266
      %p698 = pneg %p263
      %p699 = scmp.lt.s32.totalorder %s31, 1
      %s700 = scalar_select %p699, %s31, 1
      %s701 = scalar_lea.vmem %s10, %s700
      %p702 = pneg %p292
      %p703 = pneg %p289
      %p704 = scmp.lt.s32.totalorder %s31, 1
      %s705 = scalar_select %p704, %s31, 1
      %s706 = scalar_lea.vmem %s11, %s705
      %p707 = pneg %p318
      %p708 = pneg %p315
      %p709 = scmp.lt.s32.totalorder %s31, 1
      %s710 = scalar_select %p709, %s31, 1
      %s711 = smul.addr %s710, 4
      %s712 = smul.addr %s711, 4
      %s713 = scalar_lea.vmem %s12, %s712
      %p714 = pneg %p344
      %p715 = pneg %p341
      %p716 = scmp.lt.s32.totalorder %s31, 1
      %s717 = scalar_select %p716, %s31, 1
      %s718 = scalar_lea.vmem %s13, %s717
      %p719 = pneg %p370
      %p720 = pneg %p367
      %p721 = scmp.lt.s32.totalorder %s31, 1
      %s722 = scalar_select %p721, %s31, 1
      %s723 = smul.addr %s722, 16
      %s724 = smul.addr %s723, 4
      %s725 = scalar_lea.vmem %s14, %s724
      %p726 = pneg %p396
      %p727 = pneg %p393
      %p728 = scmp.lt.s32.totalorder %s31, 1
      %s729 = scalar_select %p728, %s31, 1
      %s730 = scalar_lea.vmem %s15, %s729
      %p731 = pneg %p422
      %p732 = pneg %p419
      %p733 = pneg %p443
      %p734 = pneg %p440
      %p735 = pneg %p464
      %p736 = pneg %p461
      %p737 = pneg %p485
      %p738 = pneg %p482
      %p739 = pneg %p506
      %p740 = pneg %p503
      %p741 = pneg %p527
      %p742 = pneg %p524
      %p743 = scmp.lt.s32.totalorder %s31, 1
      %s744 = scalar_select %p743, %s31, 1
      %s745 = scalar_lea.vmem %s4, %s744
      %p746 = scmp.lt.s32.totalorder %s31, 1
      %s747 = scalar_select %p746, %s31, 1
      %s748 = scalar_lea.vmem %s5, %s747
      %p749 = scmp.lt.s32.totalorder %s31, 1
      %s750 = scalar_select %p749, %s31, 1
      %s751 = smul.addr %s750, 4
      %s752 = smul.addr %s751, 4
      %s753 = scalar_lea.vmem %s6, %s752
      %p754 = scmp.lt.s32.totalorder %s31, 1
      %s755 = scalar_select %p754, %s31, 1
      %s756 = scalar_lea.vmem %s7, %s755
      %p757 = scmp.lt.s32.totalorder %s31, 1
      %s758 = scalar_select %p757, %s31, 1
      %s759 = smul.addr %s758, 4
      %s760 = smul.addr %s759, 4
      %s761 = scalar_lea.vmem %s8, %s760
      %p762 = scmp.lt.s32.totalorder %s31, 1
      %s763 = scalar_select %p762, %s31, 1
      %s764 = scalar_lea.vmem %s9, %s763
      %p765 = scmp.lt.s32.totalorder %s31, 1
      %s766 = scalar_select %p765, %s31, 1
      %s767 = scalar_lea.vmem %s10, %s766
      %p768 = scmp.lt.s32.totalorder %s31, 1
      %s769 = scalar_select %p768, %s31, 1
      %s770 = scalar_lea.vmem %s11, %s769
      %p771 = scmp.lt.s32.totalorder %s31, 1
      %s772 = scalar_select %p771, %s31, 1
      %s773 = smul.addr %s772, 4
      %s774 = smul.addr %s773, 4
      %s775 = scalar_lea.vmem %s12, %s774
      %p776 = scmp.lt.s32.totalorder %s31, 1
      %s777 = scalar_select %p776, %s31, 1
      %s778 = scalar_lea.vmem %s13, %s777
      %p779 = scmp.lt.s32.totalorder %s31, 1
      %s780 = scalar_select %p779, %s31, 1
      %s781 = smul.addr %s780, 16
      %s782 = smul.addr %s781, 4
      %s783 = scalar_lea.vmem %s14, %s782
      %p784 = scmp.lt.s32.totalorder %s31, 1
      %s785 = scalar_select %p784, %s31, 1
      %s786 = scalar_lea.vmem %s15, %s785
      %p788 = scmp.eq.s32.totalorder %s31, 0
      // Predicated region
      $region101: #{_lambda_.1} parent=99 // pred_check
        %p789 = pneg %p788
      $region102: #{_lambda_.1} parent=99 // pred_check_branch
        %791 = sbr.rel (%p789) target = $region104
      $region103: #{_lambda_.1} parent=99 // pred_region
        %v792 = vld [vmem:[%s0] sm:$0xf]
        %v793 = vld [vmem:[%s0 + $0x4] sm:$0xf]
        %v794 = vld [vmem:[%s0 + $0x8] sm:$0xf]
        %v795 = vld [vmem:[%s0 + $0xc] sm:$0xf]
        %v796 = vld [vmem:[%s3] sm:$0xf]
        %v797 = vld [vmem:[%s3 + $0x4] sm:$0xf]
        %v798 = vld [vmem:[%s3 + $0x8] sm:$0xf]
        %v799 = vld [vmem:[%s3 + $0xc] sm:$0xf]
        %v800 = vld [vmem:[%s3 + $0x10] sm:$0xf]
        %v801 = vld [vmem:[%s3 + $0x14] sm:$0xf]
        %v802 = vld [vmem:[%s3 + $0x18] sm:$0xf]
        %v803 = vld [vmem:[%s3 + $0x1c] sm:$0xf]
        %v804 = vld [vmem:[%s1] sm:$0xff]
        %v805 = vld [vmem:[%s1 + $0x8] sm:$0xff]
        %v806 = vld [vmem:[%s1 + $0x10] sm:$0xff]
        %v807 = vld [vmem:[%s1 + $0x18] sm:$0xff]
        %v812 = vunpack.c.l.b16 %v792
        %v813 = vunpack.c.l.b16 %v793
        %v814 = vunpack.c.l.b16 %v794
        %v815 = vunpack.c.l.b16 %v795
        %v816 = vpack.c.b16 %v813, %v812
        %v817 = vpack.c.b16 %v815, %v814
        %v826 = vunpack.c.l.b16 %v796
        %v827 = vunpack.c.l.b16 %v797
        %v828 = vunpack.c.l.b16 %v798
        %v829 = vunpack.c.l.b16 %v799
        %v830 = vunpack.c.l.b16 %v800
        %v831 = vunpack.c.l.b16 %v801
        %v832 = vunpack.c.l.b16 %v802
        %v833 = vunpack.c.l.b16 %v803
        %v834 = vpack.c.b16 %v827, %v826
        %v835 = vpack.c.b16 %v829, %v828
        %v836 = vpack.c.b16 %v831, %v830
        %v837 = vpack.c.b16 %v833, %v832
        %vm842 = vcmask 523264
        %v844 = vsel %vm842, %v816, 0
        %v847 = vsel %vm842, %v817, 0
        %849 = vmatprep.subr.bf16.mxu0 0
        %850 = vmatpush1.bf16.msra.mxu0 0
        %851 = vmatprep.subr.bf16.mxu0 0
        %852 = vmatpush1.bf16.msra.mxu0 0
        %853 = vmatprep.subr.bf16.mxu0 0
        %854 = vmatpush1.bf16.msra.mxu0 0
        %855 = vmatprep.subr.bf16.mxu0 0
        %856 = vmatpush1.bf16.msra.mxu0 0
        %857 = vmatprep.subr.bf16.mxu0 0
        %858 = vmatpush1.bf16.msra.mxu0 %v837
        %859 = vmatprep.subr.bf16.mxu0 0
        %860 = vmatpush1.bf16.msra.mxu0 %v836
        %861 = vmatprep.subr.bf16.mxu0 0
        %862 = vmatpush1.bf16.msra.mxu0 %v835
        %863 = vmatprep.subr.bf16.mxu0 0
        %864 = vmatpush1.bf16.msra.mxu0 %v834
        %865 = vmatprep.subr.bf16.mxu0 0
        %866 = vmatpush2.bf16.msra.mxu0 0
        %867 = vmatprep.subr.bf16.mxu0 0
        %868 = vmatpush2.bf16.msra.mxu0 0
        %869 = vmatprep.subr.bf16.mxu0 0
        %870 = vmatpush2.bf16.msra.mxu0 0
        %871 = vmatprep.subr.bf16.mxu0 0
        %872 = vmatpush2.bf16.msra.mxu0 0
        %873 = vmatprep.subr.bf16.mxu0 0
        %874 = vmatpush2.bf16.msra.mxu0 0
        %875 = vmatprep.subr.bf16.mxu0 0
        %876 = vmatpush2.bf16.msra.mxu0 0
        %877 = vmatprep.subr.bf16.mxu0 0
        %878 = vmatpush2.bf16.msra.mxu0 0
        %879 = vmatprep.subr.bf16.mxu0 0
        %880 = vmatpush2.bf16.msra.mxu0 0
        %881 = vmatprep.mubr.bf16.mxu0 0
        %882 = vmatmul.mubr.bf16.gmra.mxu0 %v844
        %v883 = vpop.f32.mrf.mxu0
        %v884 = vadd.f32 %v804, %v883
        %v885 = vpop.f32.mrf.mxu0
        %v886 = vpop.f32.mrf.mxu0
        %v887 = vadd.f32 %v805, %v886
        %v888 = vpop.f32.mrf.mxu0
        %889 = vmatprep.mubr.bf16.mxu0 0
        %890 = vmatmul.mubr.bf16.gmra.mxu0 %v847
        %v891 = vpop.f32.mrf.mxu0
        %v892 = vadd.f32 %v806, %v891
        %v893 = vpop.f32.mrf.mxu0
        %v894 = vpop.f32.mrf.mxu0
        %v895 = vadd.f32 %v807, %v894
        %v896 = vpop.f32.mrf.mxu0
        %897 = vdwg.mxu0
        %vm898 = vcmask 261120
        %899 = vst.msk [vmem:[#allocation2] sm:$0xff] %vm898, %v884
        %900 = vst.msk [vmem:[#allocation2 + $0x8] sm:$0xff] %vm898, %v887
        %901 = vst.msk [vmem:[#allocation2 + $0x10] sm:$0xff] %vm898, %v892
        %902 = vst.msk [vmem:[#allocation2 + $0x18] sm:$0xff] %vm898, %v895
      $region104: #{_lambda_.1} parent=99 // pred_fallthru
        _
      %v903 = vld [vmem:[#allocation2] sm:$0xff]
      %v904 = vld [vmem:[#allocation2 + $0x8] sm:$0xff]
      %v905 = vld [vmem:[#allocation2 + $0x10] sm:$0xff]
      %v906 = vld [vmem:[#allocation2 + $0x18] sm:$0xff]
      %v907 = vld [vmem:[%s745] sm:$0x1]
      %v908 = vld [vmem:[%s748] sm:$0x1]
      %vm909 = vcmask 261120
      %v910 = vsel %vm909, %v903, 0.0
      %911 = vadd.xlane.f32.xlu0 %v910
      %v912 = vpop.xlane.xlu0 %911
      %v913 = vsel %vm909, %v904, 0.0
      %914 = vadd.xlane.f32.xlu0 %v913
      %v915 = vpop.xlane.xlu0 %914
      %v916 = vsel %vm909, %v905, 0.0
      %917 = vadd.xlane.f32.xlu0 %v916
      %v918 = vpop.xlane.xlu0 %917
      %v919 = vsel %vm909, %v906, 0.0
      %920 = vadd.xlane.f32.xlu0 %v919
      %v921 = vpop.xlane.xlu0 %920
      %v922 = vrcp.pop 32.0
      %v923 = vmul.f32 %v912, %v922
      %v924 = vmul.f32 %v915, %v922
      %v925 = vmul.f32 %v918, %v922
      %v926 = vmul.f32 %v921, %v922
      %v927 = vsub.f32 %v903, %v923
      %v928 = vsub.f32 %v904, %v924
      %v929 = vsub.f32 %v905, %v925
      %v930 = vsub.f32 %v906, %v926
      %v931 = vmul.f32 %v927, %v927
      %v932 = vmul.f32 %v928, %v928
      %v933 = vmul.f32 %v929, %v929
      %v934 = vmul.f32 %v930, %v930
      %v935 = vsel %vm909, %v931, 0.0
      %936 = vadd.xlane.f32.xlu0 %v935
      %v937 = vpop.xlane.xlu0 %936
      %v938 = vsel %vm909, %v932, 0.0
      %939 = vadd.xlane.f32.xlu0 %v938
      %v940 = vpop.xlane.xlu0 %939
      %v941 = vsel %vm909, %v933, 0.0
      %942 = vadd.xlane.f32.xlu0 %v941
      %v943 = vpop.xlane.xlu0 %942
      %v944 = vsel %vm909, %v934, 0.0
      %945 = vadd.xlane.f32.xlu0 %v944
      %v946 = vpop.xlane.xlu0 %945
      %v947 = vmul.f32 %v937, %v922
      %v948 = vmul.f32 %v940, %v922
      %v949 = vmul.f32 %v943, %v922
      %v950 = vmul.f32 %v946, %v922
      %v951 = vadd.f32 %v947, 1e-05
      %v952 = vadd.f32 %v948, 1e-05
      %v953 = vadd.f32 %v949, 1e-05
      %v954 = vadd.f32 %v950, 1e-05
      %v955 = vrsqrt.pop %v951
      %v956 = vrsqrt.pop %v952
      %v957 = vrsqrt.pop %v953
      %v958 = vrsqrt.pop %v954
      %v959 = vmul.f32 %v927, %v955
      %v960 = vmul.f32 %v928, %v956
      %v961 = vmul.f32 %v929, %v957
      %v962 = vmul.f32 %v930, %v958
      %v964 = vlaneseq
      %v965 = vshrl.u32 %v964, 7
      %v966 = vsub.s32 0, %v965
      %v967 = vrot.slane %v907, %v966
      %v969 = vmul.f32 %v959, %v967
      %v970 = vmul.f32 %v960, %v967
      %v971 = vmul.f32 %v961, %v967
      %v972 = vmul.f32 %v962, %v967
      %v974 = vlaneseq
      %v975 = vshrl.u32 %v974, 7
      %v976 = vsub.s32 0, %v975
      %v977 = vrot.slane %v908, %v976
      %v979 = vadd.f32 %v969, %v977
      %v980 = vadd.f32 %v970, %v977
      %v981 = vadd.f32 %v971, %v977
      %v982 = vadd.f32 %v972, %v977
      %v983 = vld [vmem:[%s753] sm:$0xf]
      %v984 = vld [vmem:[%s753 + $0x4] sm:$0xf]
      %v985 = vld [vmem:[%s753 + $0x8] sm:$0xf]
      %v986 = vld [vmem:[%s753 + $0xc] sm:$0xf]
      %v987 = vpack.c.bf16 %v980, %v979
      %v988 = vpack.c.bf16 %v982, %v981
      %v989 = vld [vmem:[%s756] sm:$0x1]
      %v991 = vlaneseq
      %v992 = vshrl.u32 %v991, 7
      %v993 = vsub.s32 0, %v992
      %v994 = vrot.slane %v989, %v993
      %v1000 = vunpack.c.l.b16 %v983
      %v1001 = vunpack.c.l.b16 %v984
      %v1002 = vunpack.c.l.b16 %v985
      %v1003 = vunpack.c.l.b16 %v986
      %v1004 = vpack.c.b16 %v1001, %v1000
      %v1005 = vpack.c.b16 %v1003, %v1002
      %v1009 = vsel %vm909, %v987, 0
      %v1012 = vsel %vm909, %v988, 0
      %1014 = vmatprep.subr.bf16.mxu0 0
      %1015 = vmatpush1.bf16.msra.mxu0 0
      %1016 = vmatprep.subr.bf16.mxu0 0
      %1017 = vmatpush1.bf16.msra.mxu0 0
      %1018 = vmatprep.subr.bf16.mxu0 0
      %1019 = vmatpush1.bf16.msra.mxu0 0
      %1020 = vmatprep.subr.bf16.mxu0 0
      %1021 = vmatpush1.bf16.msra.mxu0 0
      %1022 = vmatprep.subr.bf16.mxu0 0
      %1023 = vmatpush1.bf16.msra.mxu0 0
      %1024 = vmatprep.subr.bf16.mxu0 0
      %1025 = vmatpush1.bf16.msra.mxu0 0
      %1026 = vmatprep.subr.bf16.mxu0 0
      %1027 = vmatpush1.bf16.msra.mxu0 %v1005
      %1028 = vmatprep.subr.bf16.mxu0 0
      %1029 = vmatpush1.bf16.msra.mxu0 %v1004
      %1030 = vmatprep.subr.bf16.mxu0 0
      %1031 = vmatpush2.bf16.msra.mxu0 0
      %1032 = vmatprep.subr.bf16.mxu0 0
      %1033 = vmatpush2.bf16.msra.mxu0 0
      %1034 = vmatprep.subr.bf16.mxu0 0
      %1035 = vmatpush2.bf16.msra.mxu0 0
      %1036 = vmatprep.subr.bf16.mxu0 0
      %1037 = vmatpush2.bf16.msra.mxu0 0
      %1038 = vmatprep.subr.bf16.mxu0 0
      %1039 = vmatpush2.bf16.msra.mxu0 0
      %1040 = vmatprep.subr.bf16.mxu0 0
      %1041 = vmatpush2.bf16.msra.mxu0 0
      %1042 = vmatprep.subr.bf16.mxu0 0
      %1043 = vmatpush2.bf16.msra.mxu0 0
      %1044 = vmatprep.subr.bf16.mxu0 0
      %1045 = vmatpush2.bf16.msra.mxu0 0
      %1046 = vmatprep.mubr.bf16.mxu0 0
      %1047 = vmatmul.mubr.bf16.gmra.mxu0 %v1009
      %v1048 = vpop.f32.mrf.mxu0
      %v1049 = vadd.f32 %v994, %v1048
      %v1050 = vpop.f32.mrf.mxu0
      %v1051 = vpop.f32.mrf.mxu0
      %v1052 = vadd.f32 %v994, %v1051
      %v1053 = vpop.f32.mrf.mxu0
      %1054 = vmatprep.mubr.bf16.mxu0 0
      %1055 = vmatmul.mubr.bf16.gmra.mxu0 %v1012
      %v1056 = vpop.f32.mrf.mxu0
      %v1057 = vadd.f32 %v994, %v1056
      %v1058 = vpop.f32.mrf.mxu0
      %v1059 = vpop.f32.mrf.mxu0
      %v1060 = vadd.f32 %v994, %v1059
      %v1061 = vpop.f32.mrf.mxu0
      %1062 = vdwg.mxu0
      %1067 = vrot.lane.b32.xlu0 %v1049, 120
      %v1068 = vpop.permute.xlu0 %1067
      %1069 = vrot.lane.b32.xlu0 %v1052, 120
      %v1070 = vpop.permute.xlu0 %1069
      %1071 = vrot.lane.b32.xlu0 %v1057, 120
      %v1072 = vpop.permute.xlu0 %1071
      %1073 = vrot.lane.b32.xlu0 %v1060, 120
      %v1074 = vpop.permute.xlu0 %1073
      %1079 = vrot.lane.b32.xlu0 %v1049, 112
      %v1080 = vpop.permute.xlu0 %1079
      %1081 = vrot.lane.b32.xlu0 %v1052, 112
      %v1082 = vpop.permute.xlu0 %1081
      %1083 = vrot.lane.b32.xlu0 %v1057, 112
      %v1084 = vpop.permute.xlu0 %1083
      %1085 = vrot.lane.b32.xlu0 %v1060, 112
      %v1086 = vpop.permute.xlu0 %1085
      %1091 = vrot.lane.b32.xlu0 %v1049, 104
      %v1092 = vpop.permute.xlu0 %1091
      %1093 = vrot.lane.b32.xlu0 %v1052, 104
      %v1094 = vpop.permute.xlu0 %1093
      %1095 = vrot.lane.b32.xlu0 %v1057, 104
      %v1096 = vpop.permute.xlu0 %1095
      %1097 = vrot.lane.b32.xlu0 %v1060, 104
      %v1098 = vpop.permute.xlu0 %1097
      %v1103 = vcombine.low %v1049, %v1080
      %v1104 = vcombine.high %v1049, %v1080
      %v1106 = vunpack.c.l.s4 1983009808
      %v1107 = vunpack.c.0.s8 %v1106
      %v1108 = vlaneseq
      %v1109 = vshrl.u32 %v1108, 7
      %v1110 = vsub.s32 %v1107, %v1109
      %v1111 = vrot.slane %v1103, %v1110
      %v1113 = vunpack.c.l.s4 1983009808
      %v1114 = vunpack.c.0.s8 %v1113
      %v1115 = vlaneseq
      %v1116 = vshrl.u32 %v1115, 7
      %v1117 = vsub.s32 %v1114, %v1116
      %v1118 = vrot.slane %v1104, %v1117
      %v1119 = vcombine.low %v1068, %v1092
      %v1120 = vcombine.high %v1068, %v1092
      %v1122 = vunpack.c.l.s4 1983009808
      %v1123 = vunpack.c.0.s8 %v1122
      %v1124 = vlaneseq
      %v1125 = vshrl.u32 %v1124, 7
      %v1126 = vsub.s32 %v1123, %v1125
      %v1127 = vrot.slane %v1119, %v1126
      %v1129 = vunpack.c.l.s4 1983009808
      %v1130 = vunpack.c.0.s8 %v1129
      %v1131 = vlaneseq
      %v1132 = vshrl.u32 %v1131, 7
      %v1133 = vsub.s32 %v1130, %v1132
      %v1134 = vrot.slane %v1120, %v1133
      %v1135 = vcombine.low %v1111, %v1127
      %v1136 = vcombine.high %v1111, %v1127
      %v1138 = vunpack.c.l.s4 1934713408
      %v1139 = vunpack.c.0.s8 %v1138
      %v1140 = vlaneseq
      %v1141 = vshrl.u32 %v1140, 7
      %v1142 = vsub.s32 %v1139, %v1141
      %v1143 = vrot.slane %v1135, %v1142
      %v1145 = vunpack.c.l.s4 1934713408
      %v1146 = vunpack.c.0.s8 %v1145
      %v1147 = vlaneseq
      %v1148 = vshrl.u32 %v1147, 7
      %v1149 = vsub.s32 %v1146, %v1148
      %v1150 = vrot.slane %v1136, %v1149
      %v1151 = vcombine.low %v1118, %v1134
      %v1152 = vcombine.high %v1118, %v1134
      %v1154 = vunpack.c.l.s4 1934713408
      %v1155 = vunpack.c.0.s8 %v1154
      %v1156 = vlaneseq
      %v1157 = vshrl.u32 %v1156, 7
      %v1158 = vsub.s32 %v1155, %v1157
      %v1159 = vrot.slane %v1151, %v1158
      %v1161 = vunpack.c.l.s4 1934713408
      %v1162 = vunpack.c.0.s8 %v1161
      %v1163 = vlaneseq
      %v1164 = vshrl.u32 %v1163, 7
      %v1165 = vsub.s32 %v1162, %v1164
      %v1166 = vrot.slane %v1152, %v1165
      %v1167 = vcombine.high %v1143, 0.0
      %v1168 = vcombine.high %v1150, 0.0
      %v1169 = vcombine.high %v1159, 0.0
      %v1170 = vcombine.high %v1166, 0.0
      %v1171 = vcombine.low %v1052, %v1082
      %v1172 = vcombine.high %v1052, %v1082
      %v1174 = vunpack.c.l.s4 1983009808
      %v1175 = vunpack.c.0.s8 %v1174
      %v1176 = vlaneseq
      %v1177 = vshrl.u32 %v1176, 7
      %v1178 = vsub.s32 %v1175, %v1177
      %v1179 = vrot.slane %v1171, %v1178
      %v1181 = vunpack.c.l.s4 1983009808
      %v1182 = vunpack.c.0.s8 %v1181
      %v1183 = vlaneseq
      %v1184 = vshrl.u32 %v1183, 7
      %v1185 = vsub.s32 %v1182, %v1184
      %v1186 = vrot.slane %v1172, %v1185
      %v1187 = vcombine.low %v1070, %v1094
      %v1188 = vcombine.high %v1070, %v1094
      %v1190 = vunpack.c.l.s4 1983009808
      %v1191 = vunpack.c.0.s8 %v1190
      %v1192 = vlaneseq
      %v1193 = vshrl.u32 %v1192, 7
      %v1194 = vsub.s32 %v1191, %v1193
      %v1195 = vrot.slane %v1187, %v1194
      %v1197 = vunpack.c.l.s4 1983009808
      %v1198 = vunpack.c.0.s8 %v1197
      %v1199 = vlaneseq
      %v1200 = vshrl.u32 %v1199, 7
      %v1201 = vsub.s32 %v1198, %v1200
      %v1202 = vrot.slane %v1188, %v1201
      %v1203 = vcombine.low %v1179, %v1195
      %v1204 = vcombine.high %v1179, %v1195
      %v1206 = vunpack.c.l.s4 1934713408
      %v1207 = vunpack.c.0.s8 %v1206
      %v1208 = vlaneseq
      %v1209 = vshrl.u32 %v1208, 7
      %v1210 = vsub.s32 %v1207, %v1209
      %v1211 = vrot.slane %v1203, %v1210
      %v1213 = vunpack.c.l.s4 1934713408
      %v1214 = vunpack.c.0.s8 %v1213
      %v1215 = vlaneseq
      %v1216 = vshrl.u32 %v1215, 7
      %v1217 = vsub.s32 %v1214, %v1216
      %v1218 = vrot.slane %v1204, %v1217
      %v1219 = vcombine.low %v1186, %v1202
      %v1220 = vcombine.high %v1186, %v1202
      %v1222 = vunpack.c.l.s4 1934713408
      %v1223 = vunpack.c.0.s8 %v1222
      %v1224 = vlaneseq
      %v1225 = vshrl.u32 %v1224, 7
      %v1226 = vsub.s32 %v1223, %v1225
      %v1227 = vrot.slane %v1219, %v1226
      %v1229 = vunpack.c.l.s4 1934713408
      %v1230 = vunpack.c.0.s8 %v1229
      %v1231 = vlaneseq
      %v1232 = vshrl.u32 %v1231, 7
      %v1233 = vsub.s32 %v1230, %v1232
      %v1234 = vrot.slane %v1220, %v1233
      %v1235 = vcombine.high %v1211, 0.0
      %v1236 = vcombine.high %v1218, 0.0
      %v1237 = vcombine.high %v1227, 0.0
      %v1238 = vcombine.high %v1234, 0.0
      %v1239 = vcombine.low %v1057, %v1084
      %v1240 = vcombine.high %v1057, %v1084
      %v1242 = vunpack.c.l.s4 1983009808
      %v1243 = vunpack.c.0.s8 %v1242
      %v1244 = vlaneseq
      %v1245 = vshrl.u32 %v1244, 7
      %v1246 = vsub.s32 %v1243, %v1245
      %v1247 = vrot.slane %v1239, %v1246
      %v1249 = vunpack.c.l.s4 1983009808
      %v1250 = vunpack.c.0.s8 %v1249
      %v1251 = vlaneseq
      %v1252 = vshrl.u32 %v1251, 7
      %v1253 = vsub.s32 %v1250, %v1252
      %v1254 = vrot.slane %v1240, %v1253
      %v1255 = vcombine.low %v1072, %v1096
      %v1256 = vcombine.high %v1072, %v1096
      %v1258 = vunpack.c.l.s4 1983009808
      %v1259 = vunpack.c.0.s8 %v1258
      %v1260 = vlaneseq
      %v1261 = vshrl.u32 %v1260, 7
      %v1262 = vsub.s32 %v1259, %v1261
      %v1263 = vrot.slane %v1255, %v1262
      %v1265 = vunpack.c.l.s4 1983009808
      %v1266 = vunpack.c.0.s8 %v1265
      %v1267 = vlaneseq
      %v1268 = vshrl.u32 %v1267, 7
      %v1269 = vsub.s32 %v1266, %v1268
      %v1270 = vrot.slane %v1256, %v1269
      %v1271 = vcombine.low %v1247, %v1263
      %v1272 = vcombine.high %v1247, %v1263
      %v1274 = vunpack.c.l.s4 1934713408
      %v1275 = vunpack.c.0.s8 %v1274
      %v1276 = vlaneseq
      %v1277 = vshrl.u32 %v1276, 7
      %v1278 = vsub.s32 %v1275, %v1277
      %v1279 = vrot.slane %v1271, %v1278
      %v1281 = vunpack.c.l.s4 1934713408
      %v1282 = vunpack.c.0.s8 %v1281
      %v1283 = vlaneseq
      %v1284 = vshrl.u32 %v1283, 7
      %v1285 = vsub.s32 %v1282, %v1284
      %v1286 = vrot.slane %v1272, %v1285
      %v1287 = vcombine.low %v1254, %v1270
      %v1288 = vcombine.high %v1254, %v1270
      %v1290 = vunpack.c.l.s4 1934713408
      %v1291 = vunpack.c.0.s8 %v1290
      %v1292 = vlaneseq
      %v1293 = vshrl.u32 %v1292, 7
      %v1294 = vsub.s32 %v1291, %v1293
      %v1295 = vrot.slane %v1287, %v1294
      %v1297 = vunpack.c.l.s4 1934713408
      %v1298 = vunpack.c.0.s8 %v1297
      %v1299 = vlaneseq
      %v1300 = vshrl.u32 %v1299, 7
      %v1301 = vsub.s32 %v1298, %v1300
      %v1302 = vrot.slane %v1288, %v1301
      %v1303 = vcombine.high %v1279, 0.0
      %v1304 = vcombine.high %v1286, 0.0
      %v1305 = vcombine.high %v1295, 0.0
      %v1306 = vcombine.high %v1302, 0.0
      %v1307 = vcombine.low %v1060, %v1086
      %v1308 = vcombine.high %v1060, %v1086
      %v1310 = vunpack.c.l.s4 1983009808
      %v1311 = vunpack.c.0.s8 %v1310
      %v1312 = vlaneseq
      %v1313 = vshrl.u32 %v1312, 7
      %v1314 = vsub.s32 %v1311, %v1313
      %v1315 = vrot.slane %v1307, %v1314
      %v1317 = vunpack.c.l.s4 1983009808
      %v1318 = vunpack.c.0.s8 %v1317
      %v1319 = vlaneseq
      %v1320 = vshrl.u32 %v1319, 7
      %v1321 = vsub.s32 %v1318, %v1320
      %v1322 = vrot.slane %v1308, %v1321
      %v1323 = vcombine.low %v1074, %v1098
      %v1324 = vcombine.high %v1074, %v1098
      %v1326 = vunpack.c.l.s4 1983009808
      %v1327 = vunpack.c.0.s8 %v1326
      %v1328 = vlaneseq
      %v1329 = vshrl.u32 %v1328, 7
      %v1330 = vsub.s32 %v1327, %v1329
      %v1331 = vrot.slane %v1323, %v1330
      %v1333 = vunpack.c.l.s4 1983009808
      %v1334 = vunpack.c.0.s8 %v1333
      %v1335 = vlaneseq
      %v1336 = vshrl.u32 %v1335, 7
      %v1337 = vsub.s32 %v1334, %v1336
      %v1338 = vrot.slane %v1324, %v1337
      %v1339 = vcombine.low %v1315, %v1331
      %v1340 = vcombine.high %v1315, %v1331
      %v1342 = vunpack.c.l.s4 1934713408
      %v1343 = vunpack.c.0.s8 %v1342
      %v1344 = vlaneseq
      %v1345 = vshrl.u32 %v1344, 7
      %v1346 = vsub.s32 %v1343, %v1345
      %v1347 = vrot.slane %v1339, %v1346
      %v1349 = vunpack.c.l.s4 1934713408
      %v1350 = vunpack.c.0.s8 %v1349
      %v1351 = vlaneseq
      %v1352 = vshrl.u32 %v1351, 7
      %v1353 = vsub.s32 %v1350, %v1352
      %v1354 = vrot.slane %v1340, %v1353
      %v1355 = vcombine.low %v1322, %v1338
      %v1356 = vcombine.high %v1322, %v1338
      %v1358 = vunpack.c.l.s4 1934713408
      %v1359 = vunpack.c.0.s8 %v1358
      %v1360 = vlaneseq
      %v1361 = vshrl.u32 %v1360, 7
      %v1362 = vsub.s32 %v1359, %v1361
      %v1363 = vrot.slane %v1355, %v1362
      %v1365 = vunpack.c.l.s4 1934713408
      %v1366 = vunpack.c.0.s8 %v1365
      %v1367 = vlaneseq
      %v1368 = vshrl.u32 %v1367, 7
      %v1369 = vsub.s32 %v1366, %v1368
      %v1370 = vrot.slane %v1356, %v1369
      %v1371 = vcombine.high %v1347, 0.0
      %v1372 = vcombine.high %v1354, 0.0
      %v1373 = vcombine.high %v1363, 0.0
      %v1374 = vcombine.high %v1370, 0.0
      %v1375 = vcombine.low %v1143, %v1150
      %v1377 = vunpack.c.l.s4 1983009808
      %v1378 = vunpack.c.0.s8 %v1377
      %v1379 = vlaneseq
      %v1380 = vshrl.u32 %v1379, 7
      %v1381 = vsub.s32 %v1378, %v1380
      %v1382 = vrot.slane %v1375, %v1381
      %v1383 = vcombine.low %v1167, %v1168
      %v1385 = vunpack.c.l.s4 1983009808
      %v1386 = vunpack.c.0.s8 %v1385
      %v1387 = vlaneseq
      %v1388 = vshrl.u32 %v1387, 7
      %v1389 = vsub.s32 %v1386, %v1388
      %v1390 = vrot.slane %v1383, %v1389
      %v1391 = vcombine.low %v1159, %v1166
      %v1393 = vunpack.c.l.s4 1983009808
      %v1394 = vunpack.c.0.s8 %v1393
      %v1395 = vlaneseq
      %v1396 = vshrl.u32 %v1395, 7
      %v1397 = vsub.s32 %v1394, %v1396
      %v1398 = vrot.slane %v1391, %v1397
      %v1399 = vcombine.low %v1169, %v1170
      %v1401 = vunpack.c.l.s4 1983009808
      %v1402 = vunpack.c.0.s8 %v1401
      %v1403 = vlaneseq
      %v1404 = vshrl.u32 %v1403, 7
      %v1405 = vsub.s32 %v1402, %v1404
      %v1406 = vrot.slane %v1399, %v1405
      %v1407 = vcombine.low %v1382, %v1390
      %v1408 = vcombine.high %v1382, %v1390
      %v1410 = vunpack.c.l.s4 1934713408
      %v1411 = vunpack.c.0.s8 %v1410
      %v1412 = vlaneseq
      %v1413 = vshrl.u32 %v1412, 7
      %v1414 = vsub.s32 %v1411, %v1413
      %v1415 = vrot.slane %v1407, %v1414
      %v1417 = vunpack.c.l.s4 1934713408
      %v1418 = vunpack.c.0.s8 %v1417
      %v1419 = vlaneseq
      %v1420 = vshrl.u32 %v1419, 7
      %v1421 = vsub.s32 %v1418, %v1420
      %v1422 = vrot.slane %v1408, %v1421
      %v1423 = vcombine.low %v1398, %v1406
      %v1424 = vcombine.high %v1398, %v1406
      %v1426 = vunpack.c.l.s4 1934713408
      %v1427 = vunpack.c.0.s8 %v1426
      %v1428 = vlaneseq
      %v1429 = vshrl.u32 %v1428, 7
      %v1430 = vsub.s32 %v1427, %v1429
      %v1431 = vrot.slane %v1423, %v1430
      %v1433 = vunpack.c.l.s4 1934713408
      %v1434 = vunpack.c.0.s8 %v1433
      %v1435 = vlaneseq
      %v1436 = vshrl.u32 %v1435, 7
      %v1437 = vsub.s32 %v1434, %v1436
      %v1438 = vrot.slane %v1424, %v1437
      %v1439 = vcombine.low %v1415, %v1431
      %v1440 = vcombine.high %v1415, %v1431
      %v1441 = vcombine.low %v1422, %v1438
      %v1442 = vcombine.high %v1422, %v1438
      %v1443 = vcombine.low %v1211, %v1218
      %v1445 = vunpack.c.l.s4 1983009808
      %v1446 = vunpack.c.0.s8 %v1445
      %v1447 = vlaneseq
      %v1448 = vshrl.u32 %v1447, 7
      %v1449 = vsub.s32 %v1446, %v1448
      %v1450 = vrot.slane %v1443, %v1449
      %v1451 = vcombine.low %v1235, %v1236
      %v1453 = vunpack.c.l.s4 1983009808
      %v1454 = vunpack.c.0.s8 %v1453
      %v1455 = vlaneseq
      %v1456 = vshrl.u32 %v1455, 7
      %v1457 = vsub.s32 %v1454, %v1456
      %v1458 = vrot.slane %v1451, %v1457
      %v1459 = vcombine.low %v1227, %v1234
      %v1461 = vunpack.c.l.s4 1983009808
      %v1462 = vunpack.c.0.s8 %v1461
      %v1463 = vlaneseq
      %v1464 = vshrl.u32 %v1463, 7
      %v1465 = vsub.s32 %v1462, %v1464
      %v1466 = vrot.slane %v1459, %v1465
      %v1467 = vcombine.low %v1237, %v1238
      %v1469 = vunpack.c.l.s4 1983009808
      %v1470 = vunpack.c.0.s8 %v1469
      %v1471 = vlaneseq
      %v1472 = vshrl.u32 %v1471, 7
      %v1473 = vsub.s32 %v1470, %v1472
      %v1474 = vrot.slane %v1467, %v1473
      %v1475 = vcombine.low %v1450, %v1458
      %v1476 = vcombine.high %v1450, %v1458
      %v1478 = vunpack.c.l.s4 1934713408
      %v1479 = vunpack.c.0.s8 %v1478
      %v1480 = vlaneseq
      %v1481 = vshrl.u32 %v1480, 7
      %v1482 = vsub.s32 %v1479, %v1481
      %v1483 = vrot.slane %v1475, %v1482
      %v1485 = vunpack.c.l.s4 1934713408
      %v1486 = vunpack.c.0.s8 %v1485
      %v1487 = vlaneseq
      %v1488 = vshrl.u32 %v1487, 7
      %v1489 = vsub.s32 %v1486, %v1488
      %v1490 = vrot.slane %v1476, %v1489
      %v1491 = vcombine.low %v1466, %v1474
      %v1492 = vcombine.high %v1466, %v1474
      %v1494 = vunpack.c.l.s4 1934713408
      %v1495 = vunpack.c.0.s8 %v1494
      %v1496 = vlaneseq
      %v1497 = vshrl.u32 %v1496, 7
      %v1498 = vsub.s32 %v1495, %v1497
      %v1499 = vrot.slane %v1491, %v1498
      %v1501 = vunpack.c.l.s4 1934713408
      %v1502 = vunpack.c.0.s8 %v1501
      %v1503 = vlaneseq
      %v1504 = vshrl.u32 %v1503, 7
      %v1505 = vsub.s32 %v1502, %v1504
      %v1506 = vrot.slane %v1492, %v1505
      %v1507 = vcombine.low %v1483, %v1499
      %v1508 = vcombine.high %v1483, %v1499
      %v1509 = vcombine.low %v1490, %v1506
      %v1510 = vcombine.high %v1490, %v1506
      %v1511 = vcombine.low %v1279, %v1286
      %v1513 = vunpack.c.l.s4 1983009808
      %v1514 = vunpack.c.0.s8 %v1513
      %v1515 = vlaneseq
      %v1516 = vshrl.u32 %v1515, 7
      %v1517 = vsub.s32 %v1514, %v1516
      %v1518 = vrot.slane %v1511, %v1517
      %v1519 = vcombine.low %v1303, %v1304
      %v1521 = vunpack.c.l.s4 1983009808
      %v1522 = vunpack.c.0.s8 %v1521
      %v1523 = vlaneseq
      %v1524 = vshrl.u32 %v1523, 7
      %v1525 = vsub.s32 %v1522, %v1524
      %v1526 = vrot.slane %v1519, %v1525
      %v1527 = vcombine.low %v1295, %v1302
      %v1529 = vunpack.c.l.s4 1983009808
      %v1530 = vunpack.c.0.s8 %v1529
      %v1531 = vlaneseq
      %v1532 = vshrl.u32 %v1531, 7
      %v1533 = vsub.s32 %v1530, %v1532
      %v1534 = vrot.slane %v1527, %v1533
      %v1535 = vcombine.low %v1305, %v1306
      %v1537 = vunpack.c.l.s4 1983009808
      %v1538 = vunpack.c.0.s8 %v1537
      %v1539 = vlaneseq
      %v1540 = vshrl.u32 %v1539, 7
      %v1541 = vsub.s32 %v1538, %v1540
      %v1542 = vrot.slane %v1535, %v1541
      %v1543 = vcombine.low %v1518, %v1526
      %v1544 = vcombine.high %v1518, %v1526
      %v1546 = vunpack.c.l.s4 1934713408
      %v1547 = vunpack.c.0.s8 %v1546
      %v1548 = vlaneseq
      %v1549 = vshrl.u32 %v1548, 7
      %v1550 = vsub.s32 %v1547, %v1549
      %v1551 = vrot.slane %v1543, %v1550
      %v1553 = vunpack.c.l.s4 1934713408
      %v1554 = vunpack.c.0.s8 %v1553
      %v1555 = vlaneseq
      %v1556 = vshrl.u32 %v1555, 7
      %v1557 = vsub.s32 %v1554, %v1556
      %v1558 = vrot.slane %v1544, %v1557
      %v1559 = vcombine.low %v1534, %v1542
      %v1560 = vcombine.high %v1534, %v1542
      %v1562 = vunpack.c.l.s4 1934713408
      %v1563 = vunpack.c.0.s8 %v1562
      %v1564 = vlaneseq
      %v1565 = vshrl.u32 %v1564, 7
      %v1566 = vsub.s32 %v1563, %v1565
      %v1567 = vrot.slane %v1559, %v1566
      %v1569 = vunpack.c.l.s4 1934713408
      %v1570 = vunpack.c.0.s8 %v1569
      %v1571 = vlaneseq
      %v1572 = vshrl.u32 %v1571, 7
      %v1573 = vsub.s32 %v1570, %v1572
      %v1574 = vrot.slane %v1560, %v1573
      %v1575 = vcombine.low %v1551, %v1567
      %v1576 = vcombine.high %v1551, %v1567
      %v1577 = vcombine.low %v1558, %v1574
      %v1578 = vcombine.high %v1558, %v1574
      %v1579 = vcombine.low %v1347, %v1354
      %v1581 = vunpack.c.l.s4 1983009808
      %v1582 = vunpack.c.0.s8 %v1581
      %v1583 = vlaneseq
      %v1584 = vshrl.u32 %v1583, 7
      %v1585 = vsub.s32 %v1582, %v1584
      %v1586 = vrot.slane %v1579, %v1585
      %v1587 = vcombine.low %v1371, %v1372
      %v1589 = vunpack.c.l.s4 1983009808
      %v1590 = vunpack.c.0.s8 %v1589
      %v1591 = vlaneseq
      %v1592 = vshrl.u32 %v1591, 7
      %v1593 = vsub.s32 %v1590, %v1592
      %v1594 = vrot.slane %v1587, %v1593
      %v1595 = vcombine.low %v1363, %v1370
      %v1597 = vunpack.c.l.s4 1983009808
      %v1598 = vunpack.c.0.s8 %v1597
      %v1599 = vlaneseq
      %v1600 = vshrl.u32 %v1599, 7
      %v1601 = vsub.s32 %v1598, %v1600
      %v1602 = vrot.slane %v1595, %v1601
      %v1603 = vcombine.low %v1373, %v1374
      %v1605 = vunpack.c.l.s4 1983009808
      %v1606 = vunpack.c.0.s8 %v1605
      %v1607 = vlaneseq
      %v1608 = vshrl.u32 %v1607, 7
      %v1609 = vsub.s32 %v1606, %v1608
      %v1610 = vrot.slane %v1603, %v1609
      %v1611 = vcombine.low %v1586, %v1594
      %v1612 = vcombine.high %v1586, %v1594
      %v1614 = vunpack.c.l.s4 1934713408
      %v1615 = vunpack.c.0.s8 %v1614
      %v1616 = vlaneseq
      %v1617 = vshrl.u32 %v1616, 7
      %v1618 = vsub.s32 %v1615, %v1617
      %v1619 = vrot.slane %v1611, %v1618
      %v1621 = vunpack.c.l.s4 1934713408
      %v1622 = vunpack.c.0.s8 %v1621
      %v1623 = vlaneseq
      %v1624 = vshrl.u32 %v1623, 7
      %v1625 = vsub.s32 %v1622, %v1624
      %v1626 = vrot.slane %v1612, %v1625
      %v1627 = vcombine.low %v1602, %v1610
      %v1628 = vcombine.high %v1602, %v1610
      %v1630 = vunpack.c.l.s4 1934713408
      %v1631 = vunpack.c.0.s8 %v1630
      %v1632 = vlaneseq
      %v1633 = vshrl.u32 %v1632, 7
      %v1634 = vsub.s32 %v1631, %v1633
      %v1635 = vrot.slane %v1627, %v1634
      %v1637 = vunpack.c.l.s4 1934713408
      %v1638 = vunpack.c.0.s8 %v1637
      %v1639 = vlaneseq
      %v1640 = vshrl.u32 %v1639, 7
      %v1641 = vsub.s32 %v1638, %v1640
      %v1642 = vrot.slane %v1628, %v1641
      %v1643 = vcombine.low %v1619, %v1635
      %v1644 = vcombine.high %v1619, %v1635
      %v1645 = vcombine.low %v1626, %v1642
      %v1646 = vcombine.high %v1626, %v1642
      %v1647 = vpack.c.bf16 %v1507, %v1439
      %v1648 = vpack.c.bf16 %v1643, %v1575
      %v1649 = vpack.c.bf16 %v1508, %v1440
      %v1650 = vpack.c.bf16 %v1644, %v1576
      %v1651 = vpack.c.bf16 %v1509, %v1441
      %v1652 = vpack.c.bf16 %v1645, %v1577
      %v1653 = vpack.c.bf16 %v1510, %v1442
      %v1654 = vpack.c.bf16 %v1646, %v1578
      %1655 = vrot.lane.b32.xlu0 %v1049, 96
      %v1656 = vpop.permute.xlu0 %1655
      %1657 = vrot.lane.b32.xlu0 %v1052, 96
      %v1658 = vpop.permute.xlu0 %1657
      %1659 = vrot.lane.b32.xlu0 %v1057, 96
      %v1660 = vpop.permute.xlu0 %1659
      %1661 = vrot.lane.b32.xlu0 %v1060, 96
      %v1662 = vpop.permute.xlu0 %1661
      %1663 = vrot.lane.b32.xlu0 %v1068, 96
      %v1664 = vpop.permute.xlu0 %1663
      %1665 = vrot.lane.b32.xlu0 %v1070, 96
      %v1666 = vpop.permute.xlu0 %1665
      %1667 = vrot.lane.b32.xlu0 %v1072, 96
      %v1668 = vpop.permute.xlu0 %1667
      %1669 = vrot.lane.b32.xlu0 %v1074, 96
      %v1670 = vpop.permute.xlu0 %1669
      %1671 = vrot.lane.b32.xlu0 %v1080, 96
      %v1672 = vpop.permute.xlu0 %1671
      %1673 = vrot.lane.b32.xlu0 %v1082, 96
      %v1674 = vpop.permute.xlu0 %1673
      %1675 = vrot.lane.b32.xlu0 %v1084, 96
      %v1676 = vpop.permute.xlu0 %1675
      %1677 = vrot.lane.b32.xlu0 %v1086, 96
      %v1678 = vpop.permute.xlu0 %1677
      %1679 = vrot.lane.b32.xlu0 %v1092, 96
      %v1680 = vpop.permute.xlu0 %1679
      %1681 = vrot.lane.b32.xlu0 %v1094, 96
      %v1682 = vpop.permute.xlu0 %1681
      %1683 = vrot.lane.b32.xlu0 %v1096, 96
      %v1684 = vpop.permute.xlu0 %1683
      %1685 = vrot.lane.b32.xlu0 %v1098, 96
      %v1686 = vpop.permute.xlu0 %1685
      %v1703 = vcombine.low %v1656, %v1672
      %v1704 = vcombine.high %v1656, %v1672
      %v1706 = vunpack.c.l.s4 1983009808
      %v1707 = vunpack.c.0.s8 %v1706
      %v1708 = vlaneseq
      %v1709 = vshrl.u32 %v1708, 7
      %v1710 = vsub.s32 %v1707, %v1709
      %v1711 = vrot.slane %v1703, %v1710
      %v1713 = vunpack.c.l.s4 1983009808
      %v1714 = vunpack.c.0.s8 %v1713
      %v1715 = vlaneseq
      %v1716 = vshrl.u32 %v1715, 7
      %v1717 = vsub.s32 %v1714, %v1716
      %v1718 = vrot.slane %v1704, %v1717
      %v1719 = vcombine.low %v1664, %v1680
      %v1720 = vcombine.high %v1664, %v1680
      %v1722 = vunpack.c.l.s4 1983009808
      %v1723 = vunpack.c.0.s8 %v1722
      %v1724 = vlaneseq
      %v1725 = vshrl.u32 %v1724, 7
      %v1726 = vsub.s32 %v1723, %v1725
      %v1727 = vrot.slane %v1719, %v1726
      %v1729 = vunpack.c.l.s4 1983009808
      %v1730 = vunpack.c.0.s8 %v1729
      %v1731 = vlaneseq
      %v1732 = vshrl.u32 %v1731, 7
      %v1733 = vsub.s32 %v1730, %v1732
      %v1734 = vrot.slane %v1720, %v1733
      %v1735 = vcombine.low %v1711, %v1727
      %v1736 = vcombine.high %v1711, %v1727
      %v1738 = vunpack.c.l.s4 1934713408
      %v1739 = vunpack.c.0.s8 %v1738
      %v1740 = vlaneseq
      %v1741 = vshrl.u32 %v1740, 7
      %v1742 = vsub.s32 %v1739, %v1741
      %v1743 = vrot.slane %v1735, %v1742
      %v1745 = vunpack.c.l.s4 1934713408
      %v1746 = vunpack.c.0.s8 %v1745
      %v1747 = vlaneseq
      %v1748 = vshrl.u32 %v1747, 7
      %v1749 = vsub.s32 %v1746, %v1748
      %v1750 = vrot.slane %v1736, %v1749
      %v1751 = vcombine.low %v1718, %v1734
      %v1752 = vcombine.high %v1718, %v1734
      %v1754 = vunpack.c.l.s4 1934713408
      %v1755 = vunpack.c.0.s8 %v1754
      %v1756 = vlaneseq
      %v1757 = vshrl.u32 %v1756, 7
      %v1758 = vsub.s32 %v1755, %v1757
      %v1759 = vrot.slane %v1751, %v1758
      %v1761 = vunpack.c.l.s4 1934713408
      %v1762 = vunpack.c.0.s8 %v1761
      %v1763 = vlaneseq
      %v1764 = vshrl.u32 %v1763, 7
      %v1765 = vsub.s32 %v1762, %v1764
      %v1766 = vrot.slane %v1752, %v1765
      %v1767 = vcombine.high %v1743, 0.0
      %v1768 = vcombine.high %v1750, 0.0
      %v1769 = vcombine.high %v1759, 0.0
      %v1770 = vcombine.high %v1766, 0.0
      %v1771 = vcombine.low %v1658, %v1674
      %v1772 = vcombine.high %v1658, %v1674
      %v1774 = vunpack.c.l.s4 1983009808
      %v1775 = vunpack.c.0.s8 %v1774
      %v1776 = vlaneseq
      %v1777 = vshrl.u32 %v1776, 7
      %v1778 = vsub.s32 %v1775, %v1777
      %v1779 = vrot.slane %v1771, %v1778
      %v1781 = vunpack.c.l.s4 1983009808
      %v1782 = vunpack.c.0.s8 %v1781
      %v1783 = vlaneseq
      %v1784 = vshrl.u32 %v1783, 7
      %v1785 = vsub.s32 %v1782, %v1784
      %v1786 = vrot.slane %v1772, %v1785
      %v1787 = vcombine.low %v1666, %v1682
      %v1788 = vcombine.high %v1666, %v1682
      %v1790 = vunpack.c.l.s4 1983009808
      %v1791 = vunpack.c.0.s8 %v1790
      %v1792 = vlaneseq
      %v1793 = vshrl.u32 %v1792, 7
      %v1794 = vsub.s32 %v1791, %v1793
      %v1795 = vrot.slane %v1787, %v1794
      %v1797 = vunpack.c.l.s4 1983009808
      %v1798 = vunpack.c.0.s8 %v1797
      %v1799 = vlaneseq
      %v1800 = vshrl.u32 %v1799, 7
      %v1801 = vsub.s32 %v1798, %v1800
      %v1802 = vrot.slane %v1788, %v1801
      %v1803 = vcombine.low %v1779, %v1795
      %v1804 = vcombine.high %v1779, %v1795
      %v1806 = vunpack.c.l.s4 1934713408
      %v1807 = vunpack.c.0.s8 %v1806
      %v1808 = vlaneseq
      %v1809 = vshrl.u32 %v1808, 7
      %v1810 = vsub.s32 %v1807, %v1809
      %v1811 = vrot.slane %v1803, %v1810
      %v1813 = vunpack.c.l.s4 1934713408
      %v1814 = vunpack.c.0.s8 %v1813
      %v1815 = vlaneseq
      %v1816 = vshrl.u32 %v1815, 7
      %v1817 = vsub.s32 %v1814, %v1816
      %v1818 = vrot.slane %v1804, %v1817
      %v1819 = vcombine.low %v1786, %v1802
      %v1820 = vcombine.high %v1786, %v1802
      %v1822 = vunpack.c.l.s4 1934713408
      %v1823 = vunpack.c.0.s8 %v1822
      %v1824 = vlaneseq
      %v1825 = vshrl.u32 %v1824, 7
      %v1826 = vsub.s32 %v1823, %v1825
      %v1827 = vrot.slane %v1819, %v1826
      %v1829 = vunpack.c.l.s4 1934713408
      %v1830 = vunpack.c.0.s8 %v1829
      %v1831 = vlaneseq
      %v1832 = vshrl.u32 %v1831, 7
      %v1833 = vsub.s32 %v1830, %v1832
      %v1834 = vrot.slane %v1820, %v1833
      %v1835 = vcombine.high %v1811, 0.0
      %v1836 = vcombine.high %v1818, 0.0
      %v1837 = vcombine.high %v1827, 0.0
      %v1838 = vcombine.high %v1834, 0.0
      %v1839 = vcombine.low %v1660, %v1676
      %v1840 = vcombine.high %v1660, %v1676
      %v1842 = vunpack.c.l.s4 1983009808
      %v1843 = vunpack.c.0.s8 %v1842
      %v1844 = vlaneseq
      %v1845 = vshrl.u32 %v1844, 7
      %v1846 = vsub.s32 %v1843, %v1845
      %v1847 = vrot.slane %v1839, %v1846
      %v1849 = vunpack.c.l.s4 1983009808
      %v1850 = vunpack.c.0.s8 %v1849
      %v1851 = vlaneseq
      %v1852 = vshrl.u32 %v1851, 7
      %v1853 = vsub.s32 %v1850, %v1852
      %v1854 = vrot.slane %v1840, %v1853
      %v1855 = vcombine.low %v1668, %v1684
      %v1856 = vcombine.high %v1668, %v1684
      %v1858 = vunpack.c.l.s4 1983009808
      %v1859 = vunpack.c.0.s8 %v1858
      %v1860 = vlaneseq
      %v1861 = vshrl.u32 %v1860, 7
      %v1862 = vsub.s32 %v1859, %v1861
      %v1863 = vrot.slane %v1855, %v1862
      %v1865 = vunpack.c.l.s4 1983009808
      %v1866 = vunpack.c.0.s8 %v1865
      %v1867 = vlaneseq
      %v1868 = vshrl.u32 %v1867, 7
      %v1869 = vsub.s32 %v1866, %v1868
      %v1870 = vrot.slane %v1856, %v1869
      %v1871 = vcombine.low %v1847, %v1863
      %v1872 = vcombine.high %v1847, %v1863
      %v1874 = vunpack.c.l.s4 1934713408
      %v1875 = vunpack.c.0.s8 %v1874
      %v1876 = vlaneseq
      %v1877 = vshrl.u32 %v1876, 7
      %v1878 = vsub.s32 %v1875, %v1877
      %v1879 = vrot.slane %v1871, %v1878
      %v1881 = vunpack.c.l.s4 1934713408
      %v1882 = vunpack.c.0.s8 %v1881
      %v1883 = vlaneseq
      %v1884 = vshrl.u32 %v1883, 7
      %v1885 = vsub.s32 %v1882, %v1884
      %v1886 = vrot.slane %v1872, %v1885
      %v1887 = vcombine.low %v1854, %v1870
      %v1888 = vcombine.high %v1854, %v1870
      %v1890 = vunpack.c.l.s4 1934713408
      %v1891 = vunpack.c.0.s8 %v1890
      %v1892 = vlaneseq
      %v1893 = vshrl.u32 %v1892, 7
      %v1894 = vsub.s32 %v1891, %v1893
      %v1895 = vrot.slane %v1887, %v1894
      %v1897 = vunpack.c.l.s4 1934713408
      %v1898 = vunpack.c.0.s8 %v1897
      %v1899 = vlaneseq
      %v1900 = vshrl.u32 %v1899, 7
      %v1901 = vsub.s32 %v1898, %v1900
      %v1902 = vrot.slane %v1888, %v1901
      %v1903 = vcombine.high %v1879, 0.0
      %v1904 = vcombine.high %v1886, 0.0
      %v1905 = vcombine.high %v1895, 0.0
      %v1906 = vcombine.high %v1902, 0.0
      %v1907 = vcombine.low %v1662, %v1678
      %v1908 = vcombine.high %v1662, %v1678
      %v1910 = vunpack.c.l.s4 1983009808
      %v1911 = vunpack.c.0.s8 %v1910
      %v1912 = vlaneseq
      %v1913 = vshrl.u32 %v1912, 7
      %v1914 = vsub.s32 %v1911, %v1913
      %v1915 = vrot.slane %v1907, %v1914
      %v1917 = vunpack.c.l.s4 1983009808
      %v1918 = vunpack.c.0.s8 %v1917
      %v1919 = vlaneseq
      %v1920 = vshrl.u32 %v1919, 7
      %v1921 = vsub.s32 %v1918, %v1920
      %v1922 = vrot.slane %v1908, %v1921
      %v1923 = vcombine.low %v1670, %v1686
      %v1924 = vcombine.high %v1670, %v1686
      %v1926 = vunpack.c.l.s4 1983009808
      %v1927 = vunpack.c.0.s8 %v1926
      %v1928 = vlaneseq
      %v1929 = vshrl.u32 %v1928, 7
      %v1930 = vsub.s32 %v1927, %v1929
      %v1931 = vrot.slane %v1923, %v1930
      %v1933 = vunpack.c.l.s4 1983009808
      %v1934 = vunpack.c.0.s8 %v1933
      %v1935 = vlaneseq
      %v1936 = vshrl.u32 %v1935, 7
      %v1937 = vsub.s32 %v1934, %v1936
      %v1938 = vrot.slane %v1924, %v1937
      %v1939 = vcombine.low %v1915, %v1931
      %v1940 = vcombine.high %v1915, %v1931
      %v1942 = vunpack.c.l.s4 1934713408
      %v1943 = vunpack.c.0.s8 %v1942
      %v1944 = vlaneseq
      %v1945 = vshrl.u32 %v1944, 7
      %v1946 = vsub.s32 %v1943, %v1945
      %v1947 = vrot.slane %v1939, %v1946
      %v1949 = vunpack.c.l.s4 1934713408
      %v1950 = vunpack.c.0.s8 %v1949
      %v1951 = vlaneseq
      %v1952 = vshrl.u32 %v1951, 7
      %v1953 = vsub.s32 %v1950, %v1952
      %v1954 = vrot.slane %v1940, %v1953
      %v1955 = vcombine.low %v1922, %v1938
      %v1956 = vcombine.high %v1922, %v1938
      %v1958 = vunpack.c.l.s4 1934713408
      %v1959 = vunpack.c.0.s8 %v1958
      %v1960 = vlaneseq
      %v1961 = vshrl.u32 %v1960, 7
      %v1962 = vsub.s32 %v1959, %v1961
      %v1963 = vrot.slane %v1955, %v1962
      %v1965 = vunpack.c.l.s4 1934713408
      %v1966 = vunpack.c.0.s8 %v1965
      %v1967 = vlaneseq
      %v1968 = vshrl.u32 %v1967, 7
      %v1969 = vsub.s32 %v1966, %v1968
      %v1970 = vrot.slane %v1956, %v1969
      %v1971 = vcombine.high %v1947, 0.0
      %v1972 = vcombine.high %v1954, 0.0
      %v1973 = vcombine.high %v1963, 0.0
      %v1974 = vcombine.high %v1970, 0.0
      %v1975 = vcombine.low %v1743, %v1750
      %v1977 = vunpack.c.l.s4 1983009808
      %v1978 = vunpack.c.0.s8 %v1977
      %v1979 = vlaneseq
      %v1980 = vshrl.u32 %v1979, 7
      %v1981 = vsub.s32 %v1978, %v1980
      %v1982 = vrot.slane %v1975, %v1981
      %v1983 = vcombine.low %v1767, %v1768
      %v1985 = vunpack.c.l.s4 1983009808
      %v1986 = vunpack.c.0.s8 %v1985
      %v1987 = vlaneseq
      %v1988 = vshrl.u32 %v1987, 7
      %v1989 = vsub.s32 %v1986, %v1988
      %v1990 = vrot.slane %v1983, %v1989
      %v1991 = vcombine.low %v1759, %v1766
      %v1993 = vunpack.c.l.s4 1983009808
      %v1994 = vunpack.c.0.s8 %v1993
      %v1995 = vlaneseq
      %v1996 = vshrl.u32 %v1995, 7
      %v1997 = vsub.s32 %v1994, %v1996
      %v1998 = vrot.slane %v1991, %v1997
      %v1999 = vcombine.low %v1769, %v1770
      %v2001 = vunpack.c.l.s4 1983009808
      %v2002 = vunpack.c.0.s8 %v2001
      %v2003 = vlaneseq
      %v2004 = vshrl.u32 %v2003, 7
      %v2005 = vsub.s32 %v2002, %v2004
      %v2006 = vrot.slane %v1999, %v2005
      %v2007 = vcombine.low %v1982, %v1990
      %v2008 = vcombine.high %v1982, %v1990
      %v2010 = vunpack.c.l.s4 1934713408
      %v2011 = vunpack.c.0.s8 %v2010
      %v2012 = vlaneseq
      %v2013 = vshrl.u32 %v2012, 7
      %v2014 = vsub.s32 %v2011, %v2013
      %v2015 = vrot.slane %v2007, %v2014
      %v2017 = vunpack.c.l.s4 1934713408
      %v2018 = vunpack.c.0.s8 %v2017
      %v2019 = vlaneseq
      %v2020 = vshrl.u32 %v2019, 7
      %v2021 = vsub.s32 %v2018, %v2020
      %v2022 = vrot.slane %v2008, %v2021
      %v2023 = vcombine.low %v1998, %v2006
      %v2024 = vcombine.high %v1998, %v2006
      %v2026 = vunpack.c.l.s4 1934713408
      %v2027 = vunpack.c.0.s8 %v2026
      %v2028 = vlaneseq
      %v2029 = vshrl.u32 %v2028, 7
      %v2030 = vsub.s32 %v2027, %v2029
      %v2031 = vrot.slane %v2023, %v2030
      %v2033 = vunpack.c.l.s4 1934713408
      %v2034 = vunpack.c.0.s8 %v2033
      %v2035 = vlaneseq
      %v2036 = vshrl.u32 %v2035, 7
      %v2037 = vsub.s32 %v2034, %v2036
      %v2038 = vrot.slane %v2024, %v2037
      %v2039 = vcombine.low %v2015, %v2031
      %v2040 = vcombine.high %v2015, %v2031
      %v2041 = vcombine.low %v2022, %v2038
      %v2042 = vcombine.high %v2022, %v2038
      %v2043 = vcombine.low %v1811, %v1818
      %v2045 = vunpack.c.l.s4 1983009808
      %v2046 = vunpack.c.0.s8 %v2045
      %v2047 = vlaneseq
      %v2048 = vshrl.u32 %v2047, 7
      %v2049 = vsub.s32 %v2046, %v2048
      %v2050 = vrot.slane %v2043, %v2049
      %v2051 = vcombine.low %v1835, %v1836
      %v2053 = vunpack.c.l.s4 1983009808
      %v2054 = vunpack.c.0.s8 %v2053
      %v2055 = vlaneseq
      %v2056 = vshrl.u32 %v2055, 7
      %v2057 = vsub.s32 %v2054, %v2056
      %v2058 = vrot.slane %v2051, %v2057
      %v2059 = vcombine.low %v1827, %v1834
      %v2061 = vunpack.c.l.s4 1983009808
      %v2062 = vunpack.c.0.s8 %v2061
      %v2063 = vlaneseq
      %v2064 = vshrl.u32 %v2063, 7
      %v2065 = vsub.s32 %v2062, %v2064
      %v2066 = vrot.slane %v2059, %v2065
      %v2067 = vcombine.low %v1837, %v1838
      %v2069 = vunpack.c.l.s4 1983009808
      %v2070 = vunpack.c.0.s8 %v2069
      %v2071 = vlaneseq
      %v2072 = vshrl.u32 %v2071, 7
      %v2073 = vsub.s32 %v2070, %v2072
      %v2074 = vrot.slane %v2067, %v2073
      %v2075 = vcombine.low %v2050, %v2058
      %v2076 = vcombine.high %v2050, %v2058
      %v2078 = vunpack.c.l.s4 1934713408
      %v2079 = vunpack.c.0.s8 %v2078
      %v2080 = vlaneseq
      %v2081 = vshrl.u32 %v2080, 7
      %v2082 = vsub.s32 %v2079, %v2081
      %v2083 = vrot.slane %v2075, %v2082
      %v2085 = vunpack.c.l.s4 1934713408
      %v2086 = vunpack.c.0.s8 %v2085
      %v2087 = vlaneseq
      %v2088 = vshrl.u32 %v2087, 7
      %v2089 = vsub.s32 %v2086, %v2088
      %v2090 = vrot.slane %v2076, %v2089
      %v2091 = vcombine.low %v2066, %v2074
      %v2092 = vcombine.high %v2066, %v2074
      %v2094 = vunpack.c.l.s4 1934713408
      %v2095 = vunpack.c.0.s8 %v2094
      %v2096 = vlaneseq
      %v2097 = vshrl.u32 %v2096, 7
      %v2098 = vsub.s32 %v2095, %v2097
      %v2099 = vrot.slane %v2091, %v2098
      %v2101 = vunpack.c.l.s4 1934713408
      %v2102 = vunpack.c.0.s8 %v2101
      %v2103 = vlaneseq
      %v2104 = vshrl.u32 %v2103, 7
      %v2105 = vsub.s32 %v2102, %v2104
      %v2106 = vrot.slane %v2092, %v2105
      %v2107 = vcombine.low %v2083, %v2099
      %v2108 = vcombine.high %v2083, %v2099
      %v2109 = vcombine.low %v2090, %v2106
      %v2110 = vcombine.high %v2090, %v2106
      %v2111 = vcombine.low %v1879, %v1886
      %v2113 = vunpack.c.l.s4 1983009808
      %v2114 = vunpack.c.0.s8 %v2113
      %v2115 = vlaneseq
      %v2116 = vshrl.u32 %v2115, 7
      %v2117 = vsub.s32 %v2114, %v2116
      %v2118 = vrot.slane %v2111, %v2117
      %v2119 = vcombine.low %v1903, %v1904
      %v2121 = vunpack.c.l.s4 1983009808
      %v2122 = vunpack.c.0.s8 %v2121
      %v2123 = vlaneseq
      %v2124 = vshrl.u32 %v2123, 7
      %v2125 = vsub.s32 %v2122, %v2124
      %v2126 = vrot.slane %v2119, %v2125
      %v2127 = vcombine.low %v1895, %v1902
      %v2129 = vunpack.c.l.s4 1983009808
      %v2130 = vunpack.c.0.s8 %v2129
      %v2131 = vlaneseq
      %v2132 = vshrl.u32 %v2131, 7
      %v2133 = vsub.s32 %v2130, %v2132
      %v2134 = vrot.slane %v2127, %v2133
      %v2135 = vcombine.low %v1905, %v1906
      %v2137 = vunpack.c.l.s4 1983009808
      %v2138 = vunpack.c.0.s8 %v2137
      %v2139 = vlaneseq
      %v2140 = vshrl.u32 %v2139, 7
      %v2141 = vsub.s32 %v2138, %v2140
      %v2142 = vrot.slane %v2135, %v2141
      %v2143 = vcombine.low %v2118, %v2126
      %v2144 = vcombine.high %v2118, %v2126
      %v2146 = vunpack.c.l.s4 1934713408
      %v2147 = vunpack.c.0.s8 %v2146
      %v2148 = vlaneseq
      %v2149 = vshrl.u32 %v2148, 7
      %v2150 = vsub.s32 %v2147, %v2149
      %v2151 = vrot.slane %v2143, %v2150
      %v2153 = vunpack.c.l.s4 1934713408
      %v2154 = vunpack.c.0.s8 %v2153
      %v2155 = vlaneseq
      %v2156 = vshrl.u32 %v2155, 7
      %v2157 = vsub.s32 %v2154, %v2156
      %v2158 = vrot.slane %v2144, %v2157
      %v2159 = vcombine.low %v2134, %v2142
      %v2160 = vcombine.high %v2134, %v2142
      %v2162 = vunpack.c.l.s4 1934713408
      %v2163 = vunpack.c.0.s8 %v2162
      %v2164 = vlaneseq
      %v2165 = vshrl.u32 %v2164, 7
      %v2166 = vsub.s32 %v2163, %v2165
      %v2167 = vrot.slane %v2159, %v2166
      %v2169 = vunpack.c.l.s4 1934713408
      %v2170 = vunpack.c.0.s8 %v2169
      %v2171 = vlaneseq
      %v2172 = vshrl.u32 %v2171, 7
      %v2173 = vsub.s32 %v2170, %v2172
      %v2174 = vrot.slane %v2160, %v2173
      %v2175 = vcombine.low %v2151, %v2167
      %v2176 = vcombine.high %v2151, %v2167
      %v2177 = vcombine.low %v2158, %v2174
      %v2178 = vcombine.high %v2158, %v2174
      %v2179 = vcombine.low %v1947, %v1954
      %v2181 = vunpack.c.l.s4 1983009808
      %v2182 = vunpack.c.0.s8 %v2181
      %v2183 = vlaneseq
      %v2184 = vshrl.u32 %v2183, 7
      %v2185 = vsub.s32 %v2182, %v2184
      %v2186 = vrot.slane %v2179, %v2185
      %v2187 = vcombine.low %v1971, %v1972
      %v2189 = vunpack.c.l.s4 1983009808
      %v2190 = vunpack.c.0.s8 %v2189
      %v2191 = vlaneseq
      %v2192 = vshrl.u32 %v2191, 7
      %v2193 = vsub.s32 %v2190, %v2192
      %v2194 = vrot.slane %v2187, %v2193
      %v2195 = vcombine.low %v1963, %v1970
      %v2197 = vunpack.c.l.s4 1983009808
      %v2198 = vunpack.c.0.s8 %v2197
      %v2199 = vlaneseq
      %v2200 = vshrl.u32 %v2199, 7
      %v2201 = vsub.s32 %v2198, %v2200
      %v2202 = vrot.slane %v2195, %v2201
      %v2203 = vcombine.low %v1973, %v1974
      %v2205 = vunpack.c.l.s4 1983009808
      %v2206 = vunpack.c.0.s8 %v2205
      %v2207 = vlaneseq
      %v2208 = vshrl.u32 %v2207, 7
      %v2209 = vsub.s32 %v2206, %v2208
      %v2210 = vrot.slane %v2203, %v2209
      %v2211 = vcombine.low %v2186, %v2194
      %v2212 = vcombine.high %v2186, %v2194
      %v2214 = vunpack.c.l.s4 1934713408
      %v2215 = vunpack.c.0.s8 %v2214
      %v2216 = vlaneseq
      %v2217 = vshrl.u32 %v2216, 7
      %v2218 = vsub.s32 %v2215, %v2217
      %v2219 = vrot.slane %v2211, %v2218
      %v2221 = vunpack.c.l.s4 1934713408
      %v2222 = vunpack.c.0.s8 %v2221
      %v2223 = vlaneseq
      %v2224 = vshrl.u32 %v2223, 7
      %v2225 = vsub.s32 %v2222, %v2224
      %v2226 = vrot.slane %v2212, %v2225
      %v2227 = vcombine.low %v2202, %v2210
      %v2228 = vcombine.high %v2202, %v2210
      %v2230 = vunpack.c.l.s4 1934713408
      %v2231 = vunpack.c.0.s8 %v2230
      %v2232 = vlaneseq
      %v2233 = vshrl.u32 %v2232, 7
      %v2234 = vsub.s32 %v2231, %v2233
      %v2235 = vrot.slane %v2227, %v2234
      %v2237 = vunpack.c.l.s4 1934713408
      %v2238 = vunpack.c.0.s8 %v2237
      %v2239 = vlaneseq
      %v2240 = vshrl.u32 %v2239, 7
      %v2241 = vsub.s32 %v2238, %v2240
      %v2242 = vrot.slane %v2228, %v2241
      %v2243 = vcombine.low %v2219, %v2235
      %v2244 = vcombine.high %v2219, %v2235
      %v2245 = vcombine.low %v2226, %v2242
      %v2246 = vcombine.high %v2226, %v2242
      %v2247 = vpack.c.bf16 %v2107, %v2039
      %v2248 = vpack.c.bf16 %v2243, %v2175
      %v2249 = vpack.c.bf16 %v2108, %v2040
      %v2250 = vpack.c.bf16 %v2244, %v2176
      %v2251 = vpack.c.bf16 %v2109, %v2041
      %v2252 = vpack.c.bf16 %v2245, %v2177
      %v2253 = vpack.c.bf16 %v2110, %v2042
      %v2254 = vpack.c.bf16 %v2246, %v2178
      %2255 = vrot.lane.b32.xlu0 %v1049, 64
      %v2256 = vpop.permute.xlu0 %2255
      %2257 = vrot.lane.b32.xlu0 %v1052, 64
      %v2258 = vpop.permute.xlu0 %2257
      %2259 = vrot.lane.b32.xlu0 %v1057, 64
      %v2260 = vpop.permute.xlu0 %2259
      %2261 = vrot.lane.b32.xlu0 %v1060, 64
      %v2262 = vpop.permute.xlu0 %2261
      %2263 = vrot.lane.b32.xlu0 %v1068, 64
      %v2264 = vpop.permute.xlu0 %2263
      %2265 = vrot.lane.b32.xlu0 %v1070, 64
      %v2266 = vpop.permute.xlu0 %2265
      %2267 = vrot.lane.b32.xlu0 %v1072, 64
      %v2268 = vpop.permute.xlu0 %2267
      %2269 = vrot.lane.b32.xlu0 %v1074, 64
      %v2270 = vpop.permute.xlu0 %2269
      %2271 = vrot.lane.b32.xlu0 %v1080, 64
      %v2272 = vpop.permute.xlu0 %2271
      %2273 = vrot.lane.b32.xlu0 %v1082, 64
      %v2274 = vpop.permute.xlu0 %2273
      %2275 = vrot.lane.b32.xlu0 %v1084, 64
      %v2276 = vpop.permute.xlu0 %2275
      %2277 = vrot.lane.b32.xlu0 %v1086, 64
      %v2278 = vpop.permute.xlu0 %2277
      %2279 = vrot.lane.b32.xlu0 %v1092, 64
      %v2280 = vpop.permute.xlu0 %2279
      %2281 = vrot.lane.b32.xlu0 %v1094, 64
      %v2282 = vpop.permute.xlu0 %2281
      %2283 = vrot.lane.b32.xlu0 %v1096, 64
      %v2284 = vpop.permute.xlu0 %2283
      %2285 = vrot.lane.b32.xlu0 %v1098, 64
      %v2286 = vpop.permute.xlu0 %2285
      %v2303 = vcombine.low %v2256, %v2272
      %v2304 = vcombine.high %v2256, %v2272
      %v2306 = vunpack.c.l.s4 1983009808
      %v2307 = vunpack.c.0.s8 %v2306
      %v2308 = vlaneseq
      %v2309 = vshrl.u32 %v2308, 7
      %v2310 = vsub.s32 %v2307, %v2309
      %v2311 = vrot.slane %v2303, %v2310
      %v2313 = vunpack.c.l.s4 1983009808
      %v2314 = vunpack.c.0.s8 %v2313
      %v2315 = vlaneseq
      %v2316 = vshrl.u32 %v2315, 7
      %v2317 = vsub.s32 %v2314, %v2316
      %v2318 = vrot.slane %v2304, %v2317
      %v2319 = vcombine.low %v2264, %v2280
      %v2320 = vcombine.high %v2264, %v2280
      %v2322 = vunpack.c.l.s4 1983009808
      %v2323 = vunpack.c.0.s8 %v2322
      %v2324 = vlaneseq
      %v2325 = vshrl.u32 %v2324, 7
      %v2326 = vsub.s32 %v2323, %v2325
      %v2327 = vrot.slane %v2319, %v2326
      %v2329 = vunpack.c.l.s4 1983009808
      %v2330 = vunpack.c.0.s8 %v2329
      %v2331 = vlaneseq
      %v2332 = vshrl.u32 %v2331, 7
      %v2333 = vsub.s32 %v2330, %v2332
      %v2334 = vrot.slane %v2320, %v2333
      %v2335 = vcombine.low %v2311, %v2327
      %v2336 = vcombine.high %v2311, %v2327
      %v2338 = vunpack.c.l.s4 1934713408
      %v2339 = vunpack.c.0.s8 %v2338
      %v2340 = vlaneseq
      %v2341 = vshrl.u32 %v2340, 7
      %v2342 = vsub.s32 %v2339, %v2341
      %v2343 = vrot.slane %v2335, %v2342
      %v2345 = vunpack.c.l.s4 1934713408
      %v2346 = vunpack.c.0.s8 %v2345
      %v2347 = vlaneseq
      %v2348 = vshrl.u32 %v2347, 7
      %v2349 = vsub.s32 %v2346, %v2348
      %v2350 = vrot.slane %v2336, %v2349
      %v2351 = vcombine.low %v2318, %v2334
      %v2352 = vcombine.high %v2318, %v2334
      %v2354 = vunpack.c.l.s4 1934713408
      %v2355 = vunpack.c.0.s8 %v2354
      %v2356 = vlaneseq
      %v2357 = vshrl.u32 %v2356, 7
      %v2358 = vsub.s32 %v2355, %v2357
      %v2359 = vrot.slane %v2351, %v2358
      %v2361 = vunpack.c.l.s4 1934713408
      %v2362 = vunpack.c.0.s8 %v2361
      %v2363 = vlaneseq
      %v2364 = vshrl.u32 %v2363, 7
      %v2365 = vsub.s32 %v2362, %v2364
      %v2366 = vrot.slane %v2352, %v2365
      %v2367 = vcombine.high %v2343, 0.0
      %v2368 = vcombine.high %v2350, 0.0
      %v2369 = vcombine.high %v2359, 0.0
      %v2370 = vcombine.high %v2366, 0.0
      %v2371 = vcombine.low %v2258, %v2274
      %v2372 = vcombine.high %v2258, %v2274
      %v2374 = vunpack.c.l.s4 1983009808
      %v2375 = vunpack.c.0.s8 %v2374
      %v2376 = vlaneseq
      %v2377 = vshrl.u32 %v2376, 7
      %v2378 = vsub.s32 %v2375, %v2377
      %v2379 = vrot.slane %v2371, %v2378
      %v2381 = vunpack.c.l.s4 1983009808
      %v2382 = vunpack.c.0.s8 %v2381
      %v2383 = vlaneseq
      %v2384 = vshrl.u32 %v2383, 7
      %v2385 = vsub.s32 %v2382, %v2384
      %v2386 = vrot.slane %v2372, %v2385
      %v2387 = vcombine.low %v2266, %v2282
      %v2388 = vcombine.high %v2266, %v2282
      %v2390 = vunpack.c.l.s4 1983009808
      %v2391 = vunpack.c.0.s8 %v2390
      %v2392 = vlaneseq
      %v2393 = vshrl.u32 %v2392, 7
      %v2394 = vsub.s32 %v2391, %v2393
      %v2395 = vrot.slane %v2387, %v2394
      %v2397 = vunpack.c.l.s4 1983009808
      %v2398 = vunpack.c.0.s8 %v2397
      %v2399 = vlaneseq
      %v2400 = vshrl.u32 %v2399, 7
      %v2401 = vsub.s32 %v2398, %v2400
      %v2402 = vrot.slane %v2388, %v2401
      %v2403 = vcombine.low %v2379, %v2395
      %v2404 = vcombine.high %v2379, %v2395
      %v2406 = vunpack.c.l.s4 1934713408
      %v2407 = vunpack.c.0.s8 %v2406
      %v2408 = vlaneseq
      %v2409 = vshrl.u32 %v2408, 7
      %v2410 = vsub.s32 %v2407, %v2409
      %v2411 = vrot.slane %v2403, %v2410
      %v2413 = vunpack.c.l.s4 1934713408
      %v2414 = vunpack.c.0.s8 %v2413
      %v2415 = vlaneseq
      %v2416 = vshrl.u32 %v2415, 7
      %v2417 = vsub.s32 %v2414, %v2416
      %v2418 = vrot.slane %v2404, %v2417
      %v2419 = vcombine.low %v2386, %v2402
      %v2420 = vcombine.high %v2386, %v2402
      %v2422 = vunpack.c.l.s4 1934713408
      %v2423 = vunpack.c.0.s8 %v2422
      %v2424 = vlaneseq
      %v2425 = vshrl.u32 %v2424, 7
      %v2426 = vsub.s32 %v2423, %v2425
      %v2427 = vrot.slane %v2419, %v2426
      %v2429 = vunpack.c.l.s4 1934713408
      %v2430 = vunpack.c.0.s8 %v2429
      %v2431 = vlaneseq
      %v2432 = vshrl.u32 %v2431, 7
      %v2433 = vsub.s32 %v2430, %v2432
      %v2434 = vrot.slane %v2420, %v2433
      %v2435 = vcombine.high %v2411, 0.0
      %v2436 = vcombine.high %v2418, 0.0
      %v2437 = vcombine.high %v2427, 0.0
      %v2438 = vcombine.high %v2434, 0.0
      %v2439 = vcombine.low %v2260, %v2276
      %v2440 = vcombine.high %v2260, %v2276
      %v2442 = vunpack.c.l.s4 1983009808
      %v2443 = vunpack.c.0.s8 %v2442
      %v2444 = vlaneseq
      %v2445 = vshrl.u32 %v2444, 7
      %v2446 = vsub.s32 %v2443, %v2445
      %v2447 = vrot.slane %v2439, %v2446
      %v2449 = vunpack.c.l.s4 1983009808
      %v2450 = vunpack.c.0.s8 %v2449
      %v2451 = vlaneseq
      %v2452 = vshrl.u32 %v2451, 7
      %v2453 = vsub.s32 %v2450, %v2452
      %v2454 = vrot.slane %v2440, %v2453
      %v2455 = vcombine.low %v2268, %v2284
      %v2456 = vcombine.high %v2268, %v2284
      %v2458 = vunpack.c.l.s4 1983009808
      %v2459 = vunpack.c.0.s8 %v2458
      %v2460 = vlaneseq
      %v2461 = vshrl.u32 %v2460, 7
      %v2462 = vsub.s32 %v2459, %v2461
      %v2463 = vrot.slane %v2455, %v2462
      %v2465 = vunpack.c.l.s4 1983009808
      %v2466 = vunpack.c.0.s8 %v2465
      %v2467 = vlaneseq
      %v2468 = vshrl.u32 %v2467, 7
      %v2469 = vsub.s32 %v2466, %v2468
      %v2470 = vrot.slane %v2456, %v2469
      %v2471 = vcombine.low %v2447, %v2463
      %v2472 = vcombine.high %v2447, %v2463
      %v2474 = vunpack.c.l.s4 1934713408
      %v2475 = vunpack.c.0.s8 %v2474
      %v2476 = vlaneseq
      %v2477 = vshrl.u32 %v2476, 7
      %v2478 = vsub.s32 %v2475, %v2477
      %v2479 = vrot.slane %v2471, %v2478
      %v2481 = vunpack.c.l.s4 1934713408
      %v2482 = vunpack.c.0.s8 %v2481
      %v2483 = vlaneseq
      %v2484 = vshrl.u32 %v2483, 7
      %v2485 = vsub.s32 %v2482, %v2484
      %v2486 = vrot.slane %v2472, %v2485
      %v2487 = vcombine.low %v2454, %v2470
      %v2488 = vcombine.high %v2454, %v2470
      %v2490 = vunpack.c.l.s4 1934713408
      %v2491 = vunpack.c.0.s8 %v2490
      %v2492 = vlaneseq
      %v2493 = vshrl.u32 %v2492, 7
      %v2494 = vsub.s32 %v2491, %v2493
      %v2495 = vrot.slane %v2487, %v2494
      %v2497 = vunpack.c.l.s4 1934713408
      %v2498 = vunpack.c.0.s8 %v2497
      %v2499 = vlaneseq
      %v2500 = vshrl.u32 %v2499, 7
      %v2501 = vsub.s32 %v2498, %v2500
      %v2502 = vrot.slane %v2488, %v2501
      %v2503 = vcombine.high %v2479, 0.0
      %v2504 = vcombine.high %v2486, 0.0
      %v2505 = vcombine.high %v2495, 0.0
      %v2506 = vcombine.high %v2502, 0.0
      %v2507 = vcombine.low %v2262, %v2278
      %v2508 = vcombine.high %v2262, %v2278
      %v2510 = vunpack.c.l.s4 1983009808
      %v2511 = vunpack.c.0.s8 %v2510
      %v2512 = vlaneseq
      %v2513 = vshrl.u32 %v2512, 7
      %v2514 = vsub.s32 %v2511, %v2513
      %v2515 = vrot.slane %v2507, %v2514
      %v2517 = vunpack.c.l.s4 1983009808
      %v2518 = vunpack.c.0.s8 %v2517
      %v2519 = vlaneseq
      %v2520 = vshrl.u32 %v2519, 7
      %v2521 = vsub.s32 %v2518, %v2520
      %v2522 = vrot.slane %v2508, %v2521
      %v2523 = vcombine.low %v2270, %v2286
      %v2524 = vcombine.high %v2270, %v2286
      %v2526 = vunpack.c.l.s4 1983009808
      %v2527 = vunpack.c.0.s8 %v2526
      %v2528 = vlaneseq
      %v2529 = vshrl.u32 %v2528, 7
      %v2530 = vsub.s32 %v2527, %v2529
      %v2531 = vrot.slane %v2523, %v2530
      %v2533 = vunpack.c.l.s4 1983009808
      %v2534 = vunpack.c.0.s8 %v2533
      %v2535 = vlaneseq
      %v2536 = vshrl.u32 %v2535, 7
      %v2537 = vsub.s32 %v2534, %v2536
      %v2538 = vrot.slane %v2524, %v2537
      %v2539 = vcombine.low %v2515, %v2531
      %v2540 = vcombine.high %v2515, %v2531
      %v2542 = vunpack.c.l.s4 1934713408
      %v2543 = vunpack.c.0.s8 %v2542
      %v2544 = vlaneseq
      %v2545 = vshrl.u32 %v2544, 7
      %v2546 = vsub.s32 %v2543, %v2545
      %v2547 = vrot.slane %v2539, %v2546
      %v2549 = vunpack.c.l.s4 1934713408
      %v2550 = vunpack.c.0.s8 %v2549
      %v2551 = vlaneseq
      %v2552 = vshrl.u32 %v2551, 7
      %v2553 = vsub.s32 %v2550, %v2552
      %v2554 = vrot.slane %v2540, %v2553
      %v2555 = vcombine.low %v2522, %v2538
      %v2556 = vcombine.high %v2522, %v2538
      %v2558 = vunpack.c.l.s4 1934713408
      %v2559 = vunpack.c.0.s8 %v2558
      %v2560 = vlaneseq
      %v2561 = vshrl.u32 %v2560, 7
      %v2562 = vsub.s32 %v2559, %v2561
      %v2563 = vrot.slane %v2555, %v2562
      %v2565 = vunpack.c.l.s4 1934713408
      %v2566 = vunpack.c.0.s8 %v2565
      %v2567 = vlaneseq
      %v2568 = vshrl.u32 %v2567, 7
      %v2569 = vsub.s32 %v2566, %v2568
      %v2570 = vrot.slane %v2556, %v2569
      %v2571 = vcombine.high %v2547, 0.0
      %v2572 = vcombine.high %v2554, 0.0
      %v2573 = vcombine.high %v2563, 0.0
      %v2574 = vcombine.high %v2570, 0.0
      %v2575 = vcombine.low %v2343, %v2350
      %v2577 = vunpack.c.l.s4 1983009808
      %v2578 = vunpack.c.0.s8 %v2577
      %v2579 = vlaneseq
      %v2580 = vshrl.u32 %v2579, 7
      %v2581 = vsub.s32 %v2578, %v2580
      %v2582 = vrot.slane %v2575, %v2581
      %v2583 = vcombine.low %v2367, %v2368
      %v2585 = vunpack.c.l.s4 1983009808
      %v2586 = vunpack.c.0.s8 %v2585
      %v2587 = vlaneseq
      %v2588 = vshrl.u32 %v2587, 7
      %v2589 = vsub.s32 %v2586, %v2588
      %v2590 = vrot.slane %v2583, %v2589
      %v2591 = vcombine.low %v2359, %v2366
      %v2593 = vunpack.c.l.s4 1983009808
      %v2594 = vunpack.c.0.s8 %v2593
      %v2595 = vlaneseq
      %v2596 = vshrl.u32 %v2595, 7
      %v2597 = vsub.s32 %v2594, %v2596
      %v2598 = vrot.slane %v2591, %v2597
      %v2599 = vcombine.low %v2369, %v2370
      %v2601 = vunpack.c.l.s4 1983009808
      %v2602 = vunpack.c.0.s8 %v2601
      %v2603 = vlaneseq
      %v2604 = vshrl.u32 %v2603, 7
      %v2605 = vsub.s32 %v2602, %v2604
      %v2606 = vrot.slane %v2599, %v2605
      %v2607 = vcombine.low %v2582, %v2590
      %v2608 = vcombine.high %v2582, %v2590
      %v2610 = vunpack.c.l.s4 1934713408
      %v2611 = vunpack.c.0.s8 %v2610
      %v2612 = vlaneseq
      %v2613 = vshrl.u32 %v2612, 7
      %v2614 = vsub.s32 %v2611, %v2613
      %v2615 = vrot.slane %v2607, %v2614
      %v2617 = vunpack.c.l.s4 1934713408
      %v2618 = vunpack.c.0.s8 %v2617
      %v2619 = vlaneseq
      %v2620 = vshrl.u32 %v2619, 7
      %v2621 = vsub.s32 %v2618, %v2620
      %v2622 = vrot.slane %v2608, %v2621
      %v2623 = vcombine.low %v2598, %v2606
      %v2624 = vcombine.high %v2598, %v2606
      %v2626 = vunpack.c.l.s4 1934713408
      %v2627 = vunpack.c.0.s8 %v2626
      %v2628 = vlaneseq
      %v2629 = vshrl.u32 %v2628, 7
      %v2630 = vsub.s32 %v2627, %v2629
      %v2631 = vrot.slane %v2623, %v2630
      %v2633 = vunpack.c.l.s4 1934713408
      %v2634 = vunpack.c.0.s8 %v2633
      %v2635 = vlaneseq
      %v2636 = vshrl.u32 %v2635, 7
      %v2637 = vsub.s32 %v2634, %v2636
      %v2638 = vrot.slane %v2624, %v2637
      %v2639 = vcombine.low %v2615, %v2631
      %v2640 = vcombine.high %v2615, %v2631
      %v2641 = vcombine.low %v2622, %v2638
      %v2642 = vcombine.high %v2622, %v2638
      %v2643 = vcombine.low %v2411, %v2418
      %v2645 = vunpack.c.l.s4 1983009808
      %v2646 = vunpack.c.0.s8 %v2645
      %v2647 = vlaneseq
      %v2648 = vshrl.u32 %v2647, 7
      %v2649 = vsub.s32 %v2646, %v2648
      %v2650 = vrot.slane %v2643, %v2649
      %v2651 = vcombine.low %v2435, %v2436
      %v2653 = vunpack.c.l.s4 1983009808
      %v2654 = vunpack.c.0.s8 %v2653
      %v2655 = vlaneseq
      %v2656 = vshrl.u32 %v2655, 7
      %v2657 = vsub.s32 %v2654, %v2656
      %v2658 = vrot.slane %v2651, %v2657
      %v2659 = vcombine.low %v2427, %v2434
      %v2661 = vunpack.c.l.s4 1983009808
      %v2662 = vunpack.c.0.s8 %v2661
      %v2663 = vlaneseq
      %v2664 = vshrl.u32 %v2663, 7
      %v2665 = vsub.s32 %v2662, %v2664
      %v2666 = vrot.slane %v2659, %v2665
      %v2667 = vcombine.low %v2437, %v2438
      %v2669 = vunpack.c.l.s4 1983009808
      %v2670 = vunpack.c.0.s8 %v2669
      %v2671 = vlaneseq
      %v2672 = vshrl.u32 %v2671, 7
      %v2673 = vsub.s32 %v2670, %v2672
      %v2674 = vrot.slane %v2667, %v2673
      %v2675 = vcombine.low %v2650, %v2658
      %v2676 = vcombine.high %v2650, %v2658
      %v2678 = vunpack.c.l.s4 1934713408
      %v2679 = vunpack.c.0.s8 %v2678
      %v2680 = vlaneseq
      %v2681 = vshrl.u32 %v2680, 7
      %v2682 = vsub.s32 %v2679, %v2681
      %v2683 = vrot.slane %v2675, %v2682
      %v2685 = vunpack.c.l.s4 1934713408
      %v2686 = vunpack.c.0.s8 %v2685
      %v2687 = vlaneseq
      %v2688 = vshrl.u32 %v2687, 7
      %v2689 = vsub.s32 %v2686, %v2688
      %v2690 = vrot.slane %v2676, %v2689
      %v2691 = vcombine.low %v2666, %v2674
      %v2692 = vcombine.high %v2666, %v2674
      %v2694 = vunpack.c.l.s4 1934713408
      %v2695 = vunpack.c.0.s8 %v2694
      %v2696 = vlaneseq
      %v2697 = vshrl.u32 %v2696, 7
      %v2698 = vsub.s32 %v2695, %v2697
      %v2699 = vrot.slane %v2691, %v2698
      %v2701 = vunpack.c.l.s4 1934713408
      %v2702 = vunpack.c.0.s8 %v2701
      %v2703 = vlaneseq
      %v2704 = vshrl.u32 %v2703, 7
      %v2705 = vsub.s32 %v2702, %v2704
      %v2706 = vrot.slane %v2692, %v2705
      %v2707 = vcombine.low %v2683, %v2699
      %v2708 = vcombine.high %v2683, %v2699
      %v2709 = vcombine.low %v2690, %v2706
      %v2710 = vcombine.high %v2690, %v2706
      %v2711 = vcombine.low %v2479, %v2486
      %v2713 = vunpack.c.l.s4 1983009808
      %v2714 = vunpack.c.0.s8 %v2713
      %v2715 = vlaneseq
      %v2716 = vshrl.u32 %v2715, 7
      %v2717 = vsub.s32 %v2714, %v2716
      %v2718 = vrot.slane %v2711, %v2717
      %v2719 = vcombine.low %v2503, %v2504
      %v2721 = vunpack.c.l.s4 1983009808
      %v2722 = vunpack.c.0.s8 %v2721
      %v2723 = vlaneseq
      %v2724 = vshrl.u32 %v2723, 7
      %v2725 = vsub.s32 %v2722, %v2724
      %v2726 = vrot.slane %v2719, %v2725
      %v2727 = vcombine.low %v2495, %v2502
      %v2729 = vunpack.c.l.s4 1983009808
      %v2730 = vunpack.c.0.s8 %v2729
      %v2731 = vlaneseq
      %v2732 = vshrl.u32 %v2731, 7
      %v2733 = vsub.s32 %v2730, %v2732
      %v2734 = vrot.slane %v2727, %v2733
      %v2735 = vcombine.low %v2505, %v2506
      %v2737 = vunpack.c.l.s4 1983009808
      %v2738 = vunpack.c.0.s8 %v2737
      %v2739 = vlaneseq
      %v2740 = vshrl.u32 %v2739, 7
      %v2741 = vsub.s32 %v2738, %v2740
      %v2742 = vrot.slane %v2735, %v2741
      %v2743 = vcombine.low %v2718, %v2726
      %v2744 = vcombine.high %v2718, %v2726
      %v2746 = vunpack.c.l.s4 1934713408
      %v2747 = vunpack.c.0.s8 %v2746
      %v2748 = vlaneseq
      %v2749 = vshrl.u32 %v2748, 7
      %v2750 = vsub.s32 %v2747, %v2749
      %v2751 = vrot.slane %v2743, %v2750
      %v2753 = vunpack.c.l.s4 1934713408
      %v2754 = vunpack.c.0.s8 %v2753
      %v2755 = vlaneseq
      %v2756 = vshrl.u32 %v2755, 7
      %v2757 = vsub.s32 %v2754, %v2756
      %v2758 = vrot.slane %v2744, %v2757
      %v2759 = vcombine.low %v2734, %v2742
      %v2760 = vcombine.high %v2734, %v2742
      %v2762 = vunpack.c.l.s4 1934713408
      %v2763 = vunpack.c.0.s8 %v2762
      %v2764 = vlaneseq
      %v2765 = vshrl.u32 %v2764, 7
      %v2766 = vsub.s32 %v2763, %v2765
      %v2767 = vrot.slane %v2759, %v2766
      %v2769 = vunpack.c.l.s4 1934713408
      %v2770 = vunpack.c.0.s8 %v2769
      %v2771 = vlaneseq
      %v2772 = vshrl.u32 %v2771, 7
      %v2773 = vsub.s32 %v2770, %v2772
      %v2774 = vrot.slane %v2760, %v2773
      %v2775 = vcombine.low %v2751, %v2767
      %v2776 = vcombine.high %v2751, %v2767
      %v2777 = vcombine.low %v2758, %v2774
      %v2778 = vcombine.high %v2758, %v2774
      %v2779 = vcombine.low %v2547, %v2554
      %v2781 = vunpack.c.l.s4 1983009808
      %v2782 = vunpack.c.0.s8 %v2781
      %v2783 = vlaneseq
      %v2784 = vshrl.u32 %v2783, 7
      %v2785 = vsub.s32 %v2782, %v2784
      %v2786 = vrot.slane %v2779, %v2785
      %v2787 = vcombine.low %v2571, %v2572
      %v2789 = vunpack.c.l.s4 1983009808
      %v2790 = vunpack.c.0.s8 %v2789
      %v2791 = vlaneseq
      %v2792 = vshrl.u32 %v2791, 7
      %v2793 = vsub.s32 %v2790, %v2792
      %v2794 = vrot.slane %v2787, %v2793
      %v2795 = vcombine.low %v2563, %v2570
      %v2797 = vunpack.c.l.s4 1983009808
      %v2798 = vunpack.c.0.s8 %v2797
      %v2799 = vlaneseq
      %v2800 = vshrl.u32 %v2799, 7
      %v2801 = vsub.s32 %v2798, %v2800
      %v2802 = vrot.slane %v2795, %v2801
      %v2803 = vcombine.low %v2573, %v2574
      %v2805 = vunpack.c.l.s4 1983009808
      %v2806 = vunpack.c.0.s8 %v2805
      %v2807 = vlaneseq
      %v2808 = vshrl.u32 %v2807, 7
      %v2809 = vsub.s32 %v2806, %v2808
      %v2810 = vrot.slane %v2803, %v2809
      %v2811 = vcombine.low %v2786, %v2794
      %v2812 = vcombine.high %v2786, %v2794
      %v2814 = vunpack.c.l.s4 1934713408
      %v2815 = vunpack.c.0.s8 %v2814
      %v2816 = vlaneseq
      %v2817 = vshrl.u32 %v2816, 7
      %v2818 = vsub.s32 %v2815, %v2817
      %v2819 = vrot.slane %v2811, %v2818
      %v2821 = vunpack.c.l.s4 1934713408
      %v2822 = vunpack.c.0.s8 %v2821
      %v2823 = vlaneseq
      %v2824 = vshrl.u32 %v2823, 7
      %v2825 = vsub.s32 %v2822, %v2824
      %v2826 = vrot.slane %v2812, %v2825
      %v2827 = vcombine.low %v2802, %v2810
      %v2828 = vcombine.high %v2802, %v2810
      %v2830 = vunpack.c.l.s4 1934713408
      %v2831 = vunpack.c.0.s8 %v2830
      %v2832 = vlaneseq
      %v2833 = vshrl.u32 %v2832, 7
      %v2834 = vsub.s32 %v2831, %v2833
      %v2835 = vrot.slane %v2827, %v2834
      %v2837 = vunpack.c.l.s4 1934713408
      %v2838 = vunpack.c.0.s8 %v2837
      %v2839 = vlaneseq
      %v2840 = vshrl.u32 %v2839, 7
      %v2841 = vsub.s32 %v2838, %v2840
      %v2842 = vrot.slane %v2828, %v2841
      %v2843 = vcombine.low %v2819, %v2835
      %v2844 = vcombine.high %v2819, %v2835
      %v2845 = vcombine.low %v2826, %v2842
      %v2846 = vcombine.high %v2826, %v2842
      %v2847 = vpack.c.bf16 %v2707, %v2639
      %v2848 = vpack.c.bf16 %v2843, %v2775
      %v2849 = vpack.c.bf16 %v2708, %v2640
      %v2850 = vpack.c.bf16 %v2844, %v2776
      %v2851 = vpack.c.bf16 %v2709, %v2641
      %v2852 = vpack.c.bf16 %v2845, %v2777
      %v2853 = vpack.c.bf16 %v2710, %v2642
      %v2854 = vpack.c.bf16 %v2846, %v2778
      %vm2855 = vcmask 64512
      %v2857 = vsel %vm2855, %v1647, 0
      %v2860 = vsel %vm2855, %v1648, 0
      %v2863 = vsel %vm2855, %v2247, 0
      %v2866 = vsel %vm2855, %v2248, 0
      %2868 = vmatprep.subr.bf16.mxu0 0
      %2869 = vmatpush1.bf16.xpose.msra.mxu0 0
      %2870 = vmatprep.subr.bf16.mxu0 0
      %2871 = vmatpush1.bf16.xpose.msra.mxu0 0
      %2872 = vmatprep.subr.bf16.mxu0 0
      %2873 = vmatpush1.bf16.xpose.msra.mxu0 0
      %2874 = vmatprep.subr.bf16.mxu0 0
      %2875 = vmatpush1.bf16.xpose.msra.mxu0 0
      %2876 = vmatprep.subr.bf16.mxu0 0
      %2877 = vmatpush1.bf16.xpose.msra.mxu0 0
      %2878 = vmatprep.subr.bf16.mxu0 0
      %2879 = vmatpush1.bf16.xpose.msra.mxu0 0
      %2880 = vmatprep.subr.bf16.mxu0 0
      %2881 = vmatpush1.bf16.xpose.msra.mxu0 %v2866
      %2882 = vmatprep.subr.bf16.mxu0 0
      %2883 = vmatpush1.bf16.xpose.msra.mxu0 %v2863
      %2884 = vmatprep.subr.bf16.mxu0 0
      %2885 = vmatpush2.bf16.xpose.msra.mxu0 0
      %2886 = vmatprep.subr.bf16.mxu0 0
      %2887 = vmatpush2.bf16.xpose.msra.mxu0 0
      %2888 = vmatprep.subr.bf16.mxu0 0
      %2889 = vmatpush2.bf16.xpose.msra.mxu0 0
      %2890 = vmatprep.subr.bf16.mxu0 0
      %2891 = vmatpush2.bf16.xpose.msra.mxu0 0
      %2892 = vmatprep.subr.bf16.mxu0 0
      %2893 = vmatpush2.bf16.xpose.msra.mxu0 0
      %2894 = vmatprep.subr.bf16.mxu0 0
      %2895 = vmatpush2.bf16.xpose.msra.mxu0 0
      %2896 = vmatprep.subr.bf16.mxu0 0
      %2897 = vmatpush2.bf16.xpose.msra.mxu0 0
      %2898 = vmatprep.subr.bf16.mxu0 0
      %2899 = vmatpush2.bf16.xpose.msra.mxu0 0
      %2900 = vmatprep.mubr.bf16.mxu0 0
      %2901 = vmatmul.mubr.bf16.gmra.mxu0 %v2857
      %v2902 = vpop.f32.mrf.mxu0
      %v2903 = vadd.f32 0.0, %v2902
      %v2904 = vpop.f32.mrf.mxu0
      %v2905 = vpop.f32.mrf.mxu0
      %v2906 = vadd.f32 0.0, %v2905
      %v2907 = vpop.f32.mrf.mxu0
      %2908 = vmatprep.mubr.bf16.mxu0 0
      %2909 = vmatmul.mubr.bf16.gmra.mxu0 %v2860
      %v2910 = vpop.f32.mrf.mxu0
      %v2911 = vadd.f32 0.0, %v2910
      %v2912 = vpop.f32.mrf.mxu0
      %v2913 = vpop.f32.mrf.mxu0
      %v2914 = vadd.f32 0.0, %v2913
      %v2915 = vpop.f32.mrf.mxu0
      %2916 = vdwg.mxu0
      %v2918 = vsel %vm2855, %v1649, 0
      %v2921 = vsel %vm2855, %v1650, 0
      %v2924 = vsel %vm2855, %v2249, 0
      %v2927 = vsel %vm2855, %v2250, 0
      %2929 = vmatprep.subr.bf16.mxu0 0
      %2930 = vmatpush1.bf16.xpose.msra.mxu0 0
      %2931 = vmatprep.subr.bf16.mxu0 0
      %2932 = vmatpush1.bf16.xpose.msra.mxu0 0
      %2933 = vmatprep.subr.bf16.mxu0 0
      %2934 = vmatpush1.bf16.xpose.msra.mxu0 0
      %2935 = vmatprep.subr.bf16.mxu0 0
      %2936 = vmatpush1.bf16.xpose.msra.mxu0 0
      %2937 = vmatprep.subr.bf16.mxu0 0
      %2938 = vmatpush1.bf16.xpose.msra.mxu0 0
      %2939 = vmatprep.subr.bf16.mxu0 0
      %2940 = vmatpush1.bf16.xpose.msra.mxu0 0
      %2941 = vmatprep.subr.bf16.mxu0 0
      %2942 = vmatpush1.bf16.xpose.msra.mxu0 %v2927
      %2943 = vmatprep.subr.bf16.mxu0 0
      %2944 = vmatpush1.bf16.xpose.msra.mxu0 %v2924
      %2945 = vmatprep.subr.bf16.mxu0 0
      %2946 = vmatpush2.bf16.xpose.msra.mxu0 0
      %2947 = vmatprep.subr.bf16.mxu0 0
      %2948 = vmatpush2.bf16.xpose.msra.mxu0 0
      %2949 = vmatprep.subr.bf16.mxu0 0
      %2950 = vmatpush2.bf16.xpose.msra.mxu0 0
      %2951 = vmatprep.subr.bf16.mxu0 0
      %2952 = vmatpush2.bf16.xpose.msra.mxu0 0
      %2953 = vmatprep.subr.bf16.mxu0 0
      %2954 = vmatpush2.bf16.xpose.msra.mxu0 0
      %2955 = vmatprep.subr.bf16.mxu0 0
      %2956 = vmatpush2.bf16.xpose.msra.mxu0 0
      %2957 = vmatprep.subr.bf16.mxu0 0
      %2958 = vmatpush2.bf16.xpose.msra.mxu0 0
      %2959 = vmatprep.subr.bf16.mxu0 0
      %2960 = vmatpush2.bf16.xpose.msra.mxu0 0
      %2961 = vmatprep.mubr.bf16.mxu0 0
      %2962 = vmatmul.mubr.bf16.gmra.mxu0 %v2918
      %v2963 = vpop.f32.mrf.mxu0
      %v2964 = vadd.f32 0.0, %v2963
      %v2965 = vpop.f32.mrf.mxu0
      %v2966 = vpop.f32.mrf.mxu0
      %v2967 = vadd.f32 0.0, %v2966
      %v2968 = vpop.f32.mrf.mxu0
      %2969 = vmatprep.mubr.bf16.mxu0 0
      %2970 = vmatmul.mubr.bf16.gmra.mxu0 %v2921
      %v2971 = vpop.f32.mrf.mxu0
      %v2972 = vadd.f32 0.0, %v2971
      %v2973 = vpop.f32.mrf.mxu0
      %v2974 = vpop.f32.mrf.mxu0
      %v2975 = vadd.f32 0.0, %v2974
      %v2976 = vpop.f32.mrf.mxu0
      %2977 = vdwg.mxu0
      %v2979 = vsel %vm2855, %v1651, 0
      %v2982 = vsel %vm2855, %v1652, 0
      %v2985 = vsel %vm2855, %v2251, 0
      %v2988 = vsel %vm2855, %v2252, 0
      %2990 = vmatprep.subr.bf16.mxu0 0
      %2991 = vmatpush1.bf16.xpose.msra.mxu0 0
      %2992 = vmatprep.subr.bf16.mxu0 0
      %2993 = vmatpush1.bf16.xpose.msra.mxu0 0
      %2994 = vmatprep.subr.bf16.mxu0 0
      %2995 = vmatpush1.bf16.xpose.msra.mxu0 0
      %2996 = vmatprep.subr.bf16.mxu0 0
      %2997 = vmatpush1.bf16.xpose.msra.mxu0 0
      %2998 = vmatprep.subr.bf16.mxu0 0
      %2999 = vmatpush1.bf16.xpose.msra.mxu0 0
      %3000 = vmatprep.subr.bf16.mxu0 0
      %3001 = vmatpush1.bf16.xpose.msra.mxu0 0
      %3002 = vmatprep.subr.bf16.mxu0 0
      %3003 = vmatpush1.bf16.xpose.msra.mxu0 %v2988
      %3004 = vmatprep.subr.bf16.mxu0 0
      %3005 = vmatpush1.bf16.xpose.msra.mxu0 %v2985
      %3006 = vmatprep.subr.bf16.mxu0 0
      %3007 = vmatpush2.bf16.xpose.msra.mxu0 0
      %3008 = vmatprep.subr.bf16.mxu0 0
      %3009 = vmatpush2.bf16.xpose.msra.mxu0 0
      %3010 = vmatprep.subr.bf16.mxu0 0
      %3011 = vmatpush2.bf16.xpose.msra.mxu0 0
      %3012 = vmatprep.subr.bf16.mxu0 0
      %3013 = vmatpush2.bf16.xpose.msra.mxu0 0
      %3014 = vmatprep.subr.bf16.mxu0 0
      %3015 = vmatpush2.bf16.xpose.msra.mxu0 0
      %3016 = vmatprep.subr.bf16.mxu0 0
      %3017 = vmatpush2.bf16.xpose.msra.mxu0 0
      %3018 = vmatprep.subr.bf16.mxu0 0
      %3019 = vmatpush2.bf16.xpose.msra.mxu0 0
      %3020 = vmatprep.subr.bf16.mxu0 0
      %3021 = vmatpush2.bf16.xpose.msra.mxu0 0
      %3022 = vmatprep.mubr.bf16.mxu0 0
      %3023 = vmatmul.mubr.bf16.gmra.mxu0 %v2979
      %v3024 = vpop.f32.mrf.mxu0
      %v3025 = vadd.f32 0.0, %v3024
      %v3026 = vpop.f32.mrf.mxu0
      %v3027 = vpop.f32.mrf.mxu0
      %v3028 = vadd.f32 0.0, %v3027
      %v3029 = vpop.f32.mrf.mxu0
      %3030 = vmatprep.mubr.bf16.mxu0 0
      %3031 = vmatmul.mubr.bf16.gmra.mxu0 %v2982
      %v3032 = vpop.f32.mrf.mxu0
      %v3033 = vadd.f32 0.0, %v3032
      %v3034 = vpop.f32.mrf.mxu0
      %v3035 = vpop.f32.mrf.mxu0
      %v3036 = vadd.f32 0.0, %v3035
      %v3037 = vpop.f32.mrf.mxu0
      %3038 = vdwg.mxu0
      %v3040 = vsel %vm2855, %v1653, 0
      %v3043 = vsel %vm2855, %v1654, 0
      %v3046 = vsel %vm2855, %v2253, 0
      %v3049 = vsel %vm2855, %v2254, 0
      %3051 = vmatprep.subr.bf16.mxu0 0
      %3052 = vmatpush1.bf16.xpose.msra.mxu0 0
      %3053 = vmatprep.subr.bf16.mxu0 0
      %3054 = vmatpush1.bf16.xpose.msra.mxu0 0
      %3055 = vmatprep.subr.bf16.mxu0 0
      %3056 = vmatpush1.bf16.xpose.msra.mxu0 0
      %3057 = vmatprep.subr.bf16.mxu0 0
      %3058 = vmatpush1.bf16.xpose.msra.mxu0 0
      %3059 = vmatprep.subr.bf16.mxu0 0
      %3060 = vmatpush1.bf16.xpose.msra.mxu0 0
      %3061 = vmatprep.subr.bf16.mxu0 0
      %3062 = vmatpush1.bf16.xpose.msra.mxu0 0
      %3063 = vmatprep.subr.bf16.mxu0 0
      %3064 = vmatpush1.bf16.xpose.msra.mxu0 %v3049
      %3065 = vmatprep.subr.bf16.mxu0 0
      %3066 = vmatpush1.bf16.xpose.msra.mxu0 %v3046
      %3067 = vmatprep.subr.bf16.mxu0 0
      %3068 = vmatpush2.bf16.xpose.msra.mxu0 0
      %3069 = vmatprep.subr.bf16.mxu0 0
      %3070 = vmatpush2.bf16.xpose.msra.mxu0 0
      %3071 = vmatprep.subr.bf16.mxu0 0
      %3072 = vmatpush2.bf16.xpose.msra.mxu0 0
      %3073 = vmatprep.subr.bf16.mxu0 0
      %3074 = vmatpush2.bf16.xpose.msra.mxu0 0
      %3075 = vmatprep.subr.bf16.mxu0 0
      %3076 = vmatpush2.bf16.xpose.msra.mxu0 0
      %3077 = vmatprep.subr.bf16.mxu0 0
      %3078 = vmatpush2.bf16.xpose.msra.mxu0 0
      %3079 = vmatprep.subr.bf16.mxu0 0
      %3080 = vmatpush2.bf16.xpose.msra.mxu0 0
      %3081 = vmatprep.subr.bf16.mxu0 0
      %3082 = vmatpush2.bf16.xpose.msra.mxu0 0
      %3083 = vmatprep.mubr.bf16.mxu0 0
      %3084 = vmatmul.mubr.bf16.gmra.mxu0 %v3040
      %v3085 = vpop.f32.mrf.mxu0
      %v3086 = vadd.f32 0.0, %v3085
      %v3087 = vpop.f32.mrf.mxu0
      %v3088 = vpop.f32.mrf.mxu0
      %v3089 = vadd.f32 0.0, %v3088
      %v3090 = vpop.f32.mrf.mxu0
      %3091 = vmatprep.mubr.bf16.mxu0 0
      %3092 = vmatmul.mubr.bf16.gmra.mxu0 %v3043
      %v3093 = vpop.f32.mrf.mxu0
      %v3094 = vadd.f32 0.0, %v3093
      %v3095 = vpop.f32.mrf.mxu0
      %v3096 = vpop.f32.mrf.mxu0
      %v3097 = vadd.f32 0.0, %v3096
      %v3098 = vpop.f32.mrf.mxu0
      %3099 = vdwg.mxu0
      %v3100 = vmul.f32 %v2903, 0.35355338
      %v3101 = vmul.f32 %v2906, 0.35355338
      %v3102 = vmul.f32 %v2911, 0.35355338
      %v3103 = vmul.f32 %v2914, 0.35355338
      %v3104 = vmul.f32 %v2964, 0.35355338
      %v3105 = vmul.f32 %v2967, 0.35355338
      %v3106 = vmul.f32 %v2972, 0.35355338
      %v3107 = vmul.f32 %v2975, 0.35355338
      %v3108 = vmul.f32 %v3025, 0.35355338
      %v3109 = vmul.f32 %v3028, 0.35355338
      %v3110 = vmul.f32 %v3033, 0.35355338
      %v3111 = vmul.f32 %v3036, 0.35355338
      %v3112 = vmul.f32 %v3086, 0.35355338
      %v3113 = vmul.f32 %v3089, 0.35355338
      %v3114 = vmul.f32 %v3094, 0.35355338
      %v3115 = vmul.f32 %v3097, 0.35355338
      %v3116 = vld [vmem:[%s2] sm:$0xff]
      %v3117 = vld [vmem:[%s2 + $0x8] sm:$0xff]
      %v3118 = vld [vmem:[%s2 + $0x10] sm:$0xff]
      %v3119 = vld [vmem:[%s2 + $0x18] sm:$0xff]
      %v3120 = vadd.f32 %v3100, %v3116
      %v3121 = vadd.f32 %v3101, %v3117
      %v3122 = vadd.f32 %v3102, %v3118
      %v3123 = vadd.f32 %v3103, %v3119
      %v3124 = vadd.f32 %v3104, %v3116
      %v3125 = vadd.f32 %v3105, %v3117
      %v3126 = vadd.f32 %v3106, %v3118
      %v3127 = vadd.f32 %v3107, %v3119
      %v3128 = vadd.f32 %v3108, %v3116
      %v3129 = vadd.f32 %v3109, %v3117
      %v3130 = vadd.f32 %v3110, %v3118
      %v3131 = vadd.f32 %v3111, %v3119
      %v3132 = vadd.f32 %v3112, %v3116
      %v3133 = vadd.f32 %v3113, %v3117
      %v3134 = vadd.f32 %v3114, %v3118
      %v3135 = vadd.f32 %v3115, %v3119
      %v3136 = vsel %vm909, %v3120, -inf
      %3137 = vmax.xlane.f32.xlu0 %v3136
      %v3138 = vpop.xlane.xlu0 %3137
      %v3139 = vsel %vm909, %v3121, -inf
      %3140 = vmax.xlane.f32.xlu0 %v3139
      %v3141 = vpop.xlane.xlu0 %3140
      %v3142 = vsel %vm909, %v3122, -inf
      %3143 = vmax.xlane.f32.xlu0 %v3142
      %v3144 = vpop.xlane.xlu0 %3143
      %v3145 = vsel %vm909, %v3123, -inf
      %3146 = vmax.xlane.f32.xlu0 %v3145
      %v3147 = vpop.xlane.xlu0 %3146
      %v3148 = vsel %vm909, %v3124, -inf
      %3149 = vmax.xlane.f32.xlu0 %v3148
      %v3150 = vpop.xlane.xlu0 %3149
      %v3151 = vsel %vm909, %v3125, -inf
      %3152 = vmax.xlane.f32.xlu0 %v3151
      %v3153 = vpop.xlane.xlu0 %3152
      %v3154 = vsel %vm909, %v3126, -inf
      %3155 = vmax.xlane.f32.xlu0 %v3154
      %v3156 = vpop.xlane.xlu0 %3155
      %v3157 = vsel %vm909, %v3127, -inf
      %3158 = vmax.xlane.f32.xlu0 %v3157
      %v3159 = vpop.xlane.xlu0 %3158
      %v3160 = vsel %vm909, %v3128, -inf
      %3161 = vmax.xlane.f32.xlu0 %v3160
      %v3162 = vpop.xlane.xlu0 %3161
      %v3163 = vsel %vm909, %v3129, -inf
      %3164 = vmax.xlane.f32.xlu0 %v3163
      %v3165 = vpop.xlane.xlu0 %3164
      %v3166 = vsel %vm909, %v3130, -inf
      %3167 = vmax.xlane.f32.xlu0 %v3166
      %v3168 = vpop.xlane.xlu0 %3167
      %v3169 = vsel %vm909, %v3131, -inf
      %3170 = vmax.xlane.f32.xlu0 %v3169
      %v3171 = vpop.xlane.xlu0 %3170
      %v3172 = vsel %vm909, %v3132, -inf
      %3173 = vmax.xlane.f32.xlu0 %v3172
      %v3174 = vpop.xlane.xlu0 %3173
      %v3175 = vsel %vm909, %v3133, -inf
      %3176 = vmax.xlane.f32.xlu0 %v3175
      %v3177 = vpop.xlane.xlu0 %3176
      %v3178 = vsel %vm909, %v3134, -inf
      %3179 = vmax.xlane.f32.xlu0 %v3178
      %v3180 = vpop.xlane.xlu0 %3179
      %v3181 = vsel %vm909, %v3135, -inf
      %3182 = vmax.xlane.f32.xlu0 %v3181
      %v3183 = vpop.xlane.xlu0 %3182
      %v3184 = vsub.f32 %v3120, %v3138
      %v3185 = vsub.f32 %v3121, %v3141
      %v3186 = vsub.f32 %v3122, %v3144
      %v3187 = vsub.f32 %v3123, %v3147
      %v3188 = vsub.f32 %v3124, %v3150
      %v3189 = vsub.f32 %v3125, %v3153
      %v3190 = vsub.f32 %v3126, %v3156
      %v3191 = vsub.f32 %v3127, %v3159
      %v3192 = vsub.f32 %v3128, %v3162
      %v3193 = vsub.f32 %v3129, %v3165
      %v3194 = vsub.f32 %v3130, %v3168
      %v3195 = vsub.f32 %v3131, %v3171
      %v3196 = vsub.f32 %v3132, %v3174
      %v3197 = vsub.f32 %v3133, %v3177
      %v3198 = vsub.f32 %v3134, %v3180
      %v3199 = vsub.f32 %v3135, %v3183
      %v3200 = vmul.f32 %v3184, 1.442695
      %v3201 = vpow.pop %v3200
      %v3202 = vmul.f32 %v3185, 1.442695
      %v3203 = vpow.pop %v3202
      %v3204 = vmul.f32 %v3186, 1.442695
      %v3205 = vpow.pop %v3204
      %v3206 = vmul.f32 %v3187, 1.442695
      %v3207 = vpow.pop %v3206
      %v3208 = vmul.f32 %v3188, 1.442695
      %v3209 = vpow.pop %v3208
      %v3210 = vmul.f32 %v3189, 1.442695
      %v3211 = vpow.pop %v3210
      %v3212 = vmul.f32 %v3190, 1.442695
      %v3213 = vpow.pop %v3212
      %v3214 = vmul.f32 %v3191, 1.442695
      %v3215 = vpow.pop %v3214
      %v3216 = vmul.f32 %v3192, 1.442695
      %v3217 = vpow.pop %v3216
      %v3218 = vmul.f32 %v3193, 1.442695
      %v3219 = vpow.pop %v3218
      %v3220 = vmul.f32 %v3194, 1.442695
      %v3221 = vpow.pop %v3220
      %v3222 = vmul.f32 %v3195, 1.442695
      %v3223 = vpow.pop %v3222
      %v3224 = vmul.f32 %v3196, 1.442695
      %v3225 = vpow.pop %v3224
      %v3226 = vmul.f32 %v3197, 1.442695
      %v3227 = vpow.pop %v3226
      %v3228 = vmul.f32 %v3198, 1.442695
      %v3229 = vpow.pop %v3228
      %v3230 = vmul.f32 %v3199, 1.442695
      %v3231 = vpow.pop %v3230
      %v3232 = vsel %vm909, %v3201, 0.0
      %3233 = vadd.xlane.f32.xlu0 %v3232
      %v3234 = vpop.xlane.xlu0 %3233
      %v3235 = vsel %vm909, %v3203, 0.0
      %3236 = vadd.xlane.f32.xlu0 %v3235
      %v3237 = vpop.xlane.xlu0 %3236
      %v3238 = vsel %vm909, %v3205, 0.0
      %3239 = vadd.xlane.f32.xlu0 %v3238
      %v3240 = vpop.xlane.xlu0 %3239
      %v3241 = vsel %vm909, %v3207, 0.0
      %3242 = vadd.xlane.f32.xlu0 %v3241
      %v3243 = vpop.xlane.xlu0 %3242
      %v3244 = vsel %vm909, %v3209, 0.0
      %3245 = vadd.xlane.f32.xlu0 %v3244
      %v3246 = vpop.xlane.xlu0 %3245
      %v3247 = vsel %vm909, %v3211, 0.0
      %3248 = vadd.xlane.f32.xlu0 %v3247
      %v3249 = vpop.xlane.xlu0 %3248
      %v3250 = vsel %vm909, %v3213, 0.0
      %3251 = vadd.xlane.f32.xlu0 %v3250
      %v3252 = vpop.xlane.xlu0 %3251
      %v3253 = vsel %vm909, %v3215, 0.0
      %3254 = vadd.xlane.f32.xlu0 %v3253
      %v3255 = vpop.xlane.xlu0 %3254
      %v3256 = vsel %vm909, %v3217, 0.0
      %3257 = vadd.xlane.f32.xlu0 %v3256
      %v3258 = vpop.xlane.xlu0 %3257
      %v3259 = vsel %vm909, %v3219, 0.0
      %3260 = vadd.xlane.f32.xlu0 %v3259
      %v3261 = vpop.xlane.xlu0 %3260
      %v3262 = vsel %vm909, %v3221, 0.0
      %3263 = vadd.xlane.f32.xlu0 %v3262
      %v3264 = vpop.xlane.xlu0 %3263
      %v3265 = vsel %vm909, %v3223, 0.0
      %3266 = vadd.xlane.f32.xlu0 %v3265
      %v3267 = vpop.xlane.xlu0 %3266
      %v3268 = vsel %vm909, %v3225, 0.0
      %3269 = vadd.xlane.f32.xlu0 %v3268
      %v3270 = vpop.xlane.xlu0 %3269
      %v3271 = vsel %vm909, %v3227, 0.0
      %3272 = vadd.xlane.f32.xlu0 %v3271
      %v3273 = vpop.xlane.xlu0 %3272
      %v3274 = vsel %vm909, %v3229, 0.0
      %3275 = vadd.xlane.f32.xlu0 %v3274
      %v3276 = vpop.xlane.xlu0 %3275
      %v3277 = vsel %vm909, %v3231, 0.0
      %3278 = vadd.xlane.f32.xlu0 %v3277
      %v3279 = vpop.xlane.xlu0 %3278
      %v3280 = vrcp.pop %v3234
      %v3281 = vrcp.pop %v3237
      %v3282 = vrcp.pop %v3240
      %v3283 = vrcp.pop %v3243
      %v3284 = vrcp.pop %v3246
      %v3285 = vrcp.pop %v3249
      %v3286 = vrcp.pop %v3252
      %v3287 = vrcp.pop %v3255
      %v3288 = vrcp.pop %v3258
      %v3289 = vrcp.pop %v3261
      %v3290 = vrcp.pop %v3264
      %v3291 = vrcp.pop %v3267
      %v3292 = vrcp.pop %v3270
      %v3293 = vrcp.pop %v3273
      %v3294 = vrcp.pop %v3276
      %v3295 = vrcp.pop %v3279
      %v3296 = vmul.f32 %v3201, %v3280
      %v3297 = vmul.f32 %v3203, %v3281
      %v3298 = vmul.f32 %v3205, %v3282
      %v3299 = vmul.f32 %v3207, %v3283
      %v3300 = vmul.f32 %v3209, %v3284
      %v3301 = vmul.f32 %v3211, %v3285
      %v3302 = vmul.f32 %v3213, %v3286
      %v3303 = vmul.f32 %v3215, %v3287
      %v3304 = vmul.f32 %v3217, %v3288
      %v3305 = vmul.f32 %v3219, %v3289
      %v3306 = vmul.f32 %v3221, %v3290
      %v3307 = vmul.f32 %v3223, %v3291
      %v3308 = vmul.f32 %v3225, %v3292
      %v3309 = vmul.f32 %v3227, %v3293
      %v3310 = vmul.f32 %v3229, %v3294
      %v3311 = vmul.f32 %v3231, %v3295
      %v3312 = vpack.c.bf16 %v3297, %v3296
      %v3313 = vpack.c.bf16 %v3299, %v3298
      %v3314 = vpack.c.bf16 %v3301, %v3300
      %v3315 = vpack.c.bf16 %v3303, %v3302
      %v3316 = vpack.c.bf16 %v3305, %v3304
      %v3317 = vpack.c.bf16 %v3307, %v3306
      %v3318 = vpack.c.bf16 %v3309, %v3308
      %v3319 = vpack.c.bf16 %v3311, %v3310
      %v3321 = vsel %vm909, %v3312, 0
      %v3324 = vsel %vm909, %v3313, 0
      %3326 = vmatprep.subr.bf16.mxu0 0
      %3327 = vmatpush1.bf16.msra.mxu0 0
      %3328 = vmatprep.subr.bf16.mxu0 0
      %3329 = vmatpush1.bf16.msra.mxu0 0
      %3330 = vmatprep.subr.bf16.mxu0 0
      %3331 = vmatpush1.bf16.msra.mxu0 0
      %3332 = vmatprep.subr.bf16.mxu0 0
      %3333 = vmatpush1.bf16.msra.mxu0 0
      %3334 = vmatprep.subr.bf16.mxu0 0
      %3335 = vmatpush1.bf16.msra.mxu0 0
      %3336 = vmatprep.subr.bf16.mxu0 0
      %3337 = vmatpush1.bf16.msra.mxu0 0
      %3338 = vmatprep.subr.bf16.mxu0 0
      %3339 = vmatpush1.bf16.msra.mxu0 %v2848
      %3340 = vmatprep.subr.bf16.mxu0 0
      %3341 = vmatpush1.bf16.msra.mxu0 %v2847
      %3342 = vmatprep.subr.bf16.mxu0 0
      %3343 = vmatpush2.bf16.msra.mxu0 0
      %3344 = vmatprep.subr.bf16.mxu0 0
      %3345 = vmatpush2.bf16.msra.mxu0 0
      %3346 = vmatprep.subr.bf16.mxu0 0
      %3347 = vmatpush2.bf16.msra.mxu0 0
      %3348 = vmatprep.subr.bf16.mxu0 0
      %3349 = vmatpush2.bf16.msra.mxu0 0
      %3350 = vmatprep.subr.bf16.mxu0 0
      %3351 = vmatpush2.bf16.msra.mxu0 0
      %3352 = vmatprep.subr.bf16.mxu0 0
      %3353 = vmatpush2.bf16.msra.mxu0 0
      %3354 = vmatprep.subr.bf16.mxu0 0
      %3355 = vmatpush2.bf16.msra.mxu0 0
      %3356 = vmatprep.subr.bf16.mxu0 0
      %3357 = vmatpush2.bf16.msra.mxu0 0
      %3358 = vmatprep.mubr.bf16.mxu0 0
      %3359 = vmatmul.mubr.bf16.gmra.mxu0 %v3321
      %v3360 = vpop.f32.mrf.mxu0
      %v3361 = vadd.f32 0.0, %v3360
      %v3362 = vpop.f32.mrf.mxu0
      %v3363 = vpop.f32.mrf.mxu0
      %v3364 = vadd.f32 0.0, %v3363
      %v3365 = vpop.f32.mrf.mxu0
      %3366 = vmatprep.mubr.bf16.mxu0 0
      %3367 = vmatmul.mubr.bf16.gmra.mxu0 %v3324
      %v3368 = vpop.f32.mrf.mxu0
      %v3369 = vadd.f32 0.0, %v3368
      %v3370 = vpop.f32.mrf.mxu0
      %v3371 = vpop.f32.mrf.mxu0
      %v3372 = vadd.f32 0.0, %v3371
      %v3373 = vpop.f32.mrf.mxu0
      %3374 = vdwg.mxu0
      %v3376 = vsel %vm909, %v3314, 0
      %v3379 = vsel %vm909, %v3315, 0
      %3381 = vmatprep.subr.bf16.mxu0 0
      %3382 = vmatpush1.bf16.msra.mxu0 0
      %3383 = vmatprep.subr.bf16.mxu0 0
      %3384 = vmatpush1.bf16.msra.mxu0 0
      %3385 = vmatprep.subr.bf16.mxu0 0
      %3386 = vmatpush1.bf16.msra.mxu0 0
      %3387 = vmatprep.subr.bf16.mxu0 0
      %3388 = vmatpush1.bf16.msra.mxu0 0
      %3389 = vmatprep.subr.bf16.mxu0 0
      %3390 = vmatpush1.bf16.msra.mxu0 0
      %3391 = vmatprep.subr.bf16.mxu0 0
      %3392 = vmatpush1.bf16.msra.mxu0 0
      %3393 = vmatprep.subr.bf16.mxu0 0
      %3394 = vmatpush1.bf16.msra.mxu0 %v2850
      %3395 = vmatprep.subr.bf16.mxu0 0
      %3396 = vmatpush1.bf16.msra.mxu0 %v2849
      %3397 = vmatprep.subr.bf16.mxu0 0
      %3398 = vmatpush2.bf16.msra.mxu0 0
      %3399 = vmatprep.subr.bf16.mxu0 0
      %3400 = vmatpush2.bf16.msra.mxu0 0
      %3401 = vmatprep.subr.bf16.mxu0 0
      %3402 = vmatpush2.bf16.msra.mxu0 0
      %3403 = vmatprep.subr.bf16.mxu0 0
      %3404 = vmatpush2.bf16.msra.mxu0 0
      %3405 = vmatprep.subr.bf16.mxu0 0
      %3406 = vmatpush2.bf16.msra.mxu0 0
      %3407 = vmatprep.subr.bf16.mxu0 0
      %3408 = vmatpush2.bf16.msra.mxu0 0
      %3409 = vmatprep.subr.bf16.mxu0 0
      %3410 = vmatpush2.bf16.msra.mxu0 0
      %3411 = vmatprep.subr.bf16.mxu0 0
      %3412 = vmatpush2.bf16.msra.mxu0 0
      %3413 = vmatprep.mubr.bf16.mxu0 0
      %3414 = vmatmul.mubr.bf16.gmra.mxu0 %v3376
      %v3415 = vpop.f32.mrf.mxu0
      %v3416 = vadd.f32 0.0, %v3415
      %v3417 = vpop.f32.mrf.mxu0
      %v3418 = vpop.f32.mrf.mxu0
      %v3419 = vadd.f32 0.0, %v3418
      %v3420 = vpop.f32.mrf.mxu0
      %3421 = vmatprep.mubr.bf16.mxu0 0
      %3422 = vmatmul.mubr.bf16.gmra.mxu0 %v3379
      %v3423 = vpop.f32.mrf.mxu0
      %v3424 = vadd.f32 0.0, %v3423
      %v3425 = vpop.f32.mrf.mxu0
      %v3426 = vpop.f32.mrf.mxu0
      %v3427 = vadd.f32 0.0, %v3426
      %v3428 = vpop.f32.mrf.mxu0
      %3429 = vdwg.mxu0
      %v3431 = vsel %vm909, %v3316, 0
      %v3434 = vsel %vm909, %v3317, 0
      %3436 = vmatprep.subr.bf16.mxu0 0
      %3437 = vmatpush1.bf16.msra.mxu0 0
      %3438 = vmatprep.subr.bf16.mxu0 0
      %3439 = vmatpush1.bf16.msra.mxu0 0
      %3440 = vmatprep.subr.bf16.mxu0 0
      %3441 = vmatpush1.bf16.msra.mxu0 0
      %3442 = vmatprep.subr.bf16.mxu0 0
      %3443 = vmatpush1.bf16.msra.mxu0 0
      %3444 = vmatprep.subr.bf16.mxu0 0
      %3445 = vmatpush1.bf16.msra.mxu0 0
      %3446 = vmatprep.subr.bf16.mxu0 0
      %3447 = vmatpush1.bf16.msra.mxu0 0
      %3448 = vmatprep.subr.bf16.mxu0 0
      %3449 = vmatpush1.bf16.msra.mxu0 %v2852
      %3450 = vmatprep.subr.bf16.mxu0 0
      %3451 = vmatpush1.bf16.msra.mxu0 %v2851
      %3452 = vmatprep.subr.bf16.mxu0 0
      %3453 = vmatpush2.bf16.msra.mxu0 0
      %3454 = vmatprep.subr.bf16.mxu0 0
      %3455 = vmatpush2.bf16.msra.mxu0 0
      %3456 = vmatprep.subr.bf16.mxu0 0
      %3457 = vmatpush2.bf16.msra.mxu0 0
      %3458 = vmatprep.subr.bf16.mxu0 0
      %3459 = vmatpush2.bf16.msra.mxu0 0
      %3460 = vmatprep.subr.bf16.mxu0 0
      %3461 = vmatpush2.bf16.msra.mxu0 0
      %3462 = vmatprep.subr.bf16.mxu0 0
      %3463 = vmatpush2.bf16.msra.mxu0 0
      %3464 = vmatprep.subr.bf16.mxu0 0
      %3465 = vmatpush2.bf16.msra.mxu0 0
      %3466 = vmatprep.subr.bf16.mxu0 0
      %3467 = vmatpush2.bf16.msra.mxu0 0
      %3468 = vmatprep.mubr.bf16.mxu0 0
      %3469 = vmatmul.mubr.bf16.gmra.mxu0 %v3431
      %v3470 = vpop.f32.mrf.mxu0
      %v3471 = vadd.f32 0.0, %v3470
      %v3472 = vpop.f32.mrf.mxu0
      %v3473 = vpop.f32.mrf.mxu0
      %v3474 = vadd.f32 0.0, %v3473
      %v3475 = vpop.f32.mrf.mxu0
      %3476 = vmatprep.mubr.bf16.mxu0 0
      %3477 = vmatmul.mubr.bf16.gmra.mxu0 %v3434
      %v3478 = vpop.f32.mrf.mxu0
      %v3479 = vadd.f32 0.0, %v3478
      %v3480 = vpop.f32.mrf.mxu0
      %v3481 = vpop.f32.mrf.mxu0
      %v3482 = vadd.f32 0.0, %v3481
      %v3483 = vpop.f32.mrf.mxu0
      %3484 = vdwg.mxu0
      %v3486 = vsel %vm909, %v3318, 0
      %v3489 = vsel %vm909, %v3319, 0
      %3491 = vmatprep.subr.bf16.mxu0 0
      %3492 = vmatpush1.bf16.msra.mxu0 0
      %3493 = vmatprep.subr.bf16.mxu0 0
      %3494 = vmatpush1.bf16.msra.mxu0 0
      %3495 = vmatprep.subr.bf16.mxu0 0
      %3496 = vmatpush1.bf16.msra.mxu0 0
      %3497 = vmatprep.subr.bf16.mxu0 0
      %3498 = vmatpush1.bf16.msra.mxu0 0
      %3499 = vmatprep.subr.bf16.mxu0 0
      %3500 = vmatpush1.bf16.msra.mxu0 0
      %3501 = vmatprep.subr.bf16.mxu0 0
      %3502 = vmatpush1.bf16.msra.mxu0 0
      %3503 = vmatprep.subr.bf16.mxu0 0
      %3504 = vmatpush1.bf16.msra.mxu0 %v2854
      %3505 = vmatprep.subr.bf16.mxu0 0
      %3506 = vmatpush1.bf16.msra.mxu0 %v2853
      %3507 = vmatprep.subr.bf16.mxu0 0
      %3508 = vmatpush2.bf16.msra.mxu0 0
      %3509 = vmatprep.subr.bf16.mxu0 0
      %3510 = vmatpush2.bf16.msra.mxu0 0
      %3511 = vmatprep.subr.bf16.mxu0 0
      %3512 = vmatpush2.bf16.msra.mxu0 0
      %3513 = vmatprep.subr.bf16.mxu0 0
      %3514 = vmatpush2.bf16.msra.mxu0 0
      %3515 = vmatprep.subr.bf16.mxu0 0
      %3516 = vmatpush2.bf16.msra.mxu0 0
      %3517 = vmatprep.subr.bf16.mxu0 0
      %3518 = vmatpush2.bf16.msra.mxu0 0
      %3519 = vmatprep.subr.bf16.mxu0 0
      %3520 = vmatpush2.bf16.msra.mxu0 0
      %3521 = vmatprep.subr.bf16.mxu0 0
      %3522 = vmatpush2.bf16.msra.mxu0 0
      %3523 = vmatprep.mubr.bf16.mxu0 0
      %3524 = vmatmul.mubr.bf16.gmra.mxu0 %v3486
      %v3525 = vpop.f32.mrf.mxu0
      %v3526 = vadd.f32 0.0, %v3525
      %v3527 = vpop.f32.mrf.mxu0
      %v3528 = vpop.f32.mrf.mxu0
      %v3529 = vadd.f32 0.0, %v3528
      %v3530 = vpop.f32.mrf.mxu0
      %3531 = vmatprep.mubr.bf16.mxu0 0
      %3532 = vmatmul.mubr.bf16.gmra.mxu0 %v3489
      %v3533 = vpop.f32.mrf.mxu0
      %v3534 = vadd.f32 0.0, %v3533
      %v3535 = vpop.f32.mrf.mxu0
      %v3536 = vpop.f32.mrf.mxu0
      %v3537 = vadd.f32 0.0, %v3536
      %v3538 = vpop.f32.mrf.mxu0
      %3539 = vdwg.mxu0
      %v3540 = vcombine.low %v3361, %v3471
      %v3541 = vcombine.high %v3361, %v3471
      %v3543 = vunpack.c.l.s4 1983009808
      %v3544 = vunpack.c.0.s8 %v3543
      %v3545 = vlaneseq
      %v3546 = vshrl.u32 %v3545, 7
      %v3547 = vsub.s32 %v3544, %v3546
      %v3548 = vrot.slane %v3540, %v3547
      %v3550 = vunpack.c.l.s4 1983009808
      %v3551 = vunpack.c.0.s8 %v3550
      %v3552 = vlaneseq
      %v3553 = vshrl.u32 %v3552, 7
      %v3554 = vsub.s32 %v3551, %v3553
      %v3555 = vrot.slane %v3541, %v3554
      %v3556 = vcombine.low %v3416, %v3526
      %v3557 = vcombine.high %v3416, %v3526
      %v3559 = vunpack.c.l.s4 1983009808
      %v3560 = vunpack.c.0.s8 %v3559
      %v3561 = vlaneseq
      %v3562 = vshrl.u32 %v3561, 7
      %v3563 = vsub.s32 %v3560, %v3562
      %v3564 = vrot.slane %v3556, %v3563
      %v3566 = vunpack.c.l.s4 1983009808
      %v3567 = vunpack.c.0.s8 %v3566
      %v3568 = vlaneseq
      %v3569 = vshrl.u32 %v3568, 7
      %v3570 = vsub.s32 %v3567, %v3569
      %v3571 = vrot.slane %v3557, %v3570
      %v3572 = vcombine.low %v3548, %v3564
      %v3573 = vcombine.high %v3548, %v3564
      %v3575 = vunpack.c.l.s4 1934713408
      %v3576 = vunpack.c.0.s8 %v3575
      %v3577 = vlaneseq
      %v3578 = vshrl.u32 %v3577, 7
      %v3579 = vsub.s32 %v3576, %v3578
      %v3580 = vrot.slane %v3572, %v3579
      %v3582 = vunpack.c.l.s4 1934713408
      %v3583 = vunpack.c.0.s8 %v3582
      %v3584 = vlaneseq
      %v3585 = vshrl.u32 %v3584, 7
      %v3586 = vsub.s32 %v3583, %v3585
      %v3587 = vrot.slane %v3573, %v3586
      %v3588 = vcombine.low %v3555, %v3571
      %v3589 = vcombine.high %v3555, %v3571
      %v3591 = vunpack.c.l.s4 1934713408
      %v3592 = vunpack.c.0.s8 %v3591
      %v3593 = vlaneseq
      %v3594 = vshrl.u32 %v3593, 7
      %v3595 = vsub.s32 %v3592, %v3594
      %v3596 = vrot.slane %v3588, %v3595
      %v3598 = vunpack.c.l.s4 1934713408
      %v3599 = vunpack.c.0.s8 %v3598
      %v3600 = vlaneseq
      %v3601 = vshrl.u32 %v3600, 7
      %v3602 = vsub.s32 %v3599, %v3601
      %v3603 = vrot.slane %v3589, %v3602
      %v3604 = vcombine.high %v3580, 0.0
      %v3605 = vcombine.high %v3587, 0.0
      %v3606 = vcombine.high %v3596, 0.0
      %v3607 = vcombine.high %v3603, 0.0
      %v3608 = vcombine.low %v3364, %v3474
      %v3609 = vcombine.high %v3364, %v3474
      %v3611 = vunpack.c.l.s4 1983009808
      %v3612 = vunpack.c.0.s8 %v3611
      %v3613 = vlaneseq
      %v3614 = vshrl.u32 %v3613, 7
      %v3615 = vsub.s32 %v3612, %v3614
      %v3616 = vrot.slane %v3608, %v3615
      %v3618 = vunpack.c.l.s4 1983009808
      %v3619 = vunpack.c.0.s8 %v3618
      %v3620 = vlaneseq
      %v3621 = vshrl.u32 %v3620, 7
      %v3622 = vsub.s32 %v3619, %v3621
      %v3623 = vrot.slane %v3609, %v3622
      %v3624 = vcombine.low %v3419, %v3529
      %v3625 = vcombine.high %v3419, %v3529
      %v3627 = vunpack.c.l.s4 1983009808
      %v3628 = vunpack.c.0.s8 %v3627
      %v3629 = vlaneseq
      %v3630 = vshrl.u32 %v3629, 7
      %v3631 = vsub.s32 %v3628, %v3630
      %v3632 = vrot.slane %v3624, %v3631
      %v3634 = vunpack.c.l.s4 1983009808
      %v3635 = vunpack.c.0.s8 %v3634
      %v3636 = vlaneseq
      %v3637 = vshrl.u32 %v3636, 7
      %v3638 = vsub.s32 %v3635, %v3637
      %v3639 = vrot.slane %v3625, %v3638
      %v3640 = vcombine.low %v3616, %v3632
      %v3641 = vcombine.high %v3616, %v3632
      %v3643 = vunpack.c.l.s4 1934713408
      %v3644 = vunpack.c.0.s8 %v3643
      %v3645 = vlaneseq
      %v3646 = vshrl.u32 %v3645, 7
      %v3647 = vsub.s32 %v3644, %v3646
      %v3648 = vrot.slane %v3640, %v3647
      %v3650 = vunpack.c.l.s4 1934713408
      %v3651 = vunpack.c.0.s8 %v3650
      %v3652 = vlaneseq
      %v3653 = vshrl.u32 %v3652, 7
      %v3654 = vsub.s32 %v3651, %v3653
      %v3655 = vrot.slane %v3641, %v3654
      %v3656 = vcombine.low %v3623, %v3639
      %v3657 = vcombine.high %v3623, %v3639
      %v3659 = vunpack.c.l.s4 1934713408
      %v3660 = vunpack.c.0.s8 %v3659
      %v3661 = vlaneseq
      %v3662 = vshrl.u32 %v3661, 7
      %v3663 = vsub.s32 %v3660, %v3662
      %v3664 = vrot.slane %v3656, %v3663
      %v3666 = vunpack.c.l.s4 1934713408
      %v3667 = vunpack.c.0.s8 %v3666
      %v3668 = vlaneseq
      %v3669 = vshrl.u32 %v3668, 7
      %v3670 = vsub.s32 %v3667, %v3669
      %v3671 = vrot.slane %v3657, %v3670
      %v3672 = vcombine.high %v3648, 0.0
      %v3673 = vcombine.high %v3655, 0.0
      %v3674 = vcombine.high %v3664, 0.0
      %v3675 = vcombine.high %v3671, 0.0
      %v3676 = vcombine.low %v3369, %v3479
      %v3677 = vcombine.high %v3369, %v3479
      %v3679 = vunpack.c.l.s4 1983009808
      %v3680 = vunpack.c.0.s8 %v3679
      %v3681 = vlaneseq
      %v3682 = vshrl.u32 %v3681, 7
      %v3683 = vsub.s32 %v3680, %v3682
      %v3684 = vrot.slane %v3676, %v3683
      %v3686 = vunpack.c.l.s4 1983009808
      %v3687 = vunpack.c.0.s8 %v3686
      %v3688 = vlaneseq
      %v3689 = vshrl.u32 %v3688, 7
      %v3690 = vsub.s32 %v3687, %v3689
      %v3691 = vrot.slane %v3677, %v3690
      %v3692 = vcombine.low %v3424, %v3534
      %v3693 = vcombine.high %v3424, %v3534
      %v3695 = vunpack.c.l.s4 1983009808
      %v3696 = vunpack.c.0.s8 %v3695
      %v3697 = vlaneseq
      %v3698 = vshrl.u32 %v3697, 7
      %v3699 = vsub.s32 %v3696, %v3698
      %v3700 = vrot.slane %v3692, %v3699
      %v3702 = vunpack.c.l.s4 1983009808
      %v3703 = vunpack.c.0.s8 %v3702
      %v3704 = vlaneseq
      %v3705 = vshrl.u32 %v3704, 7
      %v3706 = vsub.s32 %v3703, %v3705
      %v3707 = vrot.slane %v3693, %v3706
      %v3708 = vcombine.low %v3684, %v3700
      %v3709 = vcombine.high %v3684, %v3700
      %v3711 = vunpack.c.l.s4 1934713408
      %v3712 = vunpack.c.0.s8 %v3711
      %v3713 = vlaneseq
      %v3714 = vshrl.u32 %v3713, 7
      %v3715 = vsub.s32 %v3712, %v3714
      %v3716 = vrot.slane %v3708, %v3715
      %v3718 = vunpack.c.l.s4 1934713408
      %v3719 = vunpack.c.0.s8 %v3718
      %v3720 = vlaneseq
      %v3721 = vshrl.u32 %v3720, 7
      %v3722 = vsub.s32 %v3719, %v3721
      %v3723 = vrot.slane %v3709, %v3722
      %v3724 = vcombine.low %v3691, %v3707
      %v3725 = vcombine.high %v3691, %v3707
      %v3727 = vunpack.c.l.s4 1934713408
      %v3728 = vunpack.c.0.s8 %v3727
      %v3729 = vlaneseq
      %v3730 = vshrl.u32 %v3729, 7
      %v3731 = vsub.s32 %v3728, %v3730
      %v3732 = vrot.slane %v3724, %v3731
      %v3734 = vunpack.c.l.s4 1934713408
      %v3735 = vunpack.c.0.s8 %v3734
      %v3736 = vlaneseq
      %v3737 = vshrl.u32 %v3736, 7
      %v3738 = vsub.s32 %v3735, %v3737
      %v3739 = vrot.slane %v3725, %v3738
      %v3740 = vcombine.high %v3716, 0.0
      %v3741 = vcombine.high %v3723, 0.0
      %v3742 = vcombine.high %v3732, 0.0
      %v3743 = vcombine.high %v3739, 0.0
      %v3744 = vcombine.low %v3372, %v3482
      %v3745 = vcombine.high %v3372, %v3482
      %v3747 = vunpack.c.l.s4 1983009808
      %v3748 = vunpack.c.0.s8 %v3747
      %v3749 = vlaneseq
      %v3750 = vshrl.u32 %v3749, 7
      %v3751 = vsub.s32 %v3748, %v3750
      %v3752 = vrot.slane %v3744, %v3751
      %v3754 = vunpack.c.l.s4 1983009808
      %v3755 = vunpack.c.0.s8 %v3754
      %v3756 = vlaneseq
      %v3757 = vshrl.u32 %v3756, 7
      %v3758 = vsub.s32 %v3755, %v3757
      %v3759 = vrot.slane %v3745, %v3758
      %v3760 = vcombine.low %v3427, %v3537
      %v3761 = vcombine.high %v3427, %v3537
      %v3763 = vunpack.c.l.s4 1983009808
      %v3764 = vunpack.c.0.s8 %v3763
      %v3765 = vlaneseq
      %v3766 = vshrl.u32 %v3765, 7
      %v3767 = vsub.s32 %v3764, %v3766
      %v3768 = vrot.slane %v3760, %v3767
      %v3770 = vunpack.c.l.s4 1983009808
      %v3771 = vunpack.c.0.s8 %v3770
      %v3772 = vlaneseq
      %v3773 = vshrl.u32 %v3772, 7
      %v3774 = vsub.s32 %v3771, %v3773
      %v3775 = vrot.slane %v3761, %v3774
      %v3776 = vcombine.low %v3752, %v3768
      %v3777 = vcombine.high %v3752, %v3768
      %v3779 = vunpack.c.l.s4 1934713408
      %v3780 = vunpack.c.0.s8 %v3779
      %v3781 = vlaneseq
      %v3782 = vshrl.u32 %v3781, 7
      %v3783 = vsub.s32 %v3780, %v3782
      %v3784 = vrot.slane %v3776, %v3783
      %v3786 = vunpack.c.l.s4 1934713408
      %v3787 = vunpack.c.0.s8 %v3786
      %v3788 = vlaneseq
      %v3789 = vshrl.u32 %v3788, 7
      %v3790 = vsub.s32 %v3787, %v3789
      %v3791 = vrot.slane %v3777, %v3790
      %v3792 = vcombine.low %v3759, %v3775
      %v3793 = vcombine.high %v3759, %v3775
      %v3795 = vunpack.c.l.s4 1934713408
      %v3796 = vunpack.c.0.s8 %v3795
      %v3797 = vlaneseq
      %v3798 = vshrl.u32 %v3797, 7
      %v3799 = vsub.s32 %v3796, %v3798
      %v3800 = vrot.slane %v3792, %v3799
      %v3802 = vunpack.c.l.s4 1934713408
      %v3803 = vunpack.c.0.s8 %v3802
      %v3804 = vlaneseq
      %v3805 = vshrl.u32 %v3804, 7
      %v3806 = vsub.s32 %v3803, %v3805
      %v3807 = vrot.slane %v3793, %v3806
      %v3808 = vcombine.high %v3784, 0.0
      %v3809 = vcombine.high %v3791, 0.0
      %v3810 = vcombine.high %v3800, 0.0
      %v3811 = vcombine.high %v3807, 0.0
      %v3812 = vcombine.low %v3580, %v3587
      %v3814 = vunpack.c.l.s4 1983009808
      %v3815 = vunpack.c.0.s8 %v3814
      %v3816 = vlaneseq
      %v3817 = vshrl.u32 %v3816, 7
      %v3818 = vsub.s32 %v3815, %v3817
      %v3819 = vrot.slane %v3812, %v3818
      %v3820 = vcombine.low %v3604, %v3605
      %v3822 = vunpack.c.l.s4 1983009808
      %v3823 = vunpack.c.0.s8 %v3822
      %v3824 = vlaneseq
      %v3825 = vshrl.u32 %v3824, 7
      %v3826 = vsub.s32 %v3823, %v3825
      %v3827 = vrot.slane %v3820, %v3826
      %v3828 = vcombine.low %v3596, %v3603
      %v3830 = vunpack.c.l.s4 1983009808
      %v3831 = vunpack.c.0.s8 %v3830
      %v3832 = vlaneseq
      %v3833 = vshrl.u32 %v3832, 7
      %v3834 = vsub.s32 %v3831, %v3833
      %v3835 = vrot.slane %v3828, %v3834
      %v3836 = vcombine.low %v3606, %v3607
      %v3838 = vunpack.c.l.s4 1983009808
      %v3839 = vunpack.c.0.s8 %v3838
      %v3840 = vlaneseq
      %v3841 = vshrl.u32 %v3840, 7
      %v3842 = vsub.s32 %v3839, %v3841
      %v3843 = vrot.slane %v3836, %v3842
      %v3844 = vcombine.low %v3819, %v3827
      %v3845 = vcombine.high %v3819, %v3827
      %v3847 = vunpack.c.l.s4 1934713408
      %v3848 = vunpack.c.0.s8 %v3847
      %v3849 = vlaneseq
      %v3850 = vshrl.u32 %v3849, 7
      %v3851 = vsub.s32 %v3848, %v3850
      %v3852 = vrot.slane %v3844, %v3851
      %v3854 = vunpack.c.l.s4 1934713408
      %v3855 = vunpack.c.0.s8 %v3854
      %v3856 = vlaneseq
      %v3857 = vshrl.u32 %v3856, 7
      %v3858 = vsub.s32 %v3855, %v3857
      %v3859 = vrot.slane %v3845, %v3858
      %v3860 = vcombine.low %v3835, %v3843
      %v3861 = vcombine.high %v3835, %v3843
      %v3863 = vunpack.c.l.s4 1934713408
      %v3864 = vunpack.c.0.s8 %v3863
      %v3865 = vlaneseq
      %v3866 = vshrl.u32 %v3865, 7
      %v3867 = vsub.s32 %v3864, %v3866
      %v3868 = vrot.slane %v3860, %v3867
      %v3870 = vunpack.c.l.s4 1934713408
      %v3871 = vunpack.c.0.s8 %v3870
      %v3872 = vlaneseq
      %v3873 = vshrl.u32 %v3872, 7
      %v3874 = vsub.s32 %v3871, %v3873
      %v3875 = vrot.slane %v3861, %v3874
      %v3876 = vcombine.low %v3852, %v3868
      %v3877 = vcombine.high %v3852, %v3868
      %v3878 = vcombine.low %v3859, %v3875
      %v3879 = vcombine.high %v3859, %v3875
      %v3880 = vcombine.low %v3648, %v3655
      %v3882 = vunpack.c.l.s4 1983009808
      %v3883 = vunpack.c.0.s8 %v3882
      %v3884 = vlaneseq
      %v3885 = vshrl.u32 %v3884, 7
      %v3886 = vsub.s32 %v3883, %v3885
      %v3887 = vrot.slane %v3880, %v3886
      %v3888 = vcombine.low %v3672, %v3673
      %v3890 = vunpack.c.l.s4 1983009808
      %v3891 = vunpack.c.0.s8 %v3890
      %v3892 = vlaneseq
      %v3893 = vshrl.u32 %v3892, 7
      %v3894 = vsub.s32 %v3891, %v3893
      %v3895 = vrot.slane %v3888, %v3894
      %v3896 = vcombine.low %v3664, %v3671
      %v3898 = vunpack.c.l.s4 1983009808
      %v3899 = vunpack.c.0.s8 %v3898
      %v3900 = vlaneseq
      %v3901 = vshrl.u32 %v3900, 7
      %v3902 = vsub.s32 %v3899, %v3901
      %v3903 = vrot.slane %v3896, %v3902
      %v3904 = vcombine.low %v3674, %v3675
      %v3906 = vunpack.c.l.s4 1983009808
      %v3907 = vunpack.c.0.s8 %v3906
      %v3908 = vlaneseq
      %v3909 = vshrl.u32 %v3908, 7
      %v3910 = vsub.s32 %v3907, %v3909
      %v3911 = vrot.slane %v3904, %v3910
      %v3912 = vcombine.low %v3887, %v3895
      %v3913 = vcombine.high %v3887, %v3895
      %v3915 = vunpack.c.l.s4 1934713408
      %v3916 = vunpack.c.0.s8 %v3915
      %v3917 = vlaneseq
      %v3918 = vshrl.u32 %v3917, 7
      %v3919 = vsub.s32 %v3916, %v3918
      %v3920 = vrot.slane %v3912, %v3919
      %v3922 = vunpack.c.l.s4 1934713408
      %v3923 = vunpack.c.0.s8 %v3922
      %v3924 = vlaneseq
      %v3925 = vshrl.u32 %v3924, 7
      %v3926 = vsub.s32 %v3923, %v3925
      %v3927 = vrot.slane %v3913, %v3926
      %v3928 = vcombine.low %v3903, %v3911
      %v3929 = vcombine.high %v3903, %v3911
      %v3931 = vunpack.c.l.s4 1934713408
      %v3932 = vunpack.c.0.s8 %v3931
      %v3933 = vlaneseq
      %v3934 = vshrl.u32 %v3933, 7
      %v3935 = vsub.s32 %v3932, %v3934
      %v3936 = vrot.slane %v3928, %v3935
      %v3938 = vunpack.c.l.s4 1934713408
      %v3939 = vunpack.c.0.s8 %v3938
      %v3940 = vlaneseq
      %v3941 = vshrl.u32 %v3940, 7
      %v3942 = vsub.s32 %v3939, %v3941
      %v3943 = vrot.slane %v3929, %v3942
      %v3944 = vcombine.low %v3920, %v3936
      %v3945 = vcombine.high %v3920, %v3936
      %v3946 = vcombine.low %v3927, %v3943
      %v3947 = vcombine.high %v3927, %v3943
      %v3948 = vcombine.low %v3716, %v3723
      %v3950 = vunpack.c.l.s4 1983009808
      %v3951 = vunpack.c.0.s8 %v3950
      %v3952 = vlaneseq
      %v3953 = vshrl.u32 %v3952, 7
      %v3954 = vsub.s32 %v3951, %v3953
      %v3955 = vrot.slane %v3948, %v3954
      %v3956 = vcombine.low %v3740, %v3741
      %v3958 = vunpack.c.l.s4 1983009808
      %v3959 = vunpack.c.0.s8 %v3958
      %v3960 = vlaneseq
      %v3961 = vshrl.u32 %v3960, 7
      %v3962 = vsub.s32 %v3959, %v3961
      %v3963 = vrot.slane %v3956, %v3962
      %v3964 = vcombine.low %v3732, %v3739
      %v3966 = vunpack.c.l.s4 1983009808
      %v3967 = vunpack.c.0.s8 %v3966
      %v3968 = vlaneseq
      %v3969 = vshrl.u32 %v3968, 7
      %v3970 = vsub.s32 %v3967, %v3969
      %v3971 = vrot.slane %v3964, %v3970
      %v3972 = vcombine.low %v3742, %v3743
      %v3974 = vunpack.c.l.s4 1983009808
      %v3975 = vunpack.c.0.s8 %v3974
      %v3976 = vlaneseq
      %v3977 = vshrl.u32 %v3976, 7
      %v3978 = vsub.s32 %v3975, %v3977
      %v3979 = vrot.slane %v3972, %v3978
      %v3980 = vcombine.low %v3955, %v3963
      %v3981 = vcombine.high %v3955, %v3963
      %v3983 = vunpack.c.l.s4 1934713408
      %v3984 = vunpack.c.0.s8 %v3983
      %v3985 = vlaneseq
      %v3986 = vshrl.u32 %v3985, 7
      %v3987 = vsub.s32 %v3984, %v3986
      %v3988 = vrot.slane %v3980, %v3987
      %v3990 = vunpack.c.l.s4 1934713408
      %v3991 = vunpack.c.0.s8 %v3990
      %v3992 = vlaneseq
      %v3993 = vshrl.u32 %v3992, 7
      %v3994 = vsub.s32 %v3991, %v3993
      %v3995 = vrot.slane %v3981, %v3994
      %v3996 = vcombine.low %v3971, %v3979
      %v3997 = vcombine.high %v3971, %v3979
      %v3999 = vunpack.c.l.s4 1934713408
      %v4000 = vunpack.c.0.s8 %v3999
      %v4001 = vlaneseq
      %v4002 = vshrl.u32 %v4001, 7
      %v4003 = vsub.s32 %v4000, %v4002
      %v4004 = vrot.slane %v3996, %v4003
      %v4006 = vunpack.c.l.s4 1934713408
      %v4007 = vunpack.c.0.s8 %v4006
      %v4008 = vlaneseq
      %v4009 = vshrl.u32 %v4008, 7
      %v4010 = vsub.s32 %v4007, %v4009
      %v4011 = vrot.slane %v3997, %v4010
      %v4012 = vcombine.low %v3988, %v4004
      %v4013 = vcombine.high %v3988, %v4004
      %v4014 = vcombine.low %v3995, %v4011
      %v4015 = vcombine.high %v3995, %v4011
      %v4016 = vcombine.low %v3784, %v3791
      %v4018 = vunpack.c.l.s4 1983009808
      %v4019 = vunpack.c.0.s8 %v4018
      %v4020 = vlaneseq
      %v4021 = vshrl.u32 %v4020, 7
      %v4022 = vsub.s32 %v4019, %v4021
      %v4023 = vrot.slane %v4016, %v4022
      %v4024 = vcombine.low %v3808, %v3809
      %v4026 = vunpack.c.l.s4 1983009808
      %v4027 = vunpack.c.0.s8 %v4026
      %v4028 = vlaneseq
      %v4029 = vshrl.u32 %v4028, 7
      %v4030 = vsub.s32 %v4027, %v4029
      %v4031 = vrot.slane %v4024, %v4030
      %v4032 = vcombine.low %v3800, %v3807
      %v4034 = vunpack.c.l.s4 1983009808
      %v4035 = vunpack.c.0.s8 %v4034
      %v4036 = vlaneseq
      %v4037 = vshrl.u32 %v4036, 7
      %v4038 = vsub.s32 %v4035, %v4037
      %v4039 = vrot.slane %v4032, %v4038
      %v4040 = vcombine.low %v3810, %v3811
      %v4042 = vunpack.c.l.s4 1983009808
      %v4043 = vunpack.c.0.s8 %v4042
      %v4044 = vlaneseq
      %v4045 = vshrl.u32 %v4044, 7
      %v4046 = vsub.s32 %v4043, %v4045
      %v4047 = vrot.slane %v4040, %v4046
      %v4048 = vcombine.low %v4023, %v4031
      %v4049 = vcombine.high %v4023, %v4031
      %v4051 = vunpack.c.l.s4 1934713408
      %v4052 = vunpack.c.0.s8 %v4051
      %v4053 = vlaneseq
      %v4054 = vshrl.u32 %v4053, 7
      %v4055 = vsub.s32 %v4052, %v4054
      %v4056 = vrot.slane %v4048, %v4055
      %v4058 = vunpack.c.l.s4 1934713408
      %v4059 = vunpack.c.0.s8 %v4058
      %v4060 = vlaneseq
      %v4061 = vshrl.u32 %v4060, 7
      %v4062 = vsub.s32 %v4059, %v4061
      %v4063 = vrot.slane %v4049, %v4062
      %v4064 = vcombine.low %v4039, %v4047
      %v4065 = vcombine.high %v4039, %v4047
      %v4067 = vunpack.c.l.s4 1934713408
      %v4068 = vunpack.c.0.s8 %v4067
      %v4069 = vlaneseq
      %v4070 = vshrl.u32 %v4069, 7
      %v4071 = vsub.s32 %v4068, %v4070
      %v4072 = vrot.slane %v4064, %v4071
      %v4074 = vunpack.c.l.s4 1934713408
      %v4075 = vunpack.c.0.s8 %v4074
      %v4076 = vlaneseq
      %v4077 = vshrl.u32 %v4076, 7
      %v4078 = vsub.s32 %v4075, %v4077
      %v4079 = vrot.slane %v4065, %v4078
      %v4080 = vcombine.low %v4056, %v4072
      %v4081 = vcombine.high %v4056, %v4072
      %v4082 = vcombine.low %v4063, %v4079
      %v4083 = vcombine.high %v4063, %v4079
      %4088 = vrot.lane.b32.xlu0 %v3877, 8
      %v4089 = vpop.permute.xlu0 %4088
      %4090 = vrot.lane.b32.xlu0 %v3945, 8
      %v4091 = vpop.permute.xlu0 %4090
      %4092 = vrot.lane.b32.xlu0 %v4013, 8
      %v4093 = vpop.permute.xlu0 %4092
      %4094 = vrot.lane.b32.xlu0 %v4081, 8
      %v4095 = vpop.permute.xlu0 %4094
      %4104 = vrot.lane.b32.xlu0 %v3878, 16
      %v4105 = vpop.permute.xlu0 %4104
      %4106 = vrot.lane.b32.xlu0 %v3946, 16
      %v4107 = vpop.permute.xlu0 %4106
      %4108 = vrot.lane.b32.xlu0 %v4014, 16
      %v4109 = vpop.permute.xlu0 %4108
      %4110 = vrot.lane.b32.xlu0 %v4082, 16
      %v4111 = vpop.permute.xlu0 %4110
      %4120 = vrot.lane.b32.xlu0 %v3879, 24
      %v4121 = vpop.permute.xlu0 %4120
      %4122 = vrot.lane.b32.xlu0 %v3947, 24
      %v4123 = vpop.permute.xlu0 %4122
      %4124 = vrot.lane.b32.xlu0 %v4015, 24
      %v4125 = vpop.permute.xlu0 %4124
      %4126 = vrot.lane.b32.xlu0 %v4083, 24
      %v4127 = vpop.permute.xlu0 %4126
      %v4132 = vsel %vm2855, %v3876, %v4089
      %v4133 = vsel %vm2855, %v3944, %v4091
      %v4134 = vsel %vm2855, %v4012, %v4093
      %v4135 = vsel %vm2855, %v4080, %v4095
      %vm4136 = vcmask 130048
      %v4137 = vsel %vm4136, %v4132, %v4105
      %v4138 = vsel %vm4136, %v4133, %v4107
      %v4139 = vsel %vm4136, %v4134, %v4109
      %v4140 = vsel %vm4136, %v4135, %v4111
      %vm4141 = vcmask 195584
      %v4142 = vsel %vm4141, %v4137, %v4121
      %v4143 = vsel %vm4141, %v4138, %v4123
      %v4144 = vsel %vm4141, %v4139, %v4125
      %v4145 = vsel %vm4141, %v4140, %v4127
      %v4146 = vld [vmem:[%s761] sm:$0xf]
      %v4147 = vld [vmem:[%s761 + $0x4] sm:$0xf]
      %v4148 = vld [vmem:[%s761 + $0x8] sm:$0xf]
      %v4149 = vld [vmem:[%s761 + $0xc] sm:$0xf]
      %v4150 = vpack.c.bf16 %v4143, %v4142
      %v4151 = vpack.c.bf16 %v4145, %v4144
      %v4156 = vunpack.c.l.b16 %v4146
      %v4157 = vunpack.c.l.b16 %v4147
      %v4158 = vunpack.c.l.b16 %v4148
      %v4159 = vunpack.c.l.b16 %v4149
      %v4160 = vpack.c.b16 %v4157, %v4156
      %v4161 = vpack.c.b16 %v4159, %v4158
      %v4165 = vsel %vm909, %v4150, 0
      %v4168 = vsel %vm909, %v4151, 0
      %4170 = vmatprep.subr.bf16.mxu0 0
      %4171 = vmatpush1.bf16.msra.mxu0 0
      %4172 = vmatprep.subr.bf16.mxu0 0
      %4173 = vmatpush1.bf16.msra.mxu0 0
      %4174 = vmatprep.subr.bf16.mxu0 0
      %4175 = vmatpush1.bf16.msra.mxu0 0
      %4176 = vmatprep.subr.bf16.mxu0 0
      %4177 = vmatpush1.bf16.msra.mxu0 0
      %4178 = vmatprep.subr.bf16.mxu0 0
      %4179 = vmatpush1.bf16.msra.mxu0 0
      %4180 = vmatprep.subr.bf16.mxu0 0
      %4181 = vmatpush1.bf16.msra.mxu0 0
      %4182 = vmatprep.subr.bf16.mxu0 0
      %4183 = vmatpush1.bf16.msra.mxu0 %v4161
      %4184 = vmatprep.subr.bf16.mxu0 0
      %4185 = vmatpush1.bf16.msra.mxu0 %v4160
      %4186 = vmatprep.subr.bf16.mxu0 0
      %4187 = vmatpush2.bf16.msra.mxu0 0
      %4188 = vmatprep.subr.bf16.mxu0 0
      %4189 = vmatpush2.bf16.msra.mxu0 0
      %4190 = vmatprep.subr.bf16.mxu0 0
      %4191 = vmatpush2.bf16.msra.mxu0 0
      %4192 = vmatprep.subr.bf16.mxu0 0
      %4193 = vmatpush2.bf16.msra.mxu0 0
      %4194 = vmatprep.subr.bf16.mxu0 0
      %4195 = vmatpush2.bf16.msra.mxu0 0
      %4196 = vmatprep.subr.bf16.mxu0 0
      %4197 = vmatpush2.bf16.msra.mxu0 0
      %4198 = vmatprep.subr.bf16.mxu0 0
      %4199 = vmatpush2.bf16.msra.mxu0 0
      %4200 = vmatprep.subr.bf16.mxu0 0
      %4201 = vmatpush2.bf16.msra.mxu0 0
      %4202 = vmatprep.mubr.bf16.mxu0 0
      %4203 = vmatmul.mubr.bf16.gmra.mxu0 %v4165
      %v4204 = vpop.f32.mrf.mxu0
      %v4205 = vadd.f32 0.0, %v4204
      %v4206 = vpop.f32.mrf.mxu0
      %v4207 = vpop.f32.mrf.mxu0
      %v4208 = vadd.f32 0.0, %v4207
      %v4209 = vpop.f32.mrf.mxu0
      %4210 = vmatprep.mubr.bf16.mxu0 0
      %4211 = vmatmul.mubr.bf16.gmra.mxu0 %v4168
      %v4212 = vpop.f32.mrf.mxu0
      %v4213 = vadd.f32 0.0, %v4212
      %v4214 = vpop.f32.mrf.mxu0
      %v4215 = vpop.f32.mrf.mxu0
      %v4216 = vadd.f32 0.0, %v4215
      %v4217 = vpop.f32.mrf.mxu0
      %4218 = vdwg.mxu0
      %v4219 = vadd.f32 %v903, %v4205
      %v4220 = vadd.f32 %v904, %v4208
      %v4221 = vadd.f32 %v905, %v4213
      %v4222 = vadd.f32 %v906, %v4216
      %v4223 = vld [vmem:[%s764] sm:$0x1]
      %v4225 = vlaneseq
      %v4226 = vshrl.u32 %v4225, 7
      %v4227 = vsub.s32 0, %v4226
      %v4228 = vrot.slane %v4223, %v4227
      %v4230 = vadd.f32 %v4219, %v4228
      %v4231 = vadd.f32 %v4220, %v4228
      %v4232 = vadd.f32 %v4221, %v4228
      %v4233 = vadd.f32 %v4222, %v4228
      %v4234 = vld [vmem:[%s767] sm:$0x1]
      %v4235 = vld [vmem:[%s770] sm:$0x1]
      %v4236 = vsel %vm909, %v4230, 0.0
      %4237 = vadd.xlane.f32.xlu0 %v4236
      %v4238 = vpop.xlane.xlu0 %4237
      %v4239 = vsel %vm909, %v4231, 0.0
      %4240 = vadd.xlane.f32.xlu0 %v4239
      %v4241 = vpop.xlane.xlu0 %4240
      %v4242 = vsel %vm909, %v4232, 0.0
      %4243 = vadd.xlane.f32.xlu0 %v4242
      %v4244 = vpop.xlane.xlu0 %4243
      %v4245 = vsel %vm909, %v4233, 0.0
      %4246 = vadd.xlane.f32.xlu0 %v4245
      %v4247 = vpop.xlane.xlu0 %4246
      %v4248 = vmul.f32 %v4238, %v922
      %v4249 = vmul.f32 %v4241, %v922
      %v4250 = vmul.f32 %v4244, %v922
      %v4251 = vmul.f32 %v4247, %v922
      %v4252 = vsub.f32 %v4230, %v4248
      %v4253 = vsub.f32 %v4231, %v4249
      %v4254 = vsub.f32 %v4232, %v4250
      %v4255 = vsub.f32 %v4233, %v4251
      %v4256 = vmul.f32 %v4252, %v4252
      %v4257 = vmul.f32 %v4253, %v4253
      %v4258 = vmul.f32 %v4254, %v4254
      %v4259 = vmul.f32 %v4255, %v4255
      %v4260 = vsel %vm909, %v4256, 0.0
      %4261 = vadd.xlane.f32.xlu0 %v4260
      %v4262 = vpop.xlane.xlu0 %4261
      %v4263 = vsel %vm909, %v4257, 0.0
      %4264 = vadd.xlane.f32.xlu0 %v4263
      %v4265 = vpop.xlane.xlu0 %4264
      %v4266 = vsel %vm909, %v4258, 0.0
      %4267 = vadd.xlane.f32.xlu0 %v4266
      %v4268 = vpop.xlane.xlu0 %4267
      %v4269 = vsel %vm909, %v4259, 0.0
      %4270 = vadd.xlane.f32.xlu0 %v4269
      %v4271 = vpop.xlane.xlu0 %4270
      %v4272 = vmul.f32 %v4262, %v922
      %v4273 = vmul.f32 %v4265, %v922
      %v4274 = vmul.f32 %v4268, %v922
      %v4275 = vmul.f32 %v4271, %v922
      %v4276 = vadd.f32 %v4272, 1e-05
      %v4277 = vadd.f32 %v4273, 1e-05
      %v4278 = vadd.f32 %v4274, 1e-05
      %v4279 = vadd.f32 %v4275, 1e-05
      %v4280 = vrsqrt.pop %v4276
      %v4281 = vrsqrt.pop %v4277
      %v4282 = vrsqrt.pop %v4278
      %v4283 = vrsqrt.pop %v4279
      %v4284 = vmul.f32 %v4252, %v4280
      %v4285 = vmul.f32 %v4253, %v4281
      %v4286 = vmul.f32 %v4254, %v4282
      %v4287 = vmul.f32 %v4255, %v4283
      %v4289 = vlaneseq
      %v4290 = vshrl.u32 %v4289, 7
      %v4291 = vsub.s32 0, %v4290
      %v4292 = vrot.slane %v4234, %v4291
      %v4294 = vmul.f32 %v4284, %v4292
      %v4295 = vmul.f32 %v4285, %v4292
      %v4296 = vmul.f32 %v4286, %v4292
      %v4297 = vmul.f32 %v4287, %v4292
      %v4299 = vlaneseq
      %v4300 = vshrl.u32 %v4299, 7
      %v4301 = vsub.s32 0, %v4300
      %v4302 = vrot.slane %v4235, %v4301
      %v4304 = vadd.f32 %v4294, %v4302
      %v4305 = vadd.f32 %v4295, %v4302
      %v4306 = vadd.f32 %v4296, %v4302
      %v4307 = vadd.f32 %v4297, %v4302
      %v4308 = vld [vmem:[%s775] sm:$0xf]
      %v4309 = vld [vmem:[%s775 + $0x4] sm:$0xf]
      %v4310 = vld [vmem:[%s775 + $0x8] sm:$0xf]
      %v4311 = vld [vmem:[%s775 + $0xc] sm:$0xf]
      %v4312 = vpack.c.bf16 %v4305, %v4304
      %v4313 = vpack.c.bf16 %v4307, %v4306
      %v4314 = vld [vmem:[%s778] sm:$0x1]
      %v4316 = vlaneseq
      %v4317 = vshrl.u32 %v4316, 7
      %v4318 = vsub.s32 0, %v4317
      %v4319 = vrot.slane %v4314, %v4318
      %v4325 = vunpack.c.l.b16 %v4308
      %v4326 = vunpack.c.l.b16 %v4309
      %v4327 = vunpack.c.l.b16 %v4310
      %v4328 = vunpack.c.l.b16 %v4311
      %v4329 = vpack.c.b16 %v4326, %v4325
      %v4330 = vpack.c.b16 %v4328, %v4327
      %v4334 = vsel %vm909, %v4312, 0
      %v4337 = vsel %vm909, %v4313, 0
      %4339 = vmatprep.subr.bf16.mxu0 0
      %4340 = vmatpush1.bf16.msra.mxu0 0
      %4341 = vmatprep.subr.bf16.mxu0 0
      %4342 = vmatpush1.bf16.msra.mxu0 0
      %4343 = vmatprep.subr.bf16.mxu0 0
      %4344 = vmatpush1.bf16.msra.mxu0 0
      %4345 = vmatprep.subr.bf16.mxu0 0
      %4346 = vmatpush1.bf16.msra.mxu0 0
      %4347 = vmatprep.subr.bf16.mxu0 0
      %4348 = vmatpush1.bf16.msra.mxu0 0
      %4349 = vmatprep.subr.bf16.mxu0 0
      %4350 = vmatpush1.bf16.msra.mxu0 0
      %4351 = vmatprep.subr.bf16.mxu0 0
      %4352 = vmatpush1.bf16.msra.mxu0 %v4330
      %4353 = vmatprep.subr.bf16.mxu0 0
      %4354 = vmatpush1.bf16.msra.mxu0 %v4329
      %4355 = vmatprep.subr.bf16.mxu0 0
      %4356 = vmatpush2.bf16.msra.mxu0 0
      %4357 = vmatprep.subr.bf16.mxu0 0
      %4358 = vmatpush2.bf16.msra.mxu0 0
      %4359 = vmatprep.subr.bf16.mxu0 0
      %4360 = vmatpush2.bf16.msra.mxu0 0
      %4361 = vmatprep.subr.bf16.mxu0 0
      %4362 = vmatpush2.bf16.msra.mxu0 0
      %4363 = vmatprep.subr.bf16.mxu0 0
      %4364 = vmatpush2.bf16.msra.mxu0 0
      %4365 = vmatprep.subr.bf16.mxu0 0
      %4366 = vmatpush2.bf16.msra.mxu0 0
      %4367 = vmatprep.subr.bf16.mxu0 0
      %4368 = vmatpush2.bf16.msra.mxu0 0
      %4369 = vmatprep.subr.bf16.mxu0 0
      %4370 = vmatpush2.bf16.msra.mxu0 0
      %4371 = vmatprep.mubr.bf16.mxu0 0
      %4372 = vmatmul.mubr.bf16.gmra.mxu0 %v4334
      %v4373 = vpop.f32.mrf.mxu0
      %v4374 = vadd.f32 %v4319, %v4373
      %v4375 = vpop.f32.mrf.mxu0
      %v4376 = vpop.f32.mrf.mxu0
      %v4377 = vadd.f32 %v4319, %v4376
      %v4378 = vpop.f32.mrf.mxu0
      %4379 = vmatprep.mubr.bf16.mxu0 0
      %4380 = vmatmul.mubr.bf16.gmra.mxu0 %v4337
      %v4381 = vpop.f32.mrf.mxu0
      %v4382 = vadd.f32 %v4319, %v4381
      %v4383 = vpop.f32.mrf.mxu0
      %v4384 = vpop.f32.mrf.mxu0
      %v4385 = vadd.f32 %v4319, %v4384
      %v4386 = vpop.f32.mrf.mxu0
      %4387 = vdwg.mxu0
      %v4388 = vmax.f32 %v4374, 0.0
      %v4389 = vmax.f32 %v4377, 0.0
      %v4390 = vmax.f32 %v4382, 0.0
      %v4391 = vmax.f32 %v4385, 0.0
      %v4392 = vld [vmem:[%s783] sm:$0xf]
      %v4393 = vld [vmem:[%s783 + $0x4] sm:$0xf]
      %v4394 = vld [vmem:[%s783 + $0x8] sm:$0xf]
      %v4395 = vld [vmem:[%s783 + $0xc] sm:$0xf]
      %v4396 = vld [vmem:[%s783 + $0x10] sm:$0xf]
      %v4397 = vld [vmem:[%s783 + $0x14] sm:$0xf]
      %v4398 = vld [vmem:[%s783 + $0x18] sm:$0xf]
      %v4399 = vld [vmem:[%s783 + $0x1c] sm:$0xf]
      %v4400 = vld [vmem:[%s783 + $0x20] sm:$0xf]
      %v4401 = vld [vmem:[%s783 + $0x24] sm:$0xf]
      %v4402 = vld [vmem:[%s783 + $0x28] sm:$0xf]
      %v4403 = vld [vmem:[%s783 + $0x2c] sm:$0xf]
      %v4404 = vld [vmem:[%s783 + $0x30] sm:$0xf]
      %v4405 = vld [vmem:[%s783 + $0x34] sm:$0xf]
      %v4406 = vld [vmem:[%s783 + $0x38] sm:$0xf]
      %v4407 = vld [vmem:[%s783 + $0x3c] sm:$0xf]
      %v4408 = vpack.c.bf16 %v4389, %v4388
      %v4409 = vpack.c.bf16 %v4391, %v4390
      %v4426 = vunpack.c.l.b16 %v4392
      %v4427 = vunpack.c.l.b16 %v4393
      %v4428 = vunpack.c.l.b16 %v4394
      %v4429 = vunpack.c.l.b16 %v4395
      %v4430 = vunpack.c.l.b16 %v4396
      %v4431 = vunpack.c.l.b16 %v4397
      %v4432 = vunpack.c.l.b16 %v4398
      %v4433 = vunpack.c.l.b16 %v4399
      %v4434 = vunpack.c.l.b16 %v4400
      %v4435 = vunpack.c.l.b16 %v4401
      %v4436 = vunpack.c.l.b16 %v4402
      %v4437 = vunpack.c.l.b16 %v4403
      %v4438 = vunpack.c.l.b16 %v4404
      %v4439 = vunpack.c.l.b16 %v4405
      %v4440 = vunpack.c.l.b16 %v4406
      %v4441 = vunpack.c.l.b16 %v4407
      %v4442 = vpack.c.b16 %v4427, %v4426
      %v4443 = vpack.c.b16 %v4429, %v4428
      %v4444 = vpack.c.b16 %v4431, %v4430
      %v4445 = vpack.c.b16 %v4433, %v4432
      %v4446 = vpack.c.b16 %v4435, %v4434
      %v4447 = vpack.c.b16 %v4437, %v4436
      %v4448 = vpack.c.b16 %v4439, %v4438
      %v4449 = vpack.c.b16 %v4441, %v4440
      %4458 = vmatprep.subr.bf16.mxu0 0
      %4459 = vmatpush1.bf16.msra.mxu0 %v4449
      %4460 = vmatprep.subr.bf16.mxu0 0
      %4461 = vmatpush1.bf16.msra.mxu0 %v4448
      %4462 = vmatprep.subr.bf16.mxu0 0
      %4463 = vmatpush1.bf16.msra.mxu0 %v4447
      %4464 = vmatprep.subr.bf16.mxu0 0
      %4465 = vmatpush1.bf16.msra.mxu0 %v4446
      %4466 = vmatprep.subr.bf16.mxu0 0
      %4467 = vmatpush1.bf16.msra.mxu0 %v4445
      %4468 = vmatprep.subr.bf16.mxu0 0
      %4469 = vmatpush1.bf16.msra.mxu0 %v4444
      %4470 = vmatprep.subr.bf16.mxu0 0
      %4471 = vmatpush1.bf16.msra.mxu0 %v4443
      %4472 = vmatprep.subr.bf16.mxu0 0
      %4473 = vmatpush1.bf16.msra.mxu0 %v4442
      %4474 = vmatprep.subr.bf16.mxu0 0
      %4475 = vmatpush2.bf16.msra.mxu0 0
      %4476 = vmatprep.subr.bf16.mxu0 0
      %4477 = vmatpush2.bf16.msra.mxu0 0
      %4478 = vmatprep.subr.bf16.mxu0 0
      %4479 = vmatpush2.bf16.msra.mxu0 0
      %4480 = vmatprep.subr.bf16.mxu0 0
      %4481 = vmatpush2.bf16.msra.mxu0 0
      %4482 = vmatprep.subr.bf16.mxu0 0
      %4483 = vmatpush2.bf16.msra.mxu0 0
      %4484 = vmatprep.subr.bf16.mxu0 0
      %4485 = vmatpush2.bf16.msra.mxu0 0
      %4486 = vmatprep.subr.bf16.mxu0 0
      %4487 = vmatpush2.bf16.msra.mxu0 0
      %4488 = vmatprep.subr.bf16.mxu0 0
      %4489 = vmatpush2.bf16.msra.mxu0 0
      %4490 = vmatprep.mubr.bf16.mxu0 0
      %4491 = vmatmul.mubr.bf16.gmra.mxu0 %v4408
      %v4492 = vpop.f32.mrf.mxu0
      %v4493 = vadd.f32 0.0, %v4492
      %v4494 = vpop.f32.mrf.mxu0
      %v4495 = vpop.f32.mrf.mxu0
      %v4496 = vadd.f32 0.0, %v4495
      %v4497 = vpop.f32.mrf.mxu0
      %4498 = vmatprep.mubr.bf16.mxu0 0
      %4499 = vmatmul.mubr.bf16.gmra.mxu0 %v4409
      %v4500 = vpop.f32.mrf.mxu0
      %v4501 = vadd.f32 0.0, %v4500
      %v4502 = vpop.f32.mrf.mxu0
      %v4503 = vpop.f32.mrf.mxu0
      %v4504 = vadd.f32 0.0, %v4503
      %v4505 = vpop.f32.mrf.mxu0
      %4506 = vdwg.mxu0
      %v4507 = vadd.f32 %v4230, %v4493
      %v4508 = vadd.f32 %v4231, %v4496
      %v4509 = vadd.f32 %v4232, %v4501
      %v4510 = vadd.f32 %v4233, %v4504
      %v4511 = vld [vmem:[%s786] sm:$0x1]
      %v4513 = vlaneseq
      %v4514 = vshrl.u32 %v4513, 7
      %v4515 = vsub.s32 0, %v4514
      %v4516 = vrot.slane %v4511, %v4515
      %v4518 = vadd.f32 %v4507, %v4516
      %v4519 = vadd.f32 %v4508, %v4516
      %v4520 = vadd.f32 %v4509, %v4516
      %v4521 = vadd.f32 %v4510, %v4516
      %4522 = vst.msk [vmem:[#allocation2] sm:$0xff] %vm909, %v4518
      %4523 = vst.msk [vmem:[#allocation2 + $0x8] sm:$0xff] %vm909, %v4519
      %4524 = vst.msk [vmem:[#allocation2 + $0x10] sm:$0xff] %vm909, %v4520
      %4525 = vst.msk [vmem:[#allocation2 + $0x18] sm:$0xff] %vm909, %v4521
      %p4526 = scmp.eq.s32.totalorder %s31, 1
      // Predicated region
      $region105: #{_lambda_.1} parent=99 // pred_check
        %p4527 = pneg %p4526
      $region106: #{_lambda_.1} parent=99 // pred_check_branch
        %4529 = sbr.rel (%p4527) target = $region108
      $region107: #{_lambda_.1} parent=99 // pred_region
        %v4530 = vld [vmem:[%s16] sm:$0x1]
        %v4531 = vld [vmem:[%s17] sm:$0x1]
        %v4532 = vsel %vm909, %v4518, 0.0
        %4533 = vadd.xlane.f32.xlu0 %v4532
        %v4534 = vpop.xlane.xlu0 %4533
        %v4535 = vsel %vm909, %v4519, 0.0
        %4536 = vadd.xlane.f32.xlu0 %v4535
        %v4537 = vpop.xlane.xlu0 %4536
        %v4538 = vsel %vm909, %v4520, 0.0
        %4539 = vadd.xlane.f32.xlu0 %v4538
        %v4540 = vpop.xlane.xlu0 %4539
        %v4541 = vsel %vm909, %v4521, 0.0
        %4542 = vadd.xlane.f32.xlu0 %v4541
        %v4543 = vpop.xlane.xlu0 %4542
        %v4544 = vmul.f32 %v4534, %v922
        %v4545 = vmul.f32 %v4537, %v922
        %v4546 = vmul.f32 %v4540, %v922
        %v4547 = vmul.f32 %v4543, %v922
        %v4548 = vsub.f32 %v4518, %v4544
        %v4549 = vsub.f32 %v4519, %v4545
        %v4550 = vsub.f32 %v4520, %v4546
        %v4551 = vsub.f32 %v4521, %v4547
        %v4552 = vmul.f32 %v4548, %v4548
        %v4553 = vmul.f32 %v4549, %v4549
        %v4554 = vmul.f32 %v4550, %v4550
        %v4555 = vmul.f32 %v4551, %v4551
        %v4556 = vsel %vm909, %v4552, 0.0
        %4557 = vadd.xlane.f32.xlu0 %v4556
        %v4558 = vpop.xlane.xlu0 %4557
        %v4559 = vsel %vm909, %v4553, 0.0
        %4560 = vadd.xlane.f32.xlu0 %v4559
        %v4561 = vpop.xlane.xlu0 %4560
        %v4562 = vsel %vm909, %v4554, 0.0
        %4563 = vadd.xlane.f32.xlu0 %v4562
        %v4564 = vpop.xlane.xlu0 %4563
        %v4565 = vsel %vm909, %v4555, 0.0
        %4566 = vadd.xlane.f32.xlu0 %v4565
        %v4567 = vpop.xlane.xlu0 %4566
        %v4568 = vmul.f32 %v4558, %v922
        %v4569 = vmul.f32 %v4561, %v922
        %v4570 = vmul.f32 %v4564, %v922
        %v4571 = vmul.f32 %v4567, %v922
        %v4572 = vadd.f32 %v4568, 1e-05
        %v4573 = vadd.f32 %v4569, 1e-05
        %v4574 = vadd.f32 %v4570, 1e-05
        %v4575 = vadd.f32 %v4571, 1e-05
        %v4576 = vrsqrt.pop %v4572
        %v4577 = vrsqrt.pop %v4573
        %v4578 = vrsqrt.pop %v4574
        %v4579 = vrsqrt.pop %v4575
        %v4580 = vmul.f32 %v4548, %v4576
        %v4581 = vmul.f32 %v4549, %v4577
        %v4582 = vmul.f32 %v4550, %v4578
        %v4583 = vmul.f32 %v4551, %v4579
        %v4585 = vlaneseq
        %v4586 = vshrl.u32 %v4585, 7
        %v4587 = vsub.s32 0, %v4586
        %v4588 = vrot.slane %v4530, %v4587
        %v4590 = vmul.f32 %v4580, %v4588
        %v4591 = vmul.f32 %v4581, %v4588
        %v4592 = vmul.f32 %v4582, %v4588
        %v4593 = vmul.f32 %v4583, %v4588
        %v4595 = vlaneseq
        %v4596 = vshrl.u32 %v4595, 7
        %v4597 = vsub.s32 0, %v4596
        %v4598 = vrot.slane %v4531, %v4597
        %v4600 = vadd.f32 %v4590, %v4598
        %v4601 = vadd.f32 %v4591, %v4598
        %v4602 = vadd.f32 %v4592, %v4598
        %v4603 = vadd.f32 %v4593, %v4598
        %v4604 = vld [vmem:[%s18] sm:$0xf]
        %v4605 = vld [vmem:[%s18 + $0x4] sm:$0xf]
        %v4606 = vld [vmem:[%s18 + $0x8] sm:$0xf]
        %v4607 = vld [vmem:[%s18 + $0xc] sm:$0xf]
        %v4608 = vpack.c.bf16 %v4601, %v4600
        %v4609 = vpack.c.bf16 %v4603, %v4602
        %v4610 = vld [vmem:[%s19] sm:$0x1]
        %v4612 = vlaneseq
        %v4613 = vshrl.u32 %v4612, 7
        %v4614 = vsub.s32 0, %v4613
        %v4615 = vrot.slane %v4610, %v4614
        %v4621 = vunpack.c.l.b16 %v4604
        %v4622 = vunpack.c.l.b16 %v4605
        %v4623 = vunpack.c.l.b16 %v4606
        %v4624 = vunpack.c.l.b16 %v4607
        %v4625 = vpack.c.b16 %v4622, %v4621
        %v4626 = vpack.c.b16 %v4624, %v4623
        %v4630 = vsel %vm909, %v4608, 0
        %v4633 = vsel %vm909, %v4609, 0
        %4635 = vmatprep.subr.bf16.mxu0 0
        %4636 = vmatpush1.bf16.msra.mxu0 0
        %4637 = vmatprep.subr.bf16.mxu0 0
        %4638 = vmatpush1.bf16.msra.mxu0 0
        %4639 = vmatprep.subr.bf16.mxu0 0
        %4640 = vmatpush1.bf16.msra.mxu0 0
        %4641 = vmatprep.subr.bf16.mxu0 0
        %4642 = vmatpush1.bf16.msra.mxu0 0
        %4643 = vmatprep.subr.bf16.mxu0 0
        %4644 = vmatpush1.bf16.msra.mxu0 0
        %4645 = vmatprep.subr.bf16.mxu0 0
        %4646 = vmatpush1.bf16.msra.mxu0 0
        %4647 = vmatprep.subr.bf16.mxu0 0
        %4648 = vmatpush1.bf16.msra.mxu0 %v4626
        %4649 = vmatprep.subr.bf16.mxu0 0
        %4650 = vmatpush1.bf16.msra.mxu0 %v4625
        %4651 = vmatprep.subr.bf16.mxu0 0
        %4652 = vmatpush2.bf16.msra.mxu0 0
        %4653 = vmatprep.subr.bf16.mxu0 0
        %4654 = vmatpush2.bf16.msra.mxu0 0
        %4655 = vmatprep.subr.bf16.mxu0 0
        %4656 = vmatpush2.bf16.msra.mxu0 0
        %4657 = vmatprep.subr.bf16.mxu0 0
        %4658 = vmatpush2.bf16.msra.mxu0 0
        %4659 = vmatprep.subr.bf16.mxu0 0
        %4660 = vmatpush2.bf16.msra.mxu0 0
        %4661 = vmatprep.subr.bf16.mxu0 0
        %4662 = vmatpush2.bf16.msra.mxu0 0
        %4663 = vmatprep.subr.bf16.mxu0 0
        %4664 = vmatpush2.bf16.msra.mxu0 0
        %4665 = vmatprep.subr.bf16.mxu0 0
        %4666 = vmatpush2.bf16.msra.mxu0 0
        %4667 = vmatprep.mubr.bf16.mxu0 0
        %4668 = vmatmul.mubr.bf16.gmra.mxu0 %v4630
        %v4669 = vpop.f32.mrf.mxu0
        %v4670 = vadd.f32 %v4615, %v4669
        %v4671 = vpop.f32.mrf.mxu0
        %v4672 = vpop.f32.mrf.mxu0
        %v4673 = vadd.f32 %v4615, %v4672
        %v4674 = vpop.f32.mrf.mxu0
        %4675 = vmatprep.mubr.bf16.mxu0 0
        %4676 = vmatmul.mubr.bf16.gmra.mxu0 %v4633
        %v4677 = vpop.f32.mrf.mxu0
        %v4678 = vadd.f32 %v4615, %v4677
        %v4679 = vpop.f32.mrf.mxu0
        %v4680 = vpop.f32.mrf.mxu0
        %v4681 = vadd.f32 %v4615, %v4680
        %v4682 = vpop.f32.mrf.mxu0
        %4683 = vdwg.mxu0
        %vm4684 = vcmask 523264
        %4685 = vst.msk [vmem:[%s20] sm:$0xff] %vm4684, %v4670
        %4686 = vst.msk [vmem:[%s20 + $0x8] sm:$0xff] %vm4684, %v4673
        %4687 = vst.msk [vmem:[%s20 + $0x10] sm:$0xff] %vm4684, %v4678
        %4688 = vst.msk [vmem:[%s20 + $0x18] sm:$0xff] %vm4684, %v4681
      $region108: #{_lambda_.1} parent=99 // pred_fallthru
        _
      // Predicated region
      $region109: #{_lambda_.1} parent=99 // pred_check
        %p4689 = pneg %p524
      $region110: #{_lambda_.1} parent=99 // pred_check_branch
        %4691 = sbr.rel (%p4689) target = $region112
      $region111: #{_lambda_.1} parent=99 // pred_region
        _
      $region112: #{_lambda_.1} parent=99 // pred_fallthru
        _
      // Predicated region
      $region113: #{_lambda_.1} parent=99 // pred_check
        %p4692 = pneg %p524
      $region114: #{_lambda_.1} parent=99 // pred_check_branch
        %4694 = sbr.rel (%p4692) target = $region116
      $region115: #{_lambda_.1} parent=99 // pred_region
        _
      $region116: #{_lambda_.1} parent=99 // pred_fallthru
        _
    $region100: #{_lambda_.1} parent=5 // pred_fallthru
      _
    %p4695 = scmp.le.s32.totalorder 2, %s26
    // Predicated region
    $region117: #{_lambda_.1} parent=5 // pred_check
      %p4696 = pneg %p4695
    $region118: #{_lambda_.1} parent=5 // pred_check_branch
      %4698 = sbr.rel (%p4696) target = $region120
    $region119: #{_lambda_.1} parent=5 // pred_region
      %s4699 = ssub.s32 %s26, 2
    $region120: #{_lambda_.1} parent=5 // pred_fallthru
      _
  $region6: #{_lambda_.1} parent=0 // loop_footer
    %s30 = sadd.s32 1, %s26
  $region7: #{_lambda_.1} parent=0 // loop_footer_branch
    %25 = sbr.rel target = $region3
  $region8: #{_lambda_.1} parent=0 // loop_exit
    _

</llo_original>
